<compile_context>
chip_gen: v6e
topology: v6e:2x2x1
jax: 0.10.0
libtpu: 0.0.40
codegen_flags: <defaults>
</compile_context>

<pallas_src>
import functools
import math

import jax
import jax.numpy as jnp
from jax import lax
from jax.experimental import pallas as pl
from jax.experimental.pallas import tpu as pltpu

EPS = 1e-5


def _round_up(a, b):
    return ((a + b - 1) // b) * b


def _vmem_budgets():
    """(fast-path in+out slab budget, scoped vmem limit) — per-chip aware."""
    try:
        cap = int(pltpu.get_tpu_info().vmem_capacity_bytes)
    except Exception:
        cap = 64 * 1024 * 1024                       # conservative (v7x per-TC)
    fast_budget = min(cap // 3, 48 * 1024 * 1024)    # v5e/v6e ~42 MiB, v7x ~21 MiB
    vmem_limit = min(max(fast_budget + (16 << 20), 32 << 20), cap - (8 << 20))
    return fast_budget, vmem_limit


# --------------------------------------------------------------------------------------
# BhattacharyyaCoeff core: in-kernel unfold + weighted sqrt-product reduction
# --------------------------------------------------------------------------------------

def _coeff_block(sx, zw, k, oh, ow):
    """acc[p,q] = sum_{c,i,j} (w[c]*sqrt(z[c,i,j])) * sqrt(x[c,p+i,q+j]).

    sx: (C, m, m) = sqrt(x) (computed once, pre-expansion).  zw: (C, k, k) = w*sqrt(z).
    The k*k static shifted windows replace F.unfold; no HBM expansion.
    """
    acc = jnp.zeros((oh, ow), jnp.float32)
    for i in range(k):
        for j in range(k):
            acc = acc + jnp.sum(zw[:, i:i + 1, j:j + 1] * sx[:, i:i + oh, j:j + ow], axis=0)
    return acc


def _bhatta_kernel(k, oh, ow, inv_k2, zw_ref, x_ref, o_ref):
    sx = jnp.sqrt(x_ref[0].astype(jnp.float32))     # (C, m, m): sqrt once per element
    zw = zw_ref[0].astype(jnp.float32)              # (C, k, k): w[c] * sqrt(z)
    o_ref[0] = (_coeff_block(sx, zw, k, oh, ow) * inv_k2).astype(o_ref.dtype)


def bhattacharyya_forward(z, x, weights):
    """BhattacharyyaCoeff.forward. z: (N,C,k,k), x: (N,C,m,m), weights: (C,)."""
    N, C, k, _ = z.shape
    m = x.shape[2]
    oh = ow = m - k + 1
    inv_k2 = 1.0 / float(k * k)
    # Tiny pre-multiply on the UNEXPANDED template (z >= 0); w stays outside the root.
    zw = weights.reshape(1, C, 1, 1).astype(jnp.float32) * jnp.sqrt(z.astype(jnp.float32))
    _, vmem_limit = _vmem_budgets()
    out = pl.pallas_call(
        functools.partial(_bhatta_kernel, k, oh, ow, inv_k2),
        out_shape=jax.ShapeDtypeStruct((N, oh, ow), x.dtype),
        grid=(N,),
        in_specs=[pl.BlockSpec((1, C, k, k), lambda n: (n, 0, 0, 0)),
                  pl.BlockSpec((1, C, m, m), lambda n: (n, 0, 0, 0))],   # raw x; unfold in-kernel
        out_specs=pl.BlockSpec((1, oh, ow), lambda n: (n, 0, 0)),
        compiler_params=pltpu.CompilerParams(
            dimension_semantics=("parallel",), vmem_limit_bytes=vmem_limit),
    )(zw, x)
    return out.reshape(N, 1, oh, ow)


# --------------------------------------------------------------------------------------
# Fused SiameseNet tail: BhattacharyyaCoeff + Adjust2d in one pallas_call
# --------------------------------------------------------------------------------------

def _join_bn_kernel(k, oh, ow, inv_k2, inv_total, gb_ref, zw_ref, x_ref, o_ref, coeff_sc):
    n = pl.program_id(0)
    sx = jnp.sqrt(x_ref[0].astype(jnp.float32))     # (C, m, m): sqrt once, pre-expansion
    zw = zw_ref[0].astype(jnp.float32)              # (C, k, k): w[c] * sqrt(z)
    coeff_sc[n] = _coeff_block(sx, zw, k, oh, ow) * inv_k2   # coeff stays in VMEM

    @pl.when(n == pl.num_programs(0) - 1)
    def _finalize():                                 # fused Adjust2d (BatchNorm2d(1))
        c = coeff_sc[...]                            # (N, oh, ow) f32, no padding -> no mask
        mean = jnp.sum(c) * inv_total
        d = c - mean
        var = jnp.sum(d * d) * inv_total             # biased, two-pass
        inv_std = lax.rsqrt(var + EPS)
        scale = gb_ref[0] * inv_std                  # gamma * inv_std
        shift = gb_ref[1] - mean * scale             # beta - mean * scale
        o_ref[...] = (c * scale + shift).astype(o_ref.dtype)   # single HBM writeback


def siamese_join_and_norm(z_feat, x_feat, bc_weights, bn_gamma, bn_beta):
    """SiameseNet.forward after the branch: out = Adjust2d(BhattacharyyaCoeff(z, x))."""
    # TODO(synk): `branch` is an injected feature extractor with no fixed architecture in
    # this spec; this fused kernel consumes its (non-negative, density-like) feature maps.
    N, C, k, _ = z_feat.shape
    m = x_feat.shape[2]
    oh = ow = m - k + 1
    inv_k2 = 1.0 / float(k * k)
    inv_total = 1.0 / float(N * oh * ow)
    zw = bc_weights.reshape(1, C, 1, 1).astype(jnp.float32) * jnp.sqrt(
        z_feat.astype(jnp.float32))
    gb = jnp.stack([bn_gamma.reshape(()).astype(jnp.float32),
                    bn_beta.reshape(()).astype(jnp.float32)])
    _, vmem_limit = _vmem_budgets()
    out = pl.pallas_call(
        functools.partial(_join_bn_kernel, k, oh, ow, inv_k2, inv_total),
        out_shape=jax.ShapeDtypeStruct((N, oh, ow), x_feat.dtype),
        grid=(N,),
        in_specs=[pl.BlockSpec(memory_space=pltpu.SMEM),                   # [gamma, beta]
                  pl.BlockSpec((1, C, k, k), lambda n: (n, 0, 0, 0)),      # w * sqrt(z)
                  pl.BlockSpec((1, C, m, m), lambda n: (n, 0, 0, 0))],     # raw x tile
        out_specs=pl.BlockSpec((N, oh, ow), lambda n: (0, 0, 0)),          # resident; 1 writeback
        scratch_shapes=[pltpu.VMEM((N, oh, ow), jnp.float32)],             # coeff (tiny)
        compiler_params=pltpu.CompilerParams(
            dimension_semantics=("arbitrary",), vmem_limit_bytes=vmem_limit),
    )(gb, zw, x_feat)
    return out.reshape(N, 1, oh, ow), x_feat, z_feat


# --------------------------------------------------------------------------------------
# Standalone Adjust2d : BatchNorm2d(1) normalization kernels
# --------------------------------------------------------------------------------------

def _bn_fused_kernel(total, gb_ref, x_ref, o_ref):
    """Single-block BN over the activation in its natural layout: 1 read + 1 write."""
    x = x_ref[...].astype(jnp.float32)
    inv_n = 1.0 / float(total)
    mean = jnp.sum(x) * inv_n
    var = jnp.maximum(jnp.sum(x * x) * inv_n - mean * mean, 0.0)   # biased, one-pass (f32)
    inv_std = lax.rsqrt(var + EPS)
    scale = gb_ref[0] * inv_std
    shift = gb_ref[1] - mean * scale
    o_ref[...] = (x * scale + shift).astype(o_ref.dtype)


def _bn_reduce_kernel(x_ref, sum_ref, sq_ref):
    """Phase 1: accumulate per-lane partial sum / sum-of-squares in one read of x."""
    @pl.when(pl.program_id(0) == 0)
    def _init():
        sum_ref[...] = jnp.zeros_like(sum_ref)
        sq_ref[...] = jnp.zeros_like(sq_ref)

    x = x_ref[...].astype(jnp.float32)
    sum_ref[...] += jnp.sum(x, axis=0, keepdims=True)
    sq_ref[...] += jnp.sum(x * x, axis=0, keepdims=True)


def _bn_scale_kernel(ss_ref, x_ref, o_ref):
    """Phase 2: pure streaming y = x * scale + shift."""
    o_ref[...] = (x_ref[...].astype(jnp.float32) * ss_ref[0] + ss_ref[1]).astype(o_ref.dtype)


def adjust2d_forward(x, gamma, beta, *, lane_w=512, tile_rows=2048, force_tiled=False):
    """Adjust2d forward: BatchNorm2d(1) training-mode normalization. x: (N, 1, H, W)."""
    orig_shape = x.shape
    assert x.ndim == 4 and orig_shape[1] == 1, "Adjust2d uses BatchNorm2d(1); C must be 1"
    n_, c_, h_, w_ = orig_shape
    total = int(math.prod(orig_shape))
    gamma_s = gamma.reshape(()).astype(jnp.float32)
    beta_s = beta.reshape(()).astype(jnp.float32)
    gb = jnp.stack([gamma_s, beta_s])
    fast_budget, vmem_limit = _vmem_budgets()

    # ---- fast path: natural 4-D layout, zero pad/reshape copies, 1R + 1W ----
    padded_elems = n_ * c_ * _round_up(h_, 8) * _round_up(w_, 128)   # internal vreg tiling
    if (not force_tiled) and 2 * padded_elems * 4 <= fast_budget:
        return pl.pallas_call(
            functools.partial(_bn_fused_kernel, total),
            out_shape=jax.ShapeDtypeStruct(orig_shape, x.dtype),
            in_specs=[pl.BlockSpec(memory_space=pltpu.SMEM),   # [gamma, beta]
                      pl.BlockSpec(memory_space=pltpu.VMEM)],
            out_specs=pl.BlockSpec(memory_space=pltpu.VMEM),
            compiler_params=pltpu.CompilerParams(vmem_limit_bytes=vmem_limit),
        )(gb, x)

    # ---- tiled two-phase streaming path: 2 reads + 1 write of the activation ----
    # TODO(synk): ragged tail handled by wrapper-side zero padding (statistics-safe:
    # zeros contribute 0 to both sums; divisor uses the true element count).
    lane_w = max(128, (int(lane_w) // 128) * 128)
    n_rows = -(-total // lane_w)
    inv_n = 1.0 / float(total)
    tile_r = max(8, min(_round_up(n_rows, 8), (int(tile_rows) // 8) * 8))
    rows_p = _round_up(n_rows, tile_r)
    grid_r = rows_p // tile_r
    flat = x.reshape(-1)
    pad = rows_p * lane_w - total
    if pad:
        flat = jnp.pad(flat, (0, pad))
    x2d = flat.reshape(rows_p, lane_w)

    sum_part, sq_part = pl.pallas_call(
        _bn_reduce_kernel,
        out_shape=(jax.ShapeDtypeStruct((1, lane_w), jnp.float32),
                   jax.ShapeDtypeStruct((1, lane_w), jnp.float32)),
        grid=(grid_r,),
        in_specs=[pl.BlockSpec((tile_r, lane_w), lambda i: (i, 0))],
        out_specs=(pl.BlockSpec((1, lane_w), lambda i: (0, 0)),    # resident accumulators
                   pl.BlockSpec((1, lane_w), lambda i: (0, 0))),
        compiler_params=pltpu.CompilerParams(
            dimension_semantics=("arbitrary",), vmem_limit_bytes=vmem_limit),
    )(x2d)

    # Tiny scalar epilogue: final cross-lane reduce + scale/shift fusion.
    mean = jnp.sum(sum_part) * inv_n
    var = jnp.maximum(jnp.sum(sq_part) * inv_n - mean * mean, 0.0)
    inv_std = lax.rsqrt(var + EPS)
    scale = gamma_s * inv_std
    shift = beta_s - mean * scale
    ss = jnp.stack([scale, shift])

    out2d = pl.pallas_call(
        _bn_scale_kernel,
        out_shape=jax.ShapeDtypeStruct(x2d.shape, x.dtype),
        grid=(grid_r,),
        in_specs=[pl.BlockSpec(memory_space=pltpu.SMEM),           # [scale, shift]
                  pl.BlockSpec((tile_r, lane_w), lambda i: (i, 0))],
        out_specs=pl.BlockSpec((tile_r, lane_w), lambda i: (i, 0)),
        compiler_params=pltpu.CompilerParams(
            dimension_semantics=("parallel",), vmem_limit_bytes=vmem_limit),
    )(ss, x2d)
    return out2d.reshape(-1)[:total].reshape(orig_shape)


# --------------------------------------------------------------------------------------
# Pure-JAX references
# --------------------------------------------------------------------------------------

def _unfold_patches(x, k):
    """F.unfold(x, k)-compatible patch extraction -> (N, C, k*k, oh, ow)."""
    N, C, m, _ = x.shape
    oh = m - k + 1
    cols = [x[:, :, i:i + oh, j:j + oh] for i in range(k) for j in range(k)]
    return jnp.stack(cols, axis=2)


def _bhatta_reference(z, x, weights):
    N, C, k, _ = z.shape
    m = x.shape[2]
    oh = m - k + 1
    x_unf = _unfold_patches(x, k).reshape(N, C, k, k, oh * oh)
    w5 = weights.reshape(1, C, 1, 1, 1)
    coeff = jnp.sum(jnp.sqrt(x_unf * z[..., None]) * w5, axis=1, keepdims=True)
    return coeff.mean(axis=2).mean(axis=2).reshape(N, 1, oh, oh)


def _bn_reference(x, gamma, beta):
    mean = jnp.mean(x, axis=(0, 2, 3), keepdims=True)
    var = jnp.var(x, axis=(0, 2, 3), keepdims=True)
    g = gamma.reshape(1, -1, 1, 1)
    b = beta.reshape(1, -1, 1, 1)
    return g * (x - mean) / jnp.sqrt(var + EPS) + b


if __name__ == "__main__":
    key = jax.random.PRNGKey(0)
    kz, kx, kw, kt = jax.random.split(key, 4)

    # Branch-output stand-ins (Bhattacharyya expects non-negative, density-like maps).
    N, C, k, m = 2, 4, 8, 16
    z_feat = jnp.abs(jax.random.normal(kz, (N, C, k, k), dtype=jnp.float32))
    x_feat = jnp.abs(jax.random.normal(kx, (N, C, m, m), dtype=jnp.float32))

    # Module parameter init: BhattacharyyaCoeff.weights = ones; Adjust2d bn: weight=1, bias=0.
    bc_weights = jnp.ones((C,), dtype=jnp.float32)
    bn_gamma = jnp.ones((1,), dtype=jnp.float32)
    bn_beta = jnp.zeros((1,), dtype=jnp.float32)

    # SiameseNet.forward (post-branch): fused join + norm kernel.
    out, x_ret, z_ret = siamese_join_and_norm(z_feat, x_feat, bc_weights, bn_gamma, bn_beta)
    out = jax.block_until_ready(out)
    ref = _bn_reference(_bhatta_reference(z_feat, x_feat, bc_weights), bn_gamma, bn_beta)
    assert out.shape == (N, 1, m - k + 1, m - k + 1)
    assert jnp.allclose(out, ref, atol=1e-4, rtol=1e-4), "fused join+norm mismatch"
    assert x_ret.shape == x_feat.shape and z_ret.shape == z_feat.shape

    # Fused path with learned (possibly negative) join weights.
    bc_w2 = jax.random.normal(kw, (C,), dtype=jnp.float32)
    out2, _, _ = siamese_join_and_norm(z_feat, x_feat, bc_w2, bn_gamma, bn_beta)
    out2 = jax.block_until_ready(out2)
    ref2 = _bn_reference(_bhatta_reference(z_feat, x_feat, bc_w2), bn_gamma, bn_beta)
    assert jnp.allclose(out2, ref2, atol=1e-4, rtol=1e-4), "fused join+norm (learned w) mismatch"

    # Standalone BhattacharyyaCoeff kernel (in-kernel unfold, sqrt pre-expansion).
    coeff = jax.block_until_ready(bhattacharyya_forward(z_feat, x_feat, bc_weights))
    coeff_ref = _bhatta_reference(z_feat, x_feat, bc_weights)
    assert jnp.allclose(coeff, coeff_ref, atol=1e-4, rtol=1e-4), "join mismatch"

    # Standalone Adjust2d: fused single-block path (natural layout, no pad/unpad copies).
    bn_out = jax.block_until_ready(adjust2d_forward(coeff, bn_gamma, bn_beta))
    assert jnp.allclose(bn_out, _bn_reference(coeff, bn_gamma, bn_beta),
                        atol=1e-4, rtol=1e-4), "fused BN mismatch"

    # Standalone Adjust2d: tiled streaming path (padding + multi-step accumulation + FMA pass).
    xb = jax.random.normal(kt, (2, 1, 50, 60), dtype=jnp.float32)
    out_t = jax.block_until_ready(adjust2d_forward(xb, bn_gamma, bn_beta,
                                                   force_tiled=True, lane_w=128, tile_rows=8))
    assert jnp.allclose(out_t, _bn_reference(xb, bn_gamma, bn_beta),
                        atol=1e-4, rtol=1e-4), "tiled BN mismatch"

    print("KERNEL_OK")
</pallas_src>

<mosaic_0001>
module attributes {stable_mosaic.version = 11 : i64} {
  func.func @_join_bn_kernel(%arg0: i32, %arg1: memref<2xf32, #tpu.memory_space<smem>>, %arg2: memref<1x4x8x8xf32, #tpu.memory_space<vmem>>, %arg3: memref<1x4x16x16xf32, #tpu.memory_space<vmem>>, %arg4: memref<2x9x9xf32, #tpu.memory_space<vmem>>, %arg5: memref<2x9x9xf32, #tpu.memory_space<vmem>>) attributes {dimension_semantics = [#tpu.dimension_semantics<arbitrary>], iteration_bounds = array<i64: 2>, scalar_prefetch = 0 : i64, scratch_operands = 1 : i64, tpu.core_type = #tpu.core_type<tc>, window_params = [{transform_indices = @transform_0, window_bounds = array<i64: 2>}, {transform_indices = @transform_1, window_bounds = array<i64: 1, 4, 8, 8>}, {transform_indices = @transform_2, window_bounds = array<i64: 1, 4, 16, 16>}, {pipeline_mode = #tpu.pipeline_mode<synchronous>, transform_indices = @transform_3, window_bounds = array<i64: 2, 9, 9>}]} {
    %c0 = arith.constant 0 : index
    %c0_0 = arith.constant 0 : index
    %c0_1 = arith.constant 0 : index
    %c0_2 = arith.constant 0 : index
    %0 = vector.load %arg3[%c0, %c0_0, %c0_1, %c0_2] : memref<1x4x16x16xf32, #tpu.memory_space<vmem>>, vector<1x4x16x16xf32>
    %1 = vector.shape_cast %0 : vector<1x4x16x16xf32> to vector<4x16x16xf32>
    %2 = math.sqrt %1 : vector<4x16x16xf32>
    %c0_3 = arith.constant 0 : index
    %c0_4 = arith.constant 0 : index
    %c0_5 = arith.constant 0 : index
    %c0_6 = arith.constant 0 : index
    %3 = vector.load %arg2[%c0_3, %c0_4, %c0_5, %c0_6] : memref<1x4x8x8xf32, #tpu.memory_space<vmem>>, vector<1x4x8x8xf32>
    %4 = vector.shape_cast %3 : vector<1x4x8x8xf32> to vector<4x8x8xf32>
    %cst = arith.constant 0.000000e+00 : f32
    %5 = vector.broadcast %cst : f32 to vector<9x9xf32>
    %6 = vector.extract_strided_slice %4 {offsets = [0, 0, 0], sizes = [4, 1, 1], strides = [1, 1, 1]} : vector<4x8x8xf32> to vector<4x1x1xf32>
    %7 = vector.extract_strided_slice %2 {offsets = [0, 0, 0], sizes = [4, 9, 9], strides = [1, 1, 1]} : vector<4x16x16xf32> to vector<4x9x9xf32>
    %8 = vector.broadcast %6 : vector<4x1x1xf32> to vector<4x9x9xf32>
    %9 = arith.mulf %8, %7 : vector<4x9x9xf32>
    %cst_7 = arith.constant dense<0.000000e+00> : vector<9x9xf32>
    %10 = vector.multi_reduction <add>, %9, %cst_7 [0] : vector<4x9x9xf32> to vector<9x9xf32>
    %11 = arith.addf %5, %10 : vector<9x9xf32>
    %12 = vector.extract_strided_slice %4 {offsets = [0, 0, 1], sizes = [4, 1, 1], strides = [1, 1, 1]} : vector<4x8x8xf32> to vector<4x1x1xf32>
    %13 = vector.extract_strided_slice %2 {offsets = [0, 0, 1], sizes = [4, 9, 9], strides = [1, 1, 1]} : vector<4x16x16xf32> to vector<4x9x9xf32>
    %14 = vector.broadcast %12 : vector<4x1x1xf32> to vector<4x9x9xf32>
    %15 = arith.mulf %14, %13 : vector<4x9x9xf32>
    %cst_8 = arith.constant dense<0.000000e+00> : vector<9x9xf32>
    %16 = vector.multi_reduction <add>, %15, %cst_8 [0] : vector<4x9x9xf32> to vector<9x9xf32>
    %17 = arith.addf %11, %16 : vector<9x9xf32>
    %18 = vector.extract_strided_slice %4 {offsets = [0, 0, 2], sizes = [4, 1, 1], strides = [1, 1, 1]} : vector<4x8x8xf32> to vector<4x1x1xf32>
    %19 = vector.extract_strided_slice %2 {offsets = [0, 0, 2], sizes = [4, 9, 9], strides = [1, 1, 1]} : vector<4x16x16xf32> to vector<4x9x9xf32>
    %20 = vector.broadcast %18 : vector<4x1x1xf32> to vector<4x9x9xf32>
    %21 = arith.mulf %20, %19 : vector<4x9x9xf32>
    %cst_9 = arith.constant dense<0.000000e+00> : vector<9x9xf32>
    %22 = vector.multi_reduction <add>, %21, %cst_9 [0] : vector<4x9x9xf32> to vector<9x9xf32>
    %23 = arith.addf %17, %22 : vector<9x9xf32>
    %24 = vector.extract_strided_slice %4 {offsets = [0, 0, 3], sizes = [4, 1, 1], strides = [1, 1, 1]} : vector<4x8x8xf32> to vector<4x1x1xf32>
    %25 = vector.extract_strided_slice %2 {offsets = [0, 0, 3], sizes = [4, 9, 9], strides = [1, 1, 1]} : vector<4x16x16xf32> to vector<4x9x9xf32>
    %26 = vector.broadcast %24 : vector<4x1x1xf32> to vector<4x9x9xf32>
    %27 = arith.mulf %26, %25 : vector<4x9x9xf32>
    %cst_10 = arith.constant dense<0.000000e+00> : vector<9x9xf32>
    %28 = vector.multi_reduction <add>, %27, %cst_10 [0] : vector<4x9x9xf32> to vector<9x9xf32>
    %29 = arith.addf %23, %28 : vector<9x9xf32>
    %30 = vector.extract_strided_slice %4 {offsets = [0, 0, 4], sizes = [4, 1, 1], strides = [1, 1, 1]} : vector<4x8x8xf32> to vector<4x1x1xf32>
    %31 = vector.extract_strided_slice %2 {offsets = [0, 0, 4], sizes = [4, 9, 9], strides = [1, 1, 1]} : vector<4x16x16xf32> to vector<4x9x9xf32>
    %32 = vector.broadcast %30 : vector<4x1x1xf32> to vector<4x9x9xf32>
    %33 = arith.mulf %32, %31 : vector<4x9x9xf32>
    %cst_11 = arith.constant dense<0.000000e+00> : vector<9x9xf32>
    %34 = vector.multi_reduction <add>, %33, %cst_11 [0] : vector<4x9x9xf32> to vector<9x9xf32>
    %35 = arith.addf %29, %34 : vector<9x9xf32>
    %36 = vector.extract_strided_slice %4 {offsets = [0, 0, 5], sizes = [4, 1, 1], strides = [1, 1, 1]} : vector<4x8x8xf32> to vector<4x1x1xf32>
    %37 = vector.extract_strided_slice %2 {offsets = [0, 0, 5], sizes = [4, 9, 9], strides = [1, 1, 1]} : vector<4x16x16xf32> to vector<4x9x9xf32>
    %38 = vector.broadcast %36 : vector<4x1x1xf32> to vector<4x9x9xf32>
    %39 = arith.mulf %38, %37 : vector<4x9x9xf32>
    %cst_12 = arith.constant dense<0.000000e+00> : vector<9x9xf32>
    %40 = vector.multi_reduction <add>, %39, %cst_12 [0] : vector<4x9x9xf32> to vector<9x9xf32>
    %41 = arith.addf %35, %40 : vector<9x9xf32>
    %42 = vector.extract_strided_slice %4 {offsets = [0, 0, 6], sizes = [4, 1, 1], strides = [1, 1, 1]} : vector<4x8x8xf32> to vector<4x1x1xf32>
    %43 = vector.extract_strided_slice %2 {offsets = [0, 0, 6], sizes = [4, 9, 9], strides = [1, 1, 1]} : vector<4x16x16xf32> to vector<4x9x9xf32>
    %44 = vector.broadcast %42 : vector<4x1x1xf32> to vector<4x9x9xf32>
    %45 = arith.mulf %44, %43 : vector<4x9x9xf32>
    %cst_13 = arith.constant dense<0.000000e+00> : vector<9x9xf32>
    %46 = vector.multi_reduction <add>, %45, %cst_13 [0] : vector<4x9x9xf32> to vector<9x9xf32>
    %47 = arith.addf %41, %46 : vector<9x9xf32>
    %48 = vector.extract_strided_slice %4 {offsets = [0, 0, 7], sizes = [4, 1, 1], strides = [1, 1, 1]} : vector<4x8x8xf32> to vector<4x1x1xf32>
    %49 = vector.extract_strided_slice %2 {offsets = [0, 0, 7], sizes = [4, 9, 9], strides = [1, 1, 1]} : vector<4x16x16xf32> to vector<4x9x9xf32>
    %50 = vector.broadcast %48 : vector<4x1x1xf32> to vector<4x9x9xf32>
    %51 = arith.mulf %50, %49 : vector<4x9x9xf32>
    %cst_14 = arith.constant dense<0.000000e+00> : vector<9x9xf32>
    %52 = vector.multi_reduction <add>, %51, %cst_14 [0] : vector<4x9x9xf32> to vector<9x9xf32>
    %53 = arith.addf %47, %52 : vector<9x9xf32>
    %54 = vector.extract_strided_slice %4 {offsets = [0, 1, 0], sizes = [4, 1, 1], strides = [1, 1, 1]} : vector<4x8x8xf32> to vector<4x1x1xf32>
    %55 = vector.extract_strided_slice %2 {offsets = [0, 1, 0], sizes = [4, 9, 9], strides = [1, 1, 1]} : vector<4x16x16xf32> to vector<4x9x9xf32>
    %56 = vector.broadcast %54 : vector<4x1x1xf32> to vector<4x9x9xf32>
    %57 = arith.mulf %56, %55 : vector<4x9x9xf32>
    %cst_15 = arith.constant dense<0.000000e+00> : vector<9x9xf32>
    %58 = vector.multi_reduction <add>, %57, %cst_15 [0] : vector<4x9x9xf32> to vector<9x9xf32>
    %59 = arith.addf %53, %58 : vector<9x9xf32>
    %60 = vector.extract_strided_slice %4 {offsets = [0, 1, 1], sizes = [4, 1, 1], strides = [1, 1, 1]} : vector<4x8x8xf32> to vector<4x1x1xf32>
    %61 = vector.extract_strided_slice %2 {offsets = [0, 1, 1], sizes = [4, 9, 9], strides = [1, 1, 1]} : vector<4x16x16xf32> to vector<4x9x9xf32>
    %62 = vector.broadcast %60 : vector<4x1x1xf32> to vector<4x9x9xf32>
    %63 = arith.mulf %62, %61 : vector<4x9x9xf32>
    %cst_16 = arith.constant dense<0.000000e+00> : vector<9x9xf32>
    %64 = vector.multi_reduction <add>, %63, %cst_16 [0] : vector<4x9x9xf32> to vector<9x9xf32>
    %65 = arith.addf %59, %64 : vector<9x9xf32>
    %66 = vector.extract_strided_slice %4 {offsets = [0, 1, 2], sizes = [4, 1, 1], strides = [1, 1, 1]} : vector<4x8x8xf32> to vector<4x1x1xf32>
    %67 = vector.extract_strided_slice %2 {offsets = [0, 1, 2], sizes = [4, 9, 9], strides = [1, 1, 1]} : vector<4x16x16xf32> to vector<4x9x9xf32>
    %68 = vector.broadcast %66 : vector<4x1x1xf32> to vector<4x9x9xf32>
    %69 = arith.mulf %68, %67 : vector<4x9x9xf32>
    %cst_17 = arith.constant dense<0.000000e+00> : vector<9x9xf32>
    %70 = vector.multi_reduction <add>, %69, %cst_17 [0] : vector<4x9x9xf32> to vector<9x9xf32>
    %71 = arith.addf %65, %70 : vector<9x9xf32>
    %72 = vector.extract_strided_slice %4 {offsets = [0, 1, 3], sizes = [4, 1, 1], strides = [1, 1, 1]} : vector<4x8x8xf32> to vector<4x1x1xf32>
    %73 = vector.extract_strided_slice %2 {offsets = [0, 1, 3], sizes = [4, 9, 9], strides = [1, 1, 1]} : vector<4x16x16xf32> to vector<4x9x9xf32>
    %74 = vector.broadcast %72 : vector<4x1x1xf32> to vector<4x9x9xf32>
    %75 = arith.mulf %74, %73 : vector<4x9x9xf32>
    %cst_18 = arith.constant dense<0.000000e+00> : vector<9x9xf32>
    %76 = vector.multi_reduction <add>, %75, %cst_18 [0] : vector<4x9x9xf32> to vector<9x9xf32>
    %77 = arith.addf %71, %76 : vector<9x9xf32>
    %78 = vector.extract_strided_slice %4 {offsets = [0, 1, 4], sizes = [4, 1, 1], strides = [1, 1, 1]} : vector<4x8x8xf32> to vector<4x1x1xf32>
    %79 = vector.extract_strided_slice %2 {offsets = [0, 1, 4], sizes = [4, 9, 9], strides = [1, 1, 1]} : vector<4x16x16xf32> to vector<4x9x9xf32>
    %80 = vector.broadcast %78 : vector<4x1x1xf32> to vector<4x9x9xf32>
    %81 = arith.mulf %80, %79 : vector<4x9x9xf32>
    %cst_19 = arith.constant dense<0.000000e+00> : vector<9x9xf32>
    %82 = vector.multi_reduction <add>, %81, %cst_19 [0] : vector<4x9x9xf32> to vector<9x9xf32>
    %83 = arith.addf %77, %82 : vector<9x9xf32>
    %84 = vector.extract_strided_slice %4 {offsets = [0, 1, 5], sizes = [4, 1, 1], strides = [1, 1, 1]} : vector<4x8x8xf32> to vector<4x1x1xf32>
    %85 = vector.extract_strided_slice %2 {offsets = [0, 1, 5], sizes = [4, 9, 9], strides = [1, 1, 1]} : vector<4x16x16xf32> to vector<4x9x9xf32>
    %86 = vector.broadcast %84 : vector<4x1x1xf32> to vector<4x9x9xf32>
    %87 = arith.mulf %86, %85 : vector<4x9x9xf32>
    %cst_20 = arith.constant dense<0.000000e+00> : vector<9x9xf32>
    %88 = vector.multi_reduction <add>, %87, %cst_20 [0] : vector<4x9x9xf32> to vector<9x9xf32>
    %89 = arith.addf %83, %88 : vector<9x9xf32>
    %90 = vector.extract_strided_slice %4 {offsets = [0, 1, 6], sizes = [4, 1, 1], strides = [1, 1, 1]} : vector<4x8x8xf32> to vector<4x1x1xf32>
    %91 = vector.extract_strided_slice %2 {offsets = [0, 1, 6], sizes = [4, 9, 9], strides = [1, 1, 1]} : vector<4x16x16xf32> to vector<4x9x9xf32>
    %92 = vector.broadcast %90 : vector<4x1x1xf32> to vector<4x9x9xf32>
    %93 = arith.mulf %92, %91 : vector<4x9x9xf32>
    %cst_21 = arith.constant dense<0.000000e+00> : vector<9x9xf32>
    %94 = vector.multi_reduction <add>, %93, %cst_21 [0] : vector<4x9x9xf32> to vector<9x9xf32>
    %95 = arith.addf %89, %94 : vector<9x9xf32>
    %96 = vector.extract_strided_slice %4 {offsets = [0, 1, 7], sizes = [4, 1, 1], strides = [1, 1, 1]} : vector<4x8x8xf32> to vector<4x1x1xf32>
    %97 = vector.extract_strided_slice %2 {offsets = [0, 1, 7], sizes = [4, 9, 9], strides = [1, 1, 1]} : vector<4x16x16xf32> to vector<4x9x9xf32>
    %98 = vector.broadcast %96 : vector<4x1x1xf32> to vector<4x9x9xf32>
    %99 = arith.mulf %98, %97 : vector<4x9x9xf32>
    %cst_22 = arith.constant dense<0.000000e+00> : vector<9x9xf32>
    %100 = vector.multi_reduction <add>, %99, %cst_22 [0] : vector<4x9x9xf32> to vector<9x9xf32>
    %101 = arith.addf %95, %100 : vector<9x9xf32>
    %102 = vector.extract_strided_slice %4 {offsets = [0, 2, 0], sizes = [4, 1, 1], strides = [1, 1, 1]} : vector<4x8x8xf32> to vector<4x1x1xf32>
    %103 = vector.extract_strided_slice %2 {offsets = [0, 2, 0], sizes = [4, 9, 9], strides = [1, 1, 1]} : vector<4x16x16xf32> to vector<4x9x9xf32>
    %104 = vector.broadcast %102 : vector<4x1x1xf32> to vector<4x9x9xf32>
    %105 = arith.mulf %104, %103 : vector<4x9x9xf32>
    %cst_23 = arith.constant dense<0.000000e+00> : vector<9x9xf32>
    %106 = vector.multi_reduction <add>, %105, %cst_23 [0] : vector<4x9x9xf32> to vector<9x9xf32>
    %107 = arith.addf %101, %106 : vector<9x9xf32>
    %108 = vector.extract_strided_slice %4 {offsets = [0, 2, 1], sizes = [4, 1, 1], strides = [1, 1, 1]} : vector<4x8x8xf32> to vector<4x1x1xf32>
    %109 = vector.extract_strided_slice %2 {offsets = [0, 2, 1], sizes = [4, 9, 9], strides = [1, 1, 1]} : vector<4x16x16xf32> to vector<4x9x9xf32>
    %110 = vector.broadcast %108 : vector<4x1x1xf32> to vector<4x9x9xf32>
    %111 = arith.mulf %110, %109 : vector<4x9x9xf32>
    %cst_24 = arith.constant dense<0.000000e+00> : vector<9x9xf32>
    %112 = vector.multi_reduction <add>, %111, %cst_24 [0] : vector<4x9x9xf32> to vector<9x9xf32>
    %113 = arith.addf %107, %112 : vector<9x9xf32>
    %114 = vector.extract_strided_slice %4 {offsets = [0, 2, 2], sizes = [4, 1, 1], strides = [1, 1, 1]} : vector<4x8x8xf32> to vector<4x1x1xf32>
    %115 = vector.extract_strided_slice %2 {offsets = [0, 2, 2], sizes = [4, 9, 9], strides = [1, 1, 1]} : vector<4x16x16xf32> to vector<4x9x9xf32>
    %116 = vector.broadcast %114 : vector<4x1x1xf32> to vector<4x9x9xf32>
    %117 = arith.mulf %116, %115 : vector<4x9x9xf32>
    %cst_25 = arith.constant dense<0.000000e+00> : vector<9x9xf32>
    %118 = vector.multi_reduction <add>, %117, %cst_25 [0] : vector<4x9x9xf32> to vector<9x9xf32>
    %119 = arith.addf %113, %118 : vector<9x9xf32>
    %120 = vector.extract_strided_slice %4 {offsets = [0, 2, 3], sizes = [4, 1, 1], strides = [1, 1, 1]} : vector<4x8x8xf32> to vector<4x1x1xf32>
    %121 = vector.extract_strided_slice %2 {offsets = [0, 2, 3], sizes = [4, 9, 9], strides = [1, 1, 1]} : vector<4x16x16xf32> to vector<4x9x9xf32>
    %122 = vector.broadcast %120 : vector<4x1x1xf32> to vector<4x9x9xf32>
    %123 = arith.mulf %122, %121 : vector<4x9x9xf32>
    %cst_26 = arith.constant dense<0.000000e+00> : vector<9x9xf32>
    %124 = vector.multi_reduction <add>, %123, %cst_26 [0] : vector<4x9x9xf32> to vector<9x9xf32>
    %125 = arith.addf %119, %124 : vector<9x9xf32>
    %126 = vector.extract_strided_slice %4 {offsets = [0, 2, 4], sizes = [4, 1, 1], strides = [1, 1, 1]} : vector<4x8x8xf32> to vector<4x1x1xf32>
    %127 = vector.extract_strided_slice %2 {offsets = [0, 2, 4], sizes = [4, 9, 9], strides = [1, 1, 1]} : vector<4x16x16xf32> to vector<4x9x9xf32>
    %128 = vector.broadcast %126 : vector<4x1x1xf32> to vector<4x9x9xf32>
    %129 = arith.mulf %128, %127 : vector<4x9x9xf32>
    %cst_27 = arith.constant dense<0.000000e+00> : vector<9x9xf32>
    %130 = vector.multi_reduction <add>, %129, %cst_27 [0] : vector<4x9x9xf32> to vector<9x9xf32>
    %131 = arith.addf %125, %130 : vector<9x9xf32>
    %132 = vector.extract_strided_slice %4 {offsets = [0, 2, 5], sizes = [4, 1, 1], strides = [1, 1, 1]} : vector<4x8x8xf32> to vector<4x1x1xf32>
    %133 = vector.extract_strided_slice %2 {offsets = [0, 2, 5], sizes = [4, 9, 9], strides = [1, 1, 1]} : vector<4x16x16xf32> to vector<4x9x9xf32>
    %134 = vector.broadcast %132 : vector<4x1x1xf32> to vector<4x9x9xf32>
    %135 = arith.mulf %134, %133 : vector<4x9x9xf32>
    %cst_28 = arith.constant dense<0.000000e+00> : vector<9x9xf32>
    %136 = vector.multi_reduction <add>, %135, %cst_28 [0] : vector<4x9x9xf32> to vector<9x9xf32>
    %137 = arith.addf %131, %136 : vector<9x9xf32>
    %138 = vector.extract_strided_slice %4 {offsets = [0, 2, 6], sizes = [4, 1, 1], strides = [1, 1, 1]} : vector<4x8x8xf32> to vector<4x1x1xf32>
    %139 = vector.extract_strided_slice %2 {offsets = [0, 2, 6], sizes = [4, 9, 9], strides = [1, 1, 1]} : vector<4x16x16xf32> to vector<4x9x9xf32>
    %140 = vector.broadcast %138 : vector<4x1x1xf32> to vector<4x9x9xf32>
    %141 = arith.mulf %140, %139 : vector<4x9x9xf32>
    %cst_29 = arith.constant dense<0.000000e+00> : vector<9x9xf32>
    %142 = vector.multi_reduction <add>, %141, %cst_29 [0] : vector<4x9x9xf32> to vector<9x9xf32>
    %143 = arith.addf %137, %142 : vector<9x9xf32>
    %144 = vector.extract_strided_slice %4 {offsets = [0, 2, 7], sizes = [4, 1, 1], strides = [1, 1, 1]} : vector<4x8x8xf32> to vector<4x1x1xf32>
    %145 = vector.extract_strided_slice %2 {offsets = [0, 2, 7], sizes = [4, 9, 9], strides = [1, 1, 1]} : vector<4x16x16xf32> to vector<4x9x9xf32>
    %146 = vector.broadcast %144 : vector<4x1x1xf32> to vector<4x9x9xf32>
    %147 = arith.mulf %146, %145 : vector<4x9x9xf32>
    %cst_30 = arith.constant dense<0.000000e+00> : vector<9x9xf32>
    %148 = vector.multi_reduction <add>, %147, %cst_30 [0] : vector<4x9x9xf32> to vector<9x9xf32>
    %149 = arith.addf %143, %148 : vector<9x9xf32>
    %150 = vector.extract_strided_slice %4 {offsets = [0, 3, 0], sizes = [4, 1, 1], strides = [1, 1, 1]} : vector<4x8x8xf32> to vector<4x1x1xf32>
    %151 = vector.extract_strided_slice %2 {offsets = [0, 3, 0], sizes = [4, 9, 9], strides = [1, 1, 1]} : vector<4x16x16xf32> to vector<4x9x9xf32>
    %152 = vector.broadcast %150 : vector<4x1x1xf32> to vector<4x9x9xf32>
    %153 = arith.mulf %152, %151 : vector<4x9x9xf32>
    %cst_31 = arith.constant dense<0.000000e+00> : vector<9x9xf32>
    %154 = vector.multi_reduction <add>, %153, %cst_31 [0] : vector<4x9x9xf32> to vector<9x9xf32>
    %155 = arith.addf %149, %154 : vector<9x9xf32>
    %156 = vector.extract_strided_slice %4 {offsets = [0, 3, 1], sizes = [4, 1, 1], strides = [1, 1, 1]} : vector<4x8x8xf32> to vector<4x1x1xf32>
    %157 = vector.extract_strided_slice %2 {offsets = [0, 3, 1], sizes = [4, 9, 9], strides = [1, 1, 1]} : vector<4x16x16xf32> to vector<4x9x9xf32>
    %158 = vector.broadcast %156 : vector<4x1x1xf32> to vector<4x9x9xf32>
    %159 = arith.mulf %158, %157 : vector<4x9x9xf32>
    %cst_32 = arith.constant dense<0.000000e+00> : vector<9x9xf32>
    %160 = vector.multi_reduction <add>, %159, %cst_32 [0] : vector<4x9x9xf32> to vector<9x9xf32>
    %161 = arith.addf %155, %160 : vector<9x9xf32>
    %162 = vector.extract_strided_slice %4 {offsets = [0, 3, 2], sizes = [4, 1, 1], strides = [1, 1, 1]} : vector<4x8x8xf32> to vector<4x1x1xf32>
    %163 = vector.extract_strided_slice %2 {offsets = [0, 3, 2], sizes = [4, 9, 9], strides = [1, 1, 1]} : vector<4x16x16xf32> to vector<4x9x9xf32>
    %164 = vector.broadcast %162 : vector<4x1x1xf32> to vector<4x9x9xf32>
    %165 = arith.mulf %164, %163 : vector<4x9x9xf32>
    %cst_33 = arith.constant dense<0.000000e+00> : vector<9x9xf32>
    %166 = vector.multi_reduction <add>, %165, %cst_33 [0] : vector<4x9x9xf32> to vector<9x9xf32>
    %167 = arith.addf %161, %166 : vector<9x9xf32>
    %168 = vector.extract_strided_slice %4 {offsets = [0, 3, 3], sizes = [4, 1, 1], strides = [1, 1, 1]} : vector<4x8x8xf32> to vector<4x1x1xf32>
    %169 = vector.extract_strided_slice %2 {offsets = [0, 3, 3], sizes = [4, 9, 9], strides = [1, 1, 1]} : vector<4x16x16xf32> to vector<4x9x9xf32>
    %170 = vector.broadcast %168 : vector<4x1x1xf32> to vector<4x9x9xf32>
    %171 = arith.mulf %170, %169 : vector<4x9x9xf32>
    %cst_34 = arith.constant dense<0.000000e+00> : vector<9x9xf32>
    %172 = vector.multi_reduction <add>, %171, %cst_34 [0] : vector<4x9x9xf32> to vector<9x9xf32>
    %173 = arith.addf %167, %172 : vector<9x9xf32>
    %174 = vector.extract_strided_slice %4 {offsets = [0, 3, 4], sizes = [4, 1, 1], strides = [1, 1, 1]} : vector<4x8x8xf32> to vector<4x1x1xf32>
    %175 = vector.extract_strided_slice %2 {offsets = [0, 3, 4], sizes = [4, 9, 9], strides = [1, 1, 1]} : vector<4x16x16xf32> to vector<4x9x9xf32>
    %176 = vector.broadcast %174 : vector<4x1x1xf32> to vector<4x9x9xf32>
    %177 = arith.mulf %176, %175 : vector<4x9x9xf32>
    %cst_35 = arith.constant dense<0.000000e+00> : vector<9x9xf32>
    %178 = vector.multi_reduction <add>, %177, %cst_35 [0] : vector<4x9x9xf32> to vector<9x9xf32>
    %179 = arith.addf %173, %178 : vector<9x9xf32>
    %180 = vector.extract_strided_slice %4 {offsets = [0, 3, 5], sizes = [4, 1, 1], strides = [1, 1, 1]} : vector<4x8x8xf32> to vector<4x1x1xf32>
    %181 = vector.extract_strided_slice %2 {offsets = [0, 3, 5], sizes = [4, 9, 9], strides = [1, 1, 1]} : vector<4x16x16xf32> to vector<4x9x9xf32>
    %182 = vector.broadcast %180 : vector<4x1x1xf32> to vector<4x9x9xf32>
    %183 = arith.mulf %182, %181 : vector<4x9x9xf32>
    %cst_36 = arith.constant dense<0.000000e+00> : vector<9x9xf32>
    %184 = vector.multi_reduction <add>, %183, %cst_36 [0] : vector<4x9x9xf32> to vector<9x9xf32>
    %185 = arith.addf %179, %184 : vector<9x9xf32>
    %186 = vector.extract_strided_slice %4 {offsets = [0, 3, 6], sizes = [4, 1, 1], strides = [1, 1, 1]} : vector<4x8x8xf32> to vector<4x1x1xf32>
    %187 = vector.extract_strided_slice %2 {offsets = [0, 3, 6], sizes = [4, 9, 9], strides = [1, 1, 1]} : vector<4x16x16xf32> to vector<4x9x9xf32>
    %188 = vector.broadcast %186 : vector<4x1x1xf32> to vector<4x9x9xf32>
    %189 = arith.mulf %188, %187 : vector<4x9x9xf32>
    %cst_37 = arith.constant dense<0.000000e+00> : vector<9x9xf32>
    %190 = vector.multi_reduction <add>, %189, %cst_37 [0] : vector<4x9x9xf32> to vector<9x9xf32>
    %191 = arith.addf %185, %190 : vector<9x9xf32>
    %192 = vector.extract_strided_slice %4 {offsets = [0, 3, 7], sizes = [4, 1, 1], strides = [1, 1, 1]} : vector<4x8x8xf32> to vector<4x1x1xf32>
    %193 = vector.extract_strided_slice %2 {offsets = [0, 3, 7], sizes = [4, 9, 9], strides = [1, 1, 1]} : vector<4x16x16xf32> to vector<4x9x9xf32>
    %194 = vector.broadcast %192 : vector<4x1x1xf32> to vector<4x9x9xf32>
    %195 = arith.mulf %194, %193 : vector<4x9x9xf32>
    %cst_38 = arith.constant dense<0.000000e+00> : vector<9x9xf32>
    %196 = vector.multi_reduction <add>, %195, %cst_38 [0] : vector<4x9x9xf32> to vector<9x9xf32>
    %197 = arith.addf %191, %196 : vector<9x9xf32>
    %198 = vector.extract_strided_slice %4 {offsets = [0, 4, 0], sizes = [4, 1, 1], strides = [1, 1, 1]} : vector<4x8x8xf32> to vector<4x1x1xf32>
    %199 = vector.extract_strided_slice %2 {offsets = [0, 4, 0], sizes = [4, 9, 9], strides = [1, 1, 1]} : vector<4x16x16xf32> to vector<4x9x9xf32>
    %200 = vector.broadcast %198 : vector<4x1x1xf32> to vector<4x9x9xf32>
    %201 = arith.mulf %200, %199 : vector<4x9x9xf32>
    %cst_39 = arith.constant dense<0.000000e+00> : vector<9x9xf32>
    %202 = vector.multi_reduction <add>, %201, %cst_39 [0] : vector<4x9x9xf32> to vector<9x9xf32>
    %203 = arith.addf %197, %202 : vector<9x9xf32>
    %204 = vector.extract_strided_slice %4 {offsets = [0, 4, 1], sizes = [4, 1, 1], strides = [1, 1, 1]} : vector<4x8x8xf32> to vector<4x1x1xf32>
    %205 = vector.extract_strided_slice %2 {offsets = [0, 4, 1], sizes = [4, 9, 9], strides = [1, 1, 1]} : vector<4x16x16xf32> to vector<4x9x9xf32>
    %206 = vector.broadcast %204 : vector<4x1x1xf32> to vector<4x9x9xf32>
    %207 = arith.mulf %206, %205 : vector<4x9x9xf32>
    %cst_40 = arith.constant dense<0.000000e+00> : vector<9x9xf32>
    %208 = vector.multi_reduction <add>, %207, %cst_40 [0] : vector<4x9x9xf32> to vector<9x9xf32>
    %209 = arith.addf %203, %208 : vector<9x9xf32>
    %210 = vector.extract_strided_slice %4 {offsets = [0, 4, 2], sizes = [4, 1, 1], strides = [1, 1, 1]} : vector<4x8x8xf32> to vector<4x1x1xf32>
    %211 = vector.extract_strided_slice %2 {offsets = [0, 4, 2], sizes = [4, 9, 9], strides = [1, 1, 1]} : vector<4x16x16xf32> to vector<4x9x9xf32>
    %212 = vector.broadcast %210 : vector<4x1x1xf32> to vector<4x9x9xf32>
    %213 = arith.mulf %212, %211 : vector<4x9x9xf32>
    %cst_41 = arith.constant dense<0.000000e+00> : vector<9x9xf32>
    %214 = vector.multi_reduction <add>, %213, %cst_41 [0] : vector<4x9x9xf32> to vector<9x9xf32>
    %215 = arith.addf %209, %214 : vector<9x9xf32>
    %216 = vector.extract_strided_slice %4 {offsets = [0, 4, 3], sizes = [4, 1, 1], strides = [1, 1, 1]} : vector<4x8x8xf32> to vector<4x1x1xf32>
    %217 = vector.extract_strided_slice %2 {offsets = [0, 4, 3], sizes = [4, 9, 9], strides = [1, 1, 1]} : vector<4x16x16xf32> to vector<4x9x9xf32>
    %218 = vector.broadcast %216 : vector<4x1x1xf32> to vector<4x9x9xf32>
    %219 = arith.mulf %218, %217 : vector<4x9x9xf32>
    %cst_42 = arith.constant dense<0.000000e+00> : vector<9x9xf32>
    %220 = vector.multi_reduction <add>, %219, %cst_42 [0] : vector<4x9x9xf32> to vector<9x9xf32>
    %221 = arith.addf %215, %220 : vector<9x9xf32>
    %222 = vector.extract_strided_slice %4 {offsets = [0, 4, 4], sizes = [4, 1, 1], strides = [1, 1, 1]} : vector<4x8x8xf32> to vector<4x1x1xf32>
    %223 = vector.extract_strided_slice %2 {offsets = [0, 4, 4], sizes = [4, 9, 9], strides = [1, 1, 1]} : vector<4x16x16xf32> to vector<4x9x9xf32>
    %224 = vector.broadcast %222 : vector<4x1x1xf32> to vector<4x9x9xf32>
    %225 = arith.mulf %224, %223 : vector<4x9x9xf32>
    %cst_43 = arith.constant dense<0.000000e+00> : vector<9x9xf32>
    %226 = vector.multi_reduction <add>, %225, %cst_43 [0] : vector<4x9x9xf32> to vector<9x9xf32>
    %227 = arith.addf %221, %226 : vector<9x9xf32>
    %228 = vector.extract_strided_slice %4 {offsets = [0, 4, 5], sizes = [4, 1, 1], strides = [1, 1, 1]} : vector<4x8x8xf32> to vector<4x1x1xf32>
    %229 = vector.extract_strided_slice %2 {offsets = [0, 4, 5], sizes = [4, 9, 9], strides = [1, 1, 1]} : vector<4x16x16xf32> to vector<4x9x9xf32>
    %230 = vector.broadcast %228 : vector<4x1x1xf32> to vector<4x9x9xf32>
    %231 = arith.mulf %230, %229 : vector<4x9x9xf32>
    %cst_44 = arith.constant dense<0.000000e+00> : vector<9x9xf32>
    %232 = vector.multi_reduction <add>, %231, %cst_44 [0] : vector<4x9x9xf32> to vector<9x9xf32>
    %233 = arith.addf %227, %232 : vector<9x9xf32>
    %234 = vector.extract_strided_slice %4 {offsets = [0, 4, 6], sizes = [4, 1, 1], strides = [1, 1, 1]} : vector<4x8x8xf32> to vector<4x1x1xf32>
    %235 = vector.extract_strided_slice %2 {offsets = [0, 4, 6], sizes = [4, 9, 9], strides = [1, 1, 1]} : vector<4x16x16xf32> to vector<4x9x9xf32>
    %236 = vector.broadcast %234 : vector<4x1x1xf32> to vector<4x9x9xf32>
    %237 = arith.mulf %236, %235 : vector<4x9x9xf32>
    %cst_45 = arith.constant dense<0.000000e+00> : vector<9x9xf32>
    %238 = vector.multi_reduction <add>, %237, %cst_45 [0] : vector<4x9x9xf32> to vector<9x9xf32>
    %239 = arith.addf %233, %238 : vector<9x9xf32>
    %240 = vector.extract_strided_slice %4 {offsets = [0, 4, 7], sizes = [4, 1, 1], strides = [1, 1, 1]} : vector<4x8x8xf32> to vector<4x1x1xf32>
    %241 = vector.extract_strided_slice %2 {offsets = [0, 4, 7], sizes = [4, 9, 9], strides = [1, 1, 1]} : vector<4x16x16xf32> to vector<4x9x9xf32>
    %242 = vector.broadcast %240 : vector<4x1x1xf32> to vector<4x9x9xf32>
    %243 = arith.mulf %242, %241 : vector<4x9x9xf32>
    %cst_46 = arith.constant dense<0.000000e+00> : vector<9x9xf32>
    %244 = vector.multi_reduction <add>, %243, %cst_46 [0] : vector<4x9x9xf32> to vector<9x9xf32>
    %245 = arith.addf %239, %244 : vector<9x9xf32>
    %246 = vector.extract_strided_slice %4 {offsets = [0, 5, 0], sizes = [4, 1, 1], strides = [1, 1, 1]} : vector<4x8x8xf32> to vector<4x1x1xf32>
    %247 = vector.extract_strided_slice %2 {offsets = [0, 5, 0], sizes = [4, 9, 9], strides = [1, 1, 1]} : vector<4x16x16xf32> to vector<4x9x9xf32>
    %248 = vector.broadcast %246 : vector<4x1x1xf32> to vector<4x9x9xf32>
    %249 = arith.mulf %248, %247 : vector<4x9x9xf32>
    %cst_47 = arith.constant dense<0.000000e+00> : vector<9x9xf32>
    %250 = vector.multi_reduction <add>, %249, %cst_47 [0] : vector<4x9x9xf32> to vector<9x9xf32>
    %251 = arith.addf %245, %250 : vector<9x9xf32>
    %252 = vector.extract_strided_slice %4 {offsets = [0, 5, 1], sizes = [4, 1, 1], strides = [1, 1, 1]} : vector<4x8x8xf32> to vector<4x1x1xf32>
    %253 = vector.extract_strided_slice %2 {offsets = [0, 5, 1], sizes = [4, 9, 9], strides = [1, 1, 1]} : vector<4x16x16xf32> to vector<4x9x9xf32>
    %254 = vector.broadcast %252 : vector<4x1x1xf32> to vector<4x9x9xf32>
    %255 = arith.mulf %254, %253 : vector<4x9x9xf32>
    %cst_48 = arith.constant dense<0.000000e+00> : vector<9x9xf32>
    %256 = vector.multi_reduction <add>, %255, %cst_48 [0] : vector<4x9x9xf32> to vector<9x9xf32>
    %257 = arith.addf %251, %256 : vector<9x9xf32>
    %258 = vector.extract_strided_slice %4 {offsets = [0, 5, 2], sizes = [4, 1, 1], strides = [1, 1, 1]} : vector<4x8x8xf32> to vector<4x1x1xf32>
    %259 = vector.extract_strided_slice %2 {offsets = [0, 5, 2], sizes = [4, 9, 9], strides = [1, 1, 1]} : vector<4x16x16xf32> to vector<4x9x9xf32>
    %260 = vector.broadcast %258 : vector<4x1x1xf32> to vector<4x9x9xf32>
    %261 = arith.mulf %260, %259 : vector<4x9x9xf32>
    %cst_49 = arith.constant dense<0.000000e+00> : vector<9x9xf32>
    %262 = vector.multi_reduction <add>, %261, %cst_49 [0] : vector<4x9x9xf32> to vector<9x9xf32>
    %263 = arith.addf %257, %262 : vector<9x9xf32>
    %264 = vector.extract_strided_slice %4 {offsets = [0, 5, 3], sizes = [4, 1, 1], strides = [1, 1, 1]} : vector<4x8x8xf32> to vector<4x1x1xf32>
    %265 = vector.extract_strided_slice %2 {offsets = [0, 5, 3], sizes = [4, 9, 9], strides = [1, 1, 1]} : vector<4x16x16xf32> to vector<4x9x9xf32>
    %266 = vector.broadcast %264 : vector<4x1x1xf32> to vector<4x9x9xf32>
    %267 = arith.mulf %266, %265 : vector<4x9x9xf32>
    %cst_50 = arith.constant dense<0.000000e+00> : vector<9x9xf32>
    %268 = vector.multi_reduction <add>, %267, %cst_50 [0] : vector<4x9x9xf32> to vector<9x9xf32>
    %269 = arith.addf %263, %268 : vector<9x9xf32>
    %270 = vector.extract_strided_slice %4 {offsets = [0, 5, 4], sizes = [4, 1, 1], strides = [1, 1, 1]} : vector<4x8x8xf32> to vector<4x1x1xf32>
    %271 = vector.extract_strided_slice %2 {offsets = [0, 5, 4], sizes = [4, 9, 9], strides = [1, 1, 1]} : vector<4x16x16xf32> to vector<4x9x9xf32>
    %272 = vector.broadcast %270 : vector<4x1x1xf32> to vector<4x9x9xf32>
    %273 = arith.mulf %272, %271 : vector<4x9x9xf32>
    %cst_51 = arith.constant dense<0.000000e+00> : vector<9x9xf32>
    %274 = vector.multi_reduction <add>, %273, %cst_51 [0] : vector<4x9x9xf32> to vector<9x9xf32>
    %275 = arith.addf %269, %274 : vector<9x9xf32>
    %276 = vector.extract_strided_slice %4 {offsets = [0, 5, 5], sizes = [4, 1, 1], strides = [1, 1, 1]} : vector<4x8x8xf32> to vector<4x1x1xf32>
    %277 = vector.extract_strided_slice %2 {offsets = [0, 5, 5], sizes = [4, 9, 9], strides = [1, 1, 1]} : vector<4x16x16xf32> to vector<4x9x9xf32>
    %278 = vector.broadcast %276 : vector<4x1x1xf32> to vector<4x9x9xf32>
    %279 = arith.mulf %278, %277 : vector<4x9x9xf32>
    %cst_52 = arith.constant dense<0.000000e+00> : vector<9x9xf32>
    %280 = vector.multi_reduction <add>, %279, %cst_52 [0] : vector<4x9x9xf32> to vector<9x9xf32>
    %281 = arith.addf %275, %280 : vector<9x9xf32>
    %282 = vector.extract_strided_slice %4 {offsets = [0, 5, 6], sizes = [4, 1, 1], strides = [1, 1, 1]} : vector<4x8x8xf32> to vector<4x1x1xf32>
    %283 = vector.extract_strided_slice %2 {offsets = [0, 5, 6], sizes = [4, 9, 9], strides = [1, 1, 1]} : vector<4x16x16xf32> to vector<4x9x9xf32>
    %284 = vector.broadcast %282 : vector<4x1x1xf32> to vector<4x9x9xf32>
    %285 = arith.mulf %284, %283 : vector<4x9x9xf32>
    %cst_53 = arith.constant dense<0.000000e+00> : vector<9x9xf32>
    %286 = vector.multi_reduction <add>, %285, %cst_53 [0] : vector<4x9x9xf32> to vector<9x9xf32>
    %287 = arith.addf %281, %286 : vector<9x9xf32>
    %288 = vector.extract_strided_slice %4 {offsets = [0, 5, 7], sizes = [4, 1, 1], strides = [1, 1, 1]} : vector<4x8x8xf32> to vector<4x1x1xf32>
    %289 = vector.extract_strided_slice %2 {offsets = [0, 5, 7], sizes = [4, 9, 9], strides = [1, 1, 1]} : vector<4x16x16xf32> to vector<4x9x9xf32>
    %290 = vector.broadcast %288 : vector<4x1x1xf32> to vector<4x9x9xf32>
    %291 = arith.mulf %290, %289 : vector<4x9x9xf32>
    %cst_54 = arith.constant dense<0.000000e+00> : vector<9x9xf32>
    %292 = vector.multi_reduction <add>, %291, %cst_54 [0] : vector<4x9x9xf32> to vector<9x9xf32>
    %293 = arith.addf %287, %292 : vector<9x9xf32>
    %294 = vector.extract_strided_slice %4 {offsets = [0, 6, 0], sizes = [4, 1, 1], strides = [1, 1, 1]} : vector<4x8x8xf32> to vector<4x1x1xf32>
    %295 = vector.extract_strided_slice %2 {offsets = [0, 6, 0], sizes = [4, 9, 9], strides = [1, 1, 1]} : vector<4x16x16xf32> to vector<4x9x9xf32>
    %296 = vector.broadcast %294 : vector<4x1x1xf32> to vector<4x9x9xf32>
    %297 = arith.mulf %296, %295 : vector<4x9x9xf32>
    %cst_55 = arith.constant dense<0.000000e+00> : vector<9x9xf32>
    %298 = vector.multi_reduction <add>, %297, %cst_55 [0] : vector<4x9x9xf32> to vector<9x9xf32>
    %299 = arith.addf %293, %298 : vector<9x9xf32>
    %300 = vector.extract_strided_slice %4 {offsets = [0, 6, 1], sizes = [4, 1, 1], strides = [1, 1, 1]} : vector<4x8x8xf32> to vector<4x1x1xf32>
    %301 = vector.extract_strided_slice %2 {offsets = [0, 6, 1], sizes = [4, 9, 9], strides = [1, 1, 1]} : vector<4x16x16xf32> to vector<4x9x9xf32>
    %302 = vector.broadcast %300 : vector<4x1x1xf32> to vector<4x9x9xf32>
    %303 = arith.mulf %302, %301 : vector<4x9x9xf32>
    %cst_56 = arith.constant dense<0.000000e+00> : vector<9x9xf32>
    %304 = vector.multi_reduction <add>, %303, %cst_56 [0] : vector<4x9x9xf32> to vector<9x9xf32>
    %305 = arith.addf %299, %304 : vector<9x9xf32>
    %306 = vector.extract_strided_slice %4 {offsets = [0, 6, 2], sizes = [4, 1, 1], strides = [1, 1, 1]} : vector<4x8x8xf32> to vector<4x1x1xf32>
    %307 = vector.extract_strided_slice %2 {offsets = [0, 6, 2], sizes = [4, 9, 9], strides = [1, 1, 1]} : vector<4x16x16xf32> to vector<4x9x9xf32>
    %308 = vector.broadcast %306 : vector<4x1x1xf32> to vector<4x9x9xf32>
    %309 = arith.mulf %308, %307 : vector<4x9x9xf32>
    %cst_57 = arith.constant dense<0.000000e+00> : vector<9x9xf32>
    %310 = vector.multi_reduction <add>, %309, %cst_57 [0] : vector<4x9x9xf32> to vector<9x9xf32>
    %311 = arith.addf %305, %310 : vector<9x9xf32>
    %312 = vector.extract_strided_slice %4 {offsets = [0, 6, 3], sizes = [4, 1, 1], strides = [1, 1, 1]} : vector<4x8x8xf32> to vector<4x1x1xf32>
    %313 = vector.extract_strided_slice %2 {offsets = [0, 6, 3], sizes = [4, 9, 9], strides = [1, 1, 1]} : vector<4x16x16xf32> to vector<4x9x9xf32>
    %314 = vector.broadcast %312 : vector<4x1x1xf32> to vector<4x9x9xf32>
    %315 = arith.mulf %314, %313 : vector<4x9x9xf32>
    %cst_58 = arith.constant dense<0.000000e+00> : vector<9x9xf32>
    %316 = vector.multi_reduction <add>, %315, %cst_58 [0] : vector<4x9x9xf32> to vector<9x9xf32>
    %317 = arith.addf %311, %316 : vector<9x9xf32>
    %318 = vector.extract_strided_slice %4 {offsets = [0, 6, 4], sizes = [4, 1, 1], strides = [1, 1, 1]} : vector<4x8x8xf32> to vector<4x1x1xf32>
    %319 = vector.extract_strided_slice %2 {offsets = [0, 6, 4], sizes = [4, 9, 9], strides = [1, 1, 1]} : vector<4x16x16xf32> to vector<4x9x9xf32>
    %320 = vector.broadcast %318 : vector<4x1x1xf32> to vector<4x9x9xf32>
    %321 = arith.mulf %320, %319 : vector<4x9x9xf32>
    %cst_59 = arith.constant dense<0.000000e+00> : vector<9x9xf32>
    %322 = vector.multi_reduction <add>, %321, %cst_59 [0] : vector<4x9x9xf32> to vector<9x9xf32>
    %323 = arith.addf %317, %322 : vector<9x9xf32>
    %324 = vector.extract_strided_slice %4 {offsets = [0, 6, 5], sizes = [4, 1, 1], strides = [1, 1, 1]} : vector<4x8x8xf32> to vector<4x1x1xf32>
    %325 = vector.extract_strided_slice %2 {offsets = [0, 6, 5], sizes = [4, 9, 9], strides = [1, 1, 1]} : vector<4x16x16xf32> to vector<4x9x9xf32>
    %326 = vector.broadcast %324 : vector<4x1x1xf32> to vector<4x9x9xf32>
    %327 = arith.mulf %326, %325 : vector<4x9x9xf32>
    %cst_60 = arith.constant dense<0.000000e+00> : vector<9x9xf32>
    %328 = vector.multi_reduction <add>, %327, %cst_60 [0] : vector<4x9x9xf32> to vector<9x9xf32>
    %329 = arith.addf %323, %328 : vector<9x9xf32>
    %330 = vector.extract_strided_slice %4 {offsets = [0, 6, 6], sizes = [4, 1, 1], strides = [1, 1, 1]} : vector<4x8x8xf32> to vector<4x1x1xf32>
    %331 = vector.extract_strided_slice %2 {offsets = [0, 6, 6], sizes = [4, 9, 9], strides = [1, 1, 1]} : vector<4x16x16xf32> to vector<4x9x9xf32>
    %332 = vector.broadcast %330 : vector<4x1x1xf32> to vector<4x9x9xf32>
    %333 = arith.mulf %332, %331 : vector<4x9x9xf32>
    %cst_61 = arith.constant dense<0.000000e+00> : vector<9x9xf32>
    %334 = vector.multi_reduction <add>, %333, %cst_61 [0] : vector<4x9x9xf32> to vector<9x9xf32>
    %335 = arith.addf %329, %334 : vector<9x9xf32>
    %336 = vector.extract_strided_slice %4 {offsets = [0, 6, 7], sizes = [4, 1, 1], strides = [1, 1, 1]} : vector<4x8x8xf32> to vector<4x1x1xf32>
    %337 = vector.extract_strided_slice %2 {offsets = [0, 6, 7], sizes = [4, 9, 9], strides = [1, 1, 1]} : vector<4x16x16xf32> to vector<4x9x9xf32>
    %338 = vector.broadcast %336 : vector<4x1x1xf32> to vector<4x9x9xf32>
    %339 = arith.mulf %338, %337 : vector<4x9x9xf32>
    %cst_62 = arith.constant dense<0.000000e+00> : vector<9x9xf32>
    %340 = vector.multi_reduction <add>, %339, %cst_62 [0] : vector<4x9x9xf32> to vector<9x9xf32>
    %341 = arith.addf %335, %340 : vector<9x9xf32>
    %342 = vector.extract_strided_slice %4 {offsets = [0, 7, 0], sizes = [4, 1, 1], strides = [1, 1, 1]} : vector<4x8x8xf32> to vector<4x1x1xf32>
    %343 = vector.extract_strided_slice %2 {offsets = [0, 7, 0], sizes = [4, 9, 9], strides = [1, 1, 1]} : vector<4x16x16xf32> to vector<4x9x9xf32>
    %344 = vector.broadcast %342 : vector<4x1x1xf32> to vector<4x9x9xf32>
    %345 = arith.mulf %344, %343 : vector<4x9x9xf32>
    %cst_63 = arith.constant dense<0.000000e+00> : vector<9x9xf32>
    %346 = vector.multi_reduction <add>, %345, %cst_63 [0] : vector<4x9x9xf32> to vector<9x9xf32>
    %347 = arith.addf %341, %346 : vector<9x9xf32>
    %348 = vector.extract_strided_slice %4 {offsets = [0, 7, 1], sizes = [4, 1, 1], strides = [1, 1, 1]} : vector<4x8x8xf32> to vector<4x1x1xf32>
    %349 = vector.extract_strided_slice %2 {offsets = [0, 7, 1], sizes = [4, 9, 9], strides = [1, 1, 1]} : vector<4x16x16xf32> to vector<4x9x9xf32>
    %350 = vector.broadcast %348 : vector<4x1x1xf32> to vector<4x9x9xf32>
    %351 = arith.mulf %350, %349 : vector<4x9x9xf32>
    %cst_64 = arith.constant dense<0.000000e+00> : vector<9x9xf32>
    %352 = vector.multi_reduction <add>, %351, %cst_64 [0] : vector<4x9x9xf32> to vector<9x9xf32>
    %353 = arith.addf %347, %352 : vector<9x9xf32>
    %354 = vector.extract_strided_slice %4 {offsets = [0, 7, 2], sizes = [4, 1, 1], strides = [1, 1, 1]} : vector<4x8x8xf32> to vector<4x1x1xf32>
    %355 = vector.extract_strided_slice %2 {offsets = [0, 7, 2], sizes = [4, 9, 9], strides = [1, 1, 1]} : vector<4x16x16xf32> to vector<4x9x9xf32>
    %356 = vector.broadcast %354 : vector<4x1x1xf32> to vector<4x9x9xf32>
    %357 = arith.mulf %356, %355 : vector<4x9x9xf32>
    %cst_65 = arith.constant dense<0.000000e+00> : vector<9x9xf32>
    %358 = vector.multi_reduction <add>, %357, %cst_65 [0] : vector<4x9x9xf32> to vector<9x9xf32>
    %359 = arith.addf %353, %358 : vector<9x9xf32>
    %360 = vector.extract_strided_slice %4 {offsets = [0, 7, 3], sizes = [4, 1, 1], strides = [1, 1, 1]} : vector<4x8x8xf32> to vector<4x1x1xf32>
    %361 = vector.extract_strided_slice %2 {offsets = [0, 7, 3], sizes = [4, 9, 9], strides = [1, 1, 1]} : vector<4x16x16xf32> to vector<4x9x9xf32>
    %362 = vector.broadcast %360 : vector<4x1x1xf32> to vector<4x9x9xf32>
    %363 = arith.mulf %362, %361 : vector<4x9x9xf32>
    %cst_66 = arith.constant dense<0.000000e+00> : vector<9x9xf32>
    %364 = vector.multi_reduction <add>, %363, %cst_66 [0] : vector<4x9x9xf32> to vector<9x9xf32>
    %365 = arith.addf %359, %364 : vector<9x9xf32>
    %366 = vector.extract_strided_slice %4 {offsets = [0, 7, 4], sizes = [4, 1, 1], strides = [1, 1, 1]} : vector<4x8x8xf32> to vector<4x1x1xf32>
    %367 = vector.extract_strided_slice %2 {offsets = [0, 7, 4], sizes = [4, 9, 9], strides = [1, 1, 1]} : vector<4x16x16xf32> to vector<4x9x9xf32>
    %368 = vector.broadcast %366 : vector<4x1x1xf32> to vector<4x9x9xf32>
    %369 = arith.mulf %368, %367 : vector<4x9x9xf32>
    %cst_67 = arith.constant dense<0.000000e+00> : vector<9x9xf32>
    %370 = vector.multi_reduction <add>, %369, %cst_67 [0] : vector<4x9x9xf32> to vector<9x9xf32>
    %371 = arith.addf %365, %370 : vector<9x9xf32>
    %372 = vector.extract_strided_slice %4 {offsets = [0, 7, 5], sizes = [4, 1, 1], strides = [1, 1, 1]} : vector<4x8x8xf32> to vector<4x1x1xf32>
    %373 = vector.extract_strided_slice %2 {offsets = [0, 7, 5], sizes = [4, 9, 9], strides = [1, 1, 1]} : vector<4x16x16xf32> to vector<4x9x9xf32>
    %374 = vector.broadcast %372 : vector<4x1x1xf32> to vector<4x9x9xf32>
    %375 = arith.mulf %374, %373 : vector<4x9x9xf32>
    %cst_68 = arith.constant dense<0.000000e+00> : vector<9x9xf32>
    %376 = vector.multi_reduction <add>, %375, %cst_68 [0] : vector<4x9x9xf32> to vector<9x9xf32>
    %377 = arith.addf %371, %376 : vector<9x9xf32>
    %378 = vector.extract_strided_slice %4 {offsets = [0, 7, 6], sizes = [4, 1, 1], strides = [1, 1, 1]} : vector<4x8x8xf32> to vector<4x1x1xf32>
    %379 = vector.extract_strided_slice %2 {offsets = [0, 7, 6], sizes = [4, 9, 9], strides = [1, 1, 1]} : vector<4x16x16xf32> to vector<4x9x9xf32>
    %380 = vector.broadcast %378 : vector<4x1x1xf32> to vector<4x9x9xf32>
    %381 = arith.mulf %380, %379 : vector<4x9x9xf32>
    %cst_69 = arith.constant dense<0.000000e+00> : vector<9x9xf32>
    %382 = vector.multi_reduction <add>, %381, %cst_69 [0] : vector<4x9x9xf32> to vector<9x9xf32>
    %383 = arith.addf %377, %382 : vector<9x9xf32>
    %384 = vector.extract_strided_slice %4 {offsets = [0, 7, 7], sizes = [4, 1, 1], strides = [1, 1, 1]} : vector<4x8x8xf32> to vector<4x1x1xf32>
    %385 = vector.extract_strided_slice %2 {offsets = [0, 7, 7], sizes = [4, 9, 9], strides = [1, 1, 1]} : vector<4x16x16xf32> to vector<4x9x9xf32>
    %386 = vector.broadcast %384 : vector<4x1x1xf32> to vector<4x9x9xf32>
    %387 = arith.mulf %386, %385 : vector<4x9x9xf32>
    %cst_70 = arith.constant dense<0.000000e+00> : vector<9x9xf32>
    %388 = vector.multi_reduction <add>, %387, %cst_70 [0] : vector<4x9x9xf32> to vector<9x9xf32>
    %389 = arith.addf %383, %388 : vector<9x9xf32>
    %cst_71 = arith.constant 1.562500e-02 : f32
    %390 = vector.broadcast %cst_71 : f32 to vector<9x9xf32>
    %391 = arith.mulf %389, %390 : vector<9x9xf32>
    %392 = arith.index_cast %arg0 : i32 to index
    %c0_72 = arith.constant 0 : index
    %c0_73 = arith.constant 0 : index
    %393 = vector.load %arg5[%392, %c0_72, %c0_73] : memref<2x9x9xf32, #tpu.memory_space<vmem>>, vector<1x9x9xf32>
    %394 = vector.shape_cast %393 : vector<1x9x9xf32> to vector<9x9xf32>
    %395 = vector.shape_cast %391 : vector<9x9xf32> to vector<1x9x9xf32>
    tpu.vector_store %arg5[%392, %c0_72, %c0_73], %395 {strides = array<i32>} : memref<2x9x9xf32, #tpu.memory_space<vmem>>, vector<1x9x9xf32>,
    %c1_i32 = arith.constant 1 : i32
    %396 = arith.cmpi eq, %arg0, %c1_i32 : i32
    %397 = arith.extui %396 : i1 to i32
    %c0_i32 = arith.constant 0 : i32
    %398 = arith.cmpi ne, %397, %c0_i32 : i32
    scf.if %398 {
      %c0_74 = arith.constant 0 : index
      %c0_75 = arith.constant 0 : index
      %c0_76 = arith.constant 0 : index
      %399 = vector.load %arg5[%c0_74, %c0_75, %c0_76] : memref<2x9x9xf32, #tpu.memory_space<vmem>>, vector<2x9x9xf32>
      %400 = vector.shape_cast %399 : vector<2x9x9xf32> to vector<1x2x9x9xf32>
      %cst_77 = arith.constant dense<0.000000e+00> : vector<1xf32>
      %401 = vector.multi_reduction <add>, %400, %cst_77 [1, 2, 3] : vector<1x2x9x9xf32> to vector<1xf32>
      %402 = vector.shape_cast %401 : vector<1xf32> to vector<1x1x1x1xf32>
      %403 = vector.extract %402[0, 0, 0, 0] : f32 from vector<1x1x1x1xf32>
      %cst_78 = arith.constant 0.00617283955 : f32
      %404 = arith.mulf %403, %cst_78 : f32
      %405 = vector.broadcast %404 : f32 to vector<2x9x9xf32>
      %406 = arith.subf %399, %405 : vector<2x9x9xf32>
      %407 = arith.mulf %406, %406 : vector<2x9x9xf32>
      %408 = vector.shape_cast %407 : vector<2x9x9xf32> to vector<1x2x9x9xf32>
      %cst_79 = arith.constant dense<0.000000e+00> : vector<1xf32>
      %409 = vector.multi_reduction <add>, %408, %cst_79 [1, 2, 3] : vector<1x2x9x9xf32> to vector<1xf32>
      %410 = vector.shape_cast %409 : vector<1xf32> to vector<1x1x1x1xf32>
      %411 = vector.extract %410[0, 0, 0, 0] : f32 from vector<1x1x1x1xf32>
      %cst_80 = arith.constant 0.00617283955 : f32
      %412 = arith.mulf %411, %cst_80 : f32
      %cst_81 = arith.constant 9.99999974E-6 : f32
      %413 = arith.addf %412, %cst_81 : f32
      %414 = math.rsqrt %413 : f32
      %c0_82 = arith.constant 0 : index
      %415 = memref.load %arg1[%c0_82] : memref<2xf32, #tpu.memory_space<smem>>
      %416 = arith.mulf %415, %414 : f32
      %c1 = arith.constant 1 : index
      %417 = memref.load %arg1[%c1] : memref<2xf32, #tpu.memory_space<smem>>
      %418 = arith.mulf %404, %416 : f32
      %419 = arith.subf %417, %418 : f32
      %420 = vector.broadcast %416 : f32 to vector<2x9x9xf32>
      %421 = arith.mulf %399, %420 : vector<2x9x9xf32>
      %422 = vector.broadcast %419 : f32 to vector<2x9x9xf32>
      %423 = arith.addf %421, %422 : vector<2x9x9xf32>
      %c0_83 = arith.constant 0 : index
      %c0_84 = arith.constant 0 : index
      %c0_85 = arith.constant 0 : index
      %424 = vector.load %arg4[%c0_83, %c0_84, %c0_85] : memref<2x9x9xf32, #tpu.memory_space<vmem>>, vector<2x9x9xf32>
      tpu.vector_store %arg4[%c0_83, %c0_84, %c0_85], %423 {strides = array<i32>} : memref<2x9x9xf32, #tpu.memory_space<vmem>>, vector<2x9x9xf32>,
    } else {
    }
    return
  }
  func.func @transform_0(%arg0: i32) -> i32 {
    %c0_i32 = arith.constant 0 : i32
    %c0_i32_0 = arith.constant 0 : i32
    return %c0_i32 : i32
  }
  func.func @transform_1(%arg0: i32) -> (i32, i32, i32, i32) {
    %c0_i32 = arith.constant 0 : i32
    %c0_i32_0 = arith.constant 0 : i32
    %c0_i32_1 = arith.constant 0 : i32
    %c0_i32_2 = arith.constant 0 : i32
    return %arg0, %c0_i32, %c0_i32_0, %c0_i32_1 : i32, i32, i32, i32
  }
  func.func @transform_2(%arg0: i32) -> (i32, i32, i32, i32) {
    %c0_i32 = arith.constant 0 : i32
    %c0_i32_0 = arith.constant 0 : i32
    %c0_i32_1 = arith.constant 0 : i32
    %c0_i32_2 = arith.constant 0 : i32
    return %arg0, %c0_i32, %c0_i32_0, %c0_i32_1 : i32, i32, i32, i32
  }
  func.func @transform_3(%arg0: i32) -> (i32, i32, i32) {
    %c0_i32 = arith.constant 0 : i32
    %c0_i32_0 = arith.constant 0 : i32
    %c0_i32_1 = arith.constant 0 : i32
    %c0_i32_2 = arith.constant 0 : i32
    return %c0_i32, %c0_i32_0, %c0_i32_1 : i32, i32, i32
  }
}

</mosaic_0001>

<llo_original>
// kernel: tpu_custom_call.1
$region0: #{tpu_custom_call.1}
  #allocation0 [shape = 'u32[]', space=smem, size = 0x4, offset = 0x4, fixed_abs, tag = 'smem constant byte address 0x4 - core index']
  #allocation1 [shape = 'u32[144,128]{1,0:T(1,128)}', space=vmem, size = 0x12000, scoped, tag = 'internal scratch']
  #allocation2 [shape = 'f32[2,9,9]{2,1,0:T(8,128)}', space=vmem, size = 0x4000, scoped, tag = 'scratch operand']
  %s0 = inlined_call_operand.hbm [shape: f32[2], index: 0, kind: input, shape index: {}]
  %s1 = inlined_call_operand.hbm [shape: f32[2,4,8,8], index: 1, kind: input, shape index: {}]
  %s2 = inlined_call_operand.hbm [shape: f32[2,4,16,16], index: 2, kind: input, shape index: {}]
  %s3 = inlined_call_operand.vmem [shape: f32[2,9,9], index: 3, kind: output, shape index: {}]
  %s4 = sld [smem:[#allocation0]]
  $region61: #{tpu_custom_call.1} parent=0
    _
  %s6 = ssub.s32 1, %s4
  %s7 = scalar_select 0, %s6, %s4
  $region1: #{tpu_custom_call.1} parent=0
    #allocation3 [shape = 'u8[512]{0}', space=smem, size = 0x200, scoped, tag = 'input window, operand 0, single buffered']
    #allocation4 [shape = 's32[2]{0}', space=sflag, size = 0x8, scoped, tag = 'scoped memory for tpu_custom_call.1']
    #allocation5 [shape = 's32[2]{0}', space=sflag, size = 0x8, scoped, tag = 'scoped memory for tpu_custom_call.1']
    #allocation6 [shape = 'u8[32768]{0}', space=vmem, size = 0x8000, scoped, tag = 'input window, operand 1']
    #allocation7 [shape = 'u8[65536]{0}', space=vmem, size = 0x10000, scoped, tag = 'input window, operand 2']
    #allocation8 [shape = 's32[2]{0}', space=sflag, size = 0x8, scoped, tag = 'scoped memory for tpu_custom_call.1']
    %8 = vsyncpa [#allocation5], 0
    %9 = vsyncpa [#allocation4], 0
    %s10 = scalar_lea.sflag [#allocation4], 1
    %11 = vsyncpa %s10, 0
    %12 = vsyncpa [#allocation8], 0
    %s13 = scalar_lea.sflag [#allocation8], 1
    %14 = vsyncpa %s13, 0
    loop: start=0, step=1, limit=4
    $region2: #{tpu_custom_call.1} parent=1 // loop_pre_header
      _
    $region3: #{tpu_custom_call.1} parent=1 // loop_header
      %s16 = sphi 0, %s20
      %p17 = scmp.ge.s32.totalorder %s16, 4
      %s24 = sphi 0, %s24
      %s26 = sphi 0, %s24
      %s27 = sphi 0, %s26
      %s41 = sphi 0, %s27
      %s47 = sphi 0, %s49
      %s50 = sphi 0, %s47
      %s51 = sphi 0, %s50
      %s67 = sphi 0, %s51
      %s73 = sphi 0, %s75
      %s76 = sphi 0, %s73
      %s77 = sphi 0, %s76
      %s93 = sphi 0, %s77
      %s97 = sphi 0, %s97
      %s99 = sphi 0, %s97
      %s100 = sphi 0, %s99
      %s114 = sphi 0, %s100
    $region4: #{tpu_custom_call.1} parent=1 // loop_header_branch
      %19 = sbr.rel (%p17) target = $region8
    $region5: #{tpu_custom_call.1} parent=1 // loop_body
      %s21 = ssub.s32 %s16, 1
      %s22 = ssub.s32 %s16, 2
      %s23 = sadd.s32 %s16, 1
      %s25 = sadd.s32 %s24, 1
      %p28 = scmp.eq.s32.totalorder %s16, 1
      %p29 = scmp.ne.s32.totalorder %s24, %s26
      %p30 = scmp.eq.s32.totalorder %s16, 0
      %p31 = por %p29, %p30
      %p32 = scmp.ne.s32.totalorder %s24, %s26
      %p33 = scmp.eq.s32.totalorder %s21, 1
      %p34 = por %p32, %p33
      %p35 = scmp.ne.s32.totalorder %s26, %s27
      %p36 = scmp.eq.s32.totalorder %s21, 0
      %p37 = por %p35, %p36
      %p38 = scmp.ne.s32.totalorder %s26, %s27
      %p39 = scmp.eq.s32.totalorder %s22, 1
      %p40 = por %p38, %p39
      %p42 = scmp.ne.s32.totalorder %s27, %s41
      %p43 = scmp.eq.s32.totalorder %s22, 0
      %p44 = por %p42, %p43
      %s45 = ssub.s32 %s16, %s23
      %p46 = scmp.eq.s32.totalorder %s45, 0
      %s48 = sadd.s32 %s47, 1
      %s49 = scalar_select %p46, %s47, %s48
      %p52 = pneg %p46
      %p53 = scmp.eq.s32.totalorder %s16, 1
      %p54 = por %p52, %p53
      %p55 = scmp.ne.s32.totalorder %s47, %s50
      %p56 = scmp.eq.s32.totalorder %s16, 0
      %p57 = por %p55, %p56
      %p58 = scmp.ne.s32.totalorder %s47, %s50
      %p59 = scmp.eq.s32.totalorder %s21, 1
      %p60 = por %p58, %p59
      %p61 = scmp.ne.s32.totalorder %s50, %s51
      %p62 = scmp.eq.s32.totalorder %s21, 0
      %p63 = por %p61, %p62
      %p64 = scmp.ne.s32.totalorder %s50, %s51
      %p65 = scmp.eq.s32.totalorder %s22, 1
      %p66 = por %p64, %p65
      %p68 = scmp.ne.s32.totalorder %s51, %s67
      %p69 = scmp.eq.s32.totalorder %s22, 0
      %p70 = por %p68, %p69
      %s71 = ssub.s32 %s16, %s23
      %p72 = scmp.eq.s32.totalorder %s71, 0
      %s74 = sadd.s32 %s73, 1
      %s75 = scalar_select %p72, %s73, %s74
      %p78 = pneg %p72
      %p79 = scmp.eq.s32.totalorder %s16, 1
      %p80 = por %p78, %p79
      %p81 = scmp.ne.s32.totalorder %s73, %s76
      %p82 = scmp.eq.s32.totalorder %s16, 0
      %p83 = por %p81, %p82
      %p84 = scmp.ne.s32.totalorder %s73, %s76
      %p85 = scmp.eq.s32.totalorder %s21, 1
      %p86 = por %p84, %p85
      %p87 = scmp.ne.s32.totalorder %s76, %s77
      %p88 = scmp.eq.s32.totalorder %s21, 0
      %p89 = por %p87, %p88
      %p90 = scmp.ne.s32.totalorder %s76, %s77
      %p91 = scmp.eq.s32.totalorder %s22, 1
      %p92 = por %p90, %p91
      %p94 = scmp.ne.s32.totalorder %s77, %s93
      %p95 = scmp.eq.s32.totalorder %s22, 0
      %p96 = por %p94, %p95
      %s98 = sadd.s32 %s97, 1
      %p101 = scmp.eq.s32.totalorder %s16, 1
      %p102 = scmp.ne.s32.totalorder %s97, %s99
      %p103 = scmp.eq.s32.totalorder %s16, 0
      %p104 = por %p102, %p103
      %p105 = scmp.ne.s32.totalorder %s97, %s99
      %p106 = scmp.eq.s32.totalorder %s21, 1
      %p107 = por %p105, %p106
      %p108 = scmp.ne.s32.totalorder %s99, %s100
      %p109 = scmp.eq.s32.totalorder %s21, 0
      %p110 = por %p108, %p109
      %p111 = scmp.ne.s32.totalorder %s99, %s100
      %p112 = scmp.eq.s32.totalorder %s22, 1
      %p113 = por %p111, %p112
      %p115 = scmp.ne.s32.totalorder %s100, %s114
      %p116 = scmp.eq.s32.totalorder %s22, 0
      %p117 = por %p115, %p116
      %p118 = scmp.le.s32.totalorder 1, %s16
      %p119 = scmp.lt.s32.totalorder %s16, 3
      %p120 = pnand %p118, %p119
      %p121 = pneg %p120
      // Predicated region
      $region9: #{tpu_custom_call.1} parent=5 // pred_check
        _
      $region10: #{tpu_custom_call.1} parent=5 // pred_check_branch
        %123 = sbr.rel (%p120) target = $region12
      $region11: #{tpu_custom_call.1} parent=5 // pred_region
        %s124 = ssub.s32 %s16, 1
        // Predicated region
        $region13: #{tpu_custom_call.1} parent=11 // pred_check
          %p125 = pneg %p37
        $region14: #{tpu_custom_call.1} parent=11 // pred_check_branch
          %127 = sbr.rel (%p125) target = $region16
        $region15: #{tpu_custom_call.1} parent=11 // pred_region
          %s129 = ssub.s32 16, 16
          %130 = vsyncadd [#allocation5], %s129
          %133 = dma.hbm_to_smem %s0, 16, [#allocation3], [#allocation5]
        $region16: #{tpu_custom_call.1} parent=11 // pred_fallthru
          _
      $region12: #{tpu_custom_call.1} parent=5 // pred_fallthru
        _
      %p134 = scmp.lt.s32.totalorder %s16, 2
      // Predicated region
      $region17: #{tpu_custom_call.1} parent=5 // pred_check
        %p135 = pneg %p134
      $region18: #{tpu_custom_call.1} parent=5 // pred_check_branch
        %137 = sbr.rel (%p135) target = $region20
      $region19: #{tpu_custom_call.1} parent=5 // pred_region
        // Predicated region
        $region21: #{tpu_custom_call.1} parent=19 // pred_check
          %p138 = pneg %p57
        $region22: #{tpu_custom_call.1} parent=19 // pred_check_branch
          %140 = sbr.rel (%p138) target = $region24
        $region23: #{tpu_custom_call.1} parent=19 // pred_region
          %s141 = sand.u32 %s47, 1
          %s142 = scalar_lea.sflag [#allocation4], %s141
          %s143 = sand.u32 %s47, 1
          %s144 = smul.addr %s143, 32
          %s145 = scalar_lea.vmem [#allocation6], %s144
          %s147 = ssub.s32 512, 512
          %148 = vsyncadd %s142, %s147
          %s149 = smul.addr %s16, 4
          %s150 = smul.addr %s149, 128
          %s151 = scalar_lea.hbm %s1, %s150
          %s152 = sshll.u32 %s145, 4
          %s153 = int_to_ptr.vmem [resolvable:$true] %s152
          %158 = dma.hbm_to_vmem [thread:$0]  %s151, 512, %s153, %s142, 128, 128, 8
        $region24: #{tpu_custom_call.1} parent=19 // pred_fallthru
          _
        // Predicated region
        $region25: #{tpu_custom_call.1} parent=19 // pred_check
          %p159 = pneg %p83
        $region26: #{tpu_custom_call.1} parent=19 // pred_check_branch
          %161 = sbr.rel (%p159) target = $region28
        $region27: #{tpu_custom_call.1} parent=19 // pred_region
          %s162 = sand.u32 %s73, 1
          %s163 = scalar_lea.sflag [#allocation8], %s162
          %s164 = sand.u32 %s73, 1
          %s165 = smul.addr %s164, 64
          %s166 = scalar_lea.vmem [#allocation7], %s165
          %s168 = ssub.s32 1024, 1024
          %169 = vsyncadd %s163, %s168
          %s170 = smul.addr %s16, 8
          %s171 = smul.addr %s170, 128
          %s172 = scalar_lea.hbm %s2, %s171
          %s173 = sshll.u32 %s166, 4
          %s174 = int_to_ptr.vmem [resolvable:$true] %s173
          %179 = dma.hbm_to_vmem [thread:$0]  %s172, 1024, %s174, %s163, 128, 128, 8
        $region28: #{tpu_custom_call.1} parent=19 // pred_fallthru
          _
      $region20: #{tpu_custom_call.1} parent=5 // pred_fallthru
        _
      %p180 = scmp.le.s32.totalorder 1, %s16
      %p181 = scmp.lt.s32.totalorder %s16, 3
      %p182 = pnand %p180, %p181
      %p183 = pneg %p182
      // Predicated region
      $region29: #{tpu_custom_call.1} parent=5 // pred_check
        _
      $region30: #{tpu_custom_call.1} parent=5 // pred_check_branch
        %185 = sbr.rel (%p182) target = $region32
      $region31: #{tpu_custom_call.1} parent=5 // pred_region
        %s186 = ssub.s32 %s16, 1
        // Predicated region
        $region33: #{tpu_custom_call.1} parent=31 // pred_check
          %p187 = pneg %p37
        $region34: #{tpu_custom_call.1} parent=31 // pred_check_branch
          %189 = sbr.rel (%p187) target = $region36
        $region35: #{tpu_custom_call.1} parent=31 // pred_region
          %190 = dma.done [#allocation5], 16
        $region36: #{tpu_custom_call.1} parent=31 // pred_fallthru
          _
        %s191 = sand.u32 %s50, 1
        %s192 = scalar_lea.sflag [#allocation4], %s191
        %s193 = sand.u32 %s50, 1
        %s194 = smul.addr %s193, 32
        %s195 = scalar_lea.vmem [#allocation6], %s194
        // Predicated region
        $region37: #{tpu_custom_call.1} parent=31 // pred_check
          %p196 = pneg %p63
        $region38: #{tpu_custom_call.1} parent=31 // pred_check_branch
          %198 = sbr.rel (%p196) target = $region40
        $region39: #{tpu_custom_call.1} parent=31 // pred_region
          %199 = dma.done %s192, 512
        $region40: #{tpu_custom_call.1} parent=31 // pred_fallthru
          _
        %s200 = sand.u32 %s76, 1
        %s201 = scalar_lea.sflag [#allocation8], %s200
        %s202 = sand.u32 %s76, 1
        %s203 = smul.addr %s202, 64
        %s204 = scalar_lea.vmem [#allocation7], %s203
        // Predicated region
        $region41: #{tpu_custom_call.1} parent=31 // pred_check
          %p205 = pneg %p89
        $region42: #{tpu_custom_call.1} parent=31 // pred_check_branch
          %207 = sbr.rel (%p205) target = $region44
        $region43: #{tpu_custom_call.1} parent=31 // pred_region
          %208 = dma.done %s201, 1024
        $region44: #{tpu_custom_call.1} parent=31 // pred_fallthru
          _
        %209 = sfence
        %p210 = pneg %p37
        %p211 = pneg %p34
        %s212 = sand.u32 %s50, 1
        %s213 = scalar_lea.sflag [#allocation4], %s212
        %s214 = sand.u32 %s50, 1
        %s215 = smul.addr %s214, 32
        %s216 = scalar_lea.vmem [#allocation6], %s215
        %p217 = pneg %p63
        %p218 = pneg %p60
        %s219 = sand.u32 %s76, 1
        %s220 = scalar_lea.sflag [#allocation8], %s219
        %s221 = sand.u32 %s76, 1
        %s222 = smul.addr %s221, 64
        %s223 = scalar_lea.vmem [#allocation7], %s222
        %p224 = pneg %p89
        %p225 = pneg %p86
        %p226 = pneg %p110
        %p227 = pneg %p107
        %v228 = vld [vmem:[%s204] sm:$0xff]
        %v229 = vld [vmem:[%s204 + $0x8] sm:$0xff]
        %v230 = vld [vmem:[%s204 + $0x10] sm:$0xff]
        %v231 = vld [vmem:[%s204 + $0x18] sm:$0xff]
        %v232 = vld [vmem:[%s204 + $0x20] sm:$0xff]
        %v233 = vld [vmem:[%s204 + $0x28] sm:$0xff]
        %v234 = vld [vmem:[%s204 + $0x30] sm:$0xff]
        %v235 = vld [vmem:[%s204 + $0x38] sm:$0xff]
        %v236 = vrsqrt.pop %v228
        %v237 = vmul.f32 %v228, %v236
        %vm238 = vcmp.eq.f32.partialorder %v228, inf
        %v239 = vsel %vm238, %v228, %v237
        %vm240 = vcmp.eq.f32.partialorder %v228, 0.0
        %v241 = vand.u32 %v228, 2147483648
        %v242 = vsel %vm240, %v241, %v239
        %v243 = vrsqrt.pop %v229
        %v244 = vmul.f32 %v229, %v243
        %vm245 = vcmp.eq.f32.partialorder %v229, inf
        %v246 = vsel %vm245, %v229, %v244
        %vm247 = vcmp.eq.f32.partialorder %v229, 0.0
        %v248 = vand.u32 %v229, 2147483648
        %v249 = vsel %vm247, %v248, %v246
        %v250 = vrsqrt.pop %v230
        %v251 = vmul.f32 %v230, %v250
        %vm252 = vcmp.eq.f32.partialorder %v230, inf
        %v253 = vsel %vm252, %v230, %v251
        %vm254 = vcmp.eq.f32.partialorder %v230, 0.0
        %v255 = vand.u32 %v230, 2147483648
        %v256 = vsel %vm254, %v255, %v253
        %v257 = vrsqrt.pop %v231
        %v258 = vmul.f32 %v231, %v257
        %vm259 = vcmp.eq.f32.partialorder %v231, inf
        %v260 = vsel %vm259, %v231, %v258
        %vm261 = vcmp.eq.f32.partialorder %v231, 0.0
        %v262 = vand.u32 %v231, 2147483648
        %v263 = vsel %vm261, %v262, %v260
        %v264 = vrsqrt.pop %v232
        %v265 = vmul.f32 %v232, %v264
        %vm266 = vcmp.eq.f32.partialorder %v232, inf
        %v267 = vsel %vm266, %v232, %v265
        %vm268 = vcmp.eq.f32.partialorder %v232, 0.0
        %v269 = vand.u32 %v232, 2147483648
        %v270 = vsel %vm268, %v269, %v267
        %v271 = vrsqrt.pop %v233
        %v272 = vmul.f32 %v233, %v271
        %vm273 = vcmp.eq.f32.partialorder %v233, inf
        %v274 = vsel %vm273, %v233, %v272
        %vm275 = vcmp.eq.f32.partialorder %v233, 0.0
        %v276 = vand.u32 %v233, 2147483648
        %v277 = vsel %vm275, %v276, %v274
        %v278 = vrsqrt.pop %v234
        %v279 = vmul.f32 %v234, %v278
        %vm280 = vcmp.eq.f32.partialorder %v234, inf
        %v281 = vsel %vm280, %v234, %v279
        %vm282 = vcmp.eq.f32.partialorder %v234, 0.0
        %v283 = vand.u32 %v234, 2147483648
        %v284 = vsel %vm282, %v283, %v281
        %v285 = vrsqrt.pop %v235
        %v286 = vmul.f32 %v235, %v285
        %vm287 = vcmp.eq.f32.partialorder %v235, inf
        %v288 = vsel %vm287, %v235, %v286
        %vm289 = vcmp.eq.f32.partialorder %v235, 0.0
        %v290 = vand.u32 %v235, 2147483648
        %v291 = vsel %vm289, %v290, %v288
        %v292 = vld [vmem:[%s195] sm:$0xff]
        %v293 = vld [vmem:[%s195 + $0x8] sm:$0xff]
        %v294 = vld [vmem:[%s195 + $0x10] sm:$0xff]
        %v295 = vld [vmem:[%s195 + $0x18] sm:$0xff]
        %s297 = vtos %v292
        %v298 = vstv %s297
        %s301 = vtos %v293
        %v302 = vstv %s301
        %s305 = vtos %v294
        %v306 = vstv %s305
        %s309 = vtos %v295
        %v310 = vstv %s309
        %v312 = vmul.f32 %v298, %v242
        %v313 = vmul.f32 %v298, %v249
        %v314 = vmul.f32 %v302, %v256
        %v315 = vmul.f32 %v302, %v263
        %v316 = vmul.f32 %v306, %v270
        %v317 = vmul.f32 %v306, %v277
        %v318 = vmul.f32 %v310, %v284
        %v319 = vmul.f32 %v310, %v291
        %vm320 = vcmask 72704
        %v321 = vsel %vm320, %v312, 0.0
        %v322 = vsel %vm320, %v314, 0.0
        %v323 = vadd.f32 %v321, %v322
        %v324 = vsel %vm320, %v316, 0.0
        %v325 = vadd.f32 %v323, %v324
        %v326 = vsel %vm320, %v318, 0.0
        %v327 = vadd.f32 %v325, %v326
        %vm328 = vcmask 65536
        %v329 = vsel %vm328, %v313, 0.0
        %v330 = vsel %vm328, %v315, 0.0
        %v331 = vadd.f32 %v329, %v330
        %v332 = vsel %vm328, %v317, 0.0
        %v333 = vadd.f32 %v331, %v332
        %v334 = vsel %vm328, %v319, 0.0
        %v335 = vadd.f32 %v333, %v334
        %v336 = vadd.f32 %v327, 0.0
        %v337 = vadd.f32 %v335, 0.0
        %338 = vrot.lane.b32.xlu0 %v292, 127
        %v339 = vpop.permute.xlu0 %338
        %340 = vrot.lane.b32.xlu0 %v293, 127
        %v341 = vpop.permute.xlu0 %340
        %342 = vrot.lane.b32.xlu0 %v294, 127
        %v343 = vpop.permute.xlu0 %342
        %344 = vrot.lane.b32.xlu0 %v295, 127
        %v345 = vpop.permute.xlu0 %344
        %s346 = vtos %v339
        %v347 = vstv %s346
        %s349 = vtos %v341
        %v350 = vstv %s349
        %s352 = vtos %v343
        %v353 = vstv %s352
        %s355 = vtos %v345
        %v356 = vstv %s355
        %v358 = vmul.f32 %v347, %v242
        %v359 = vmul.f32 %v347, %v249
        %v360 = vmul.f32 %v350, %v256
        %v361 = vmul.f32 %v350, %v263
        %v362 = vmul.f32 %v353, %v270
        %v363 = vmul.f32 %v353, %v277
        %v364 = vmul.f32 %v356, %v284
        %v365 = vmul.f32 %v356, %v291
        %vm366 = vcmask 80904
        %v367 = vsel %vm366, %v358, 0.0
        %v368 = vsel %vm366, %v360, 0.0
        %v369 = vadd.f32 %v367, %v368
        %v370 = vsel %vm366, %v362, 0.0
        %v371 = vadd.f32 %v369, %v370
        %v372 = vsel %vm366, %v364, 0.0
        %v373 = vadd.f32 %v371, %v372
        %vm374 = vcmask 73736
        %v375 = vsel %vm374, %v359, 0.0
        %v376 = vsel %vm374, %v361, 0.0
        %v377 = vadd.f32 %v375, %v376
        %v378 = vsel %vm374, %v363, 0.0
        %v379 = vadd.f32 %v377, %v378
        %v380 = vsel %vm374, %v365, 0.0
        %v381 = vadd.f32 %v379, %v380
        %384 = vrot.lane.b32.xlu0 %v373, 127
        %v385 = vpop.permute.xlu0 %384
        %386 = vrot.lane.b32.xlu0 %v381, 127
        %v387 = vpop.permute.xlu0 %386
        %v390 = vadd.f32 %v336, %v385
        %v391 = vadd.f32 %v337, %v387
        %392 = vrot.lane.b32.xlu0 %v292, 126
        %v393 = vpop.permute.xlu0 %392
        %394 = vrot.lane.b32.xlu0 %v293, 126
        %v395 = vpop.permute.xlu0 %394
        %396 = vrot.lane.b32.xlu0 %v294, 126
        %v397 = vpop.permute.xlu0 %396
        %398 = vrot.lane.b32.xlu0 %v295, 126
        %v399 = vpop.permute.xlu0 %398
        %s400 = vtos %v393
        %v401 = vstv %s400
        %s403 = vtos %v395
        %v404 = vstv %s403
        %s406 = vtos %v397
        %v407 = vstv %s406
        %s409 = vtos %v399
        %v410 = vstv %s409
        %v412 = vmul.f32 %v401, %v242
        %v413 = vmul.f32 %v401, %v249
        %v414 = vmul.f32 %v404, %v256
        %v415 = vmul.f32 %v404, %v263
        %v416 = vmul.f32 %v407, %v270
        %v417 = vmul.f32 %v407, %v277
        %v418 = vmul.f32 %v410, %v284
        %v419 = vmul.f32 %v410, %v291
        %vm420 = vcmask 89104
        %v421 = vsel %vm420, %v412, 0.0
        %v422 = vsel %vm420, %v414, 0.0
        %v423 = vadd.f32 %v421, %v422
        %v424 = vsel %vm420, %v416, 0.0
        %v425 = vadd.f32 %v423, %v424
        %v426 = vsel %vm420, %v418, 0.0
        %v427 = vadd.f32 %v425, %v426
        %vm428 = vcmask 81936
        %v429 = vsel %vm428, %v413, 0.0
        %v430 = vsel %vm428, %v415, 0.0
        %v431 = vadd.f32 %v429, %v430
        %v432 = vsel %vm428, %v417, 0.0
        %v433 = vadd.f32 %v431, %v432
        %v434 = vsel %vm428, %v419, 0.0
        %v435 = vadd.f32 %v433, %v434
        %438 = vrot.lane.b32.xlu0 %v427, 126
        %v439 = vpop.permute.xlu0 %438
        %440 = vrot.lane.b32.xlu0 %v435, 126
        %v441 = vpop.permute.xlu0 %440
        %v444 = vadd.f32 %v390, %v439
        %v445 = vadd.f32 %v391, %v441
        %446 = vrot.lane.b32.xlu0 %v292, 125
        %v447 = vpop.permute.xlu0 %446
        %448 = vrot.lane.b32.xlu0 %v293, 125
        %v449 = vpop.permute.xlu0 %448
        %450 = vrot.lane.b32.xlu0 %v294, 125
        %v451 = vpop.permute.xlu0 %450
        %452 = vrot.lane.b32.xlu0 %v295, 125
        %v453 = vpop.permute.xlu0 %452
        %s454 = vtos %v447
        %v455 = vstv %s454
        %s457 = vtos %v449
        %v458 = vstv %s457
        %s460 = vtos %v451
        %v461 = vstv %s460
        %s463 = vtos %v453
        %v464 = vstv %s463
        %v466 = vmul.f32 %v455, %v242
        %v467 = vmul.f32 %v455, %v249
        %v468 = vmul.f32 %v458, %v256
        %v469 = vmul.f32 %v458, %v263
        %v470 = vmul.f32 %v461, %v270
        %v471 = vmul.f32 %v461, %v277
        %v472 = vmul.f32 %v464, %v284
        %v473 = vmul.f32 %v464, %v291
        %vm474 = vcmask 97304
        %v475 = vsel %vm474, %v466, 0.0
        %v476 = vsel %vm474, %v468, 0.0
        %v477 = vadd.f32 %v475, %v476
        %v478 = vsel %vm474, %v470, 0.0
        %v479 = vadd.f32 %v477, %v478
        %v480 = vsel %vm474, %v472, 0.0
        %v481 = vadd.f32 %v479, %v480
        %vm482 = vcmask 90136
        %v483 = vsel %vm482, %v467, 0.0
        %v484 = vsel %vm482, %v469, 0.0
        %v485 = vadd.f32 %v483, %v484
        %v486 = vsel %vm482, %v471, 0.0
        %v487 = vadd.f32 %v485, %v486
        %v488 = vsel %vm482, %v473, 0.0
        %v489 = vadd.f32 %v487, %v488
        %492 = vrot.lane.b32.xlu0 %v481, 125
        %v493 = vpop.permute.xlu0 %492
        %494 = vrot.lane.b32.xlu0 %v489, 125
        %v495 = vpop.permute.xlu0 %494
        %v498 = vadd.f32 %v444, %v493
        %v499 = vadd.f32 %v445, %v495
        %500 = vrot.lane.b32.xlu0 %v292, 124
        %v501 = vpop.permute.xlu0 %500
        %502 = vrot.lane.b32.xlu0 %v293, 124
        %v503 = vpop.permute.xlu0 %502
        %504 = vrot.lane.b32.xlu0 %v294, 124
        %v505 = vpop.permute.xlu0 %504
        %506 = vrot.lane.b32.xlu0 %v295, 124
        %v507 = vpop.permute.xlu0 %506
        %s508 = vtos %v501
        %v509 = vstv %s508
        %s511 = vtos %v503
        %v512 = vstv %s511
        %s514 = vtos %v505
        %v515 = vstv %s514
        %s517 = vtos %v507
        %v518 = vstv %s517
        %v520 = vmul.f32 %v509, %v242
        %v521 = vmul.f32 %v509, %v249
        %v522 = vmul.f32 %v512, %v256
        %v523 = vmul.f32 %v512, %v263
        %v524 = vmul.f32 %v515, %v270
        %v525 = vmul.f32 %v515, %v277
        %v526 = vmul.f32 %v518, %v284
        %v527 = vmul.f32 %v518, %v291
        %vm528 = vcmask 105504
        %v529 = vsel %vm528, %v520, 0.0
        %v530 = vsel %vm528, %v522, 0.0
        %v531 = vadd.f32 %v529, %v530
        %v532 = vsel %vm528, %v524, 0.0
        %v533 = vadd.f32 %v531, %v532
        %v534 = vsel %vm528, %v526, 0.0
        %v535 = vadd.f32 %v533, %v534
        %vm536 = vcmask 98336
        %v537 = vsel %vm536, %v521, 0.0
        %v538 = vsel %vm536, %v523, 0.0
        %v539 = vadd.f32 %v537, %v538
        %v540 = vsel %vm536, %v525, 0.0
        %v541 = vadd.f32 %v539, %v540
        %v542 = vsel %vm536, %v527, 0.0
        %v543 = vadd.f32 %v541, %v542
        %546 = vrot.lane.b32.xlu0 %v535, 124
        %v547 = vpop.permute.xlu0 %546
        %548 = vrot.lane.b32.xlu0 %v543, 124
        %v549 = vpop.permute.xlu0 %548
        %v552 = vadd.f32 %v498, %v547
        %v553 = vadd.f32 %v499, %v549
        %554 = vrot.lane.b32.xlu0 %v292, 123
        %v555 = vpop.permute.xlu0 %554
        %556 = vrot.lane.b32.xlu0 %v293, 123
        %v557 = vpop.permute.xlu0 %556
        %558 = vrot.lane.b32.xlu0 %v294, 123
        %v559 = vpop.permute.xlu0 %558
        %560 = vrot.lane.b32.xlu0 %v295, 123
        %v561 = vpop.permute.xlu0 %560
        %s562 = vtos %v555
        %v563 = vstv %s562
        %s565 = vtos %v557
        %v566 = vstv %s565
        %s568 = vtos %v559
        %v569 = vstv %s568
        %s571 = vtos %v561
        %v572 = vstv %s571
        %v574 = vmul.f32 %v563, %v242
        %v575 = vmul.f32 %v563, %v249
        %v576 = vmul.f32 %v566, %v256
        %v577 = vmul.f32 %v566, %v263
        %v578 = vmul.f32 %v569, %v270
        %v579 = vmul.f32 %v569, %v277
        %v580 = vmul.f32 %v572, %v284
        %v581 = vmul.f32 %v572, %v291
        %vm582 = vcmask 113704
        %v583 = vsel %vm582, %v574, 0.0
        %v584 = vsel %vm582, %v576, 0.0
        %v585 = vadd.f32 %v583, %v584
        %v586 = vsel %vm582, %v578, 0.0
        %v587 = vadd.f32 %v585, %v586
        %v588 = vsel %vm582, %v580, 0.0
        %v589 = vadd.f32 %v587, %v588
        %vm590 = vcmask 106536
        %v591 = vsel %vm590, %v575, 0.0
        %v592 = vsel %vm590, %v577, 0.0
        %v593 = vadd.f32 %v591, %v592
        %v594 = vsel %vm590, %v579, 0.0
        %v595 = vadd.f32 %v593, %v594
        %v596 = vsel %vm590, %v581, 0.0
        %v597 = vadd.f32 %v595, %v596
        %600 = vrot.lane.b32.xlu0 %v589, 123
        %v601 = vpop.permute.xlu0 %600
        %602 = vrot.lane.b32.xlu0 %v597, 123
        %v603 = vpop.permute.xlu0 %602
        %v606 = vadd.f32 %v552, %v601
        %v607 = vadd.f32 %v553, %v603
        %608 = vrot.lane.b32.xlu0 %v292, 122
        %v609 = vpop.permute.xlu0 %608
        %610 = vrot.lane.b32.xlu0 %v293, 122
        %v611 = vpop.permute.xlu0 %610
        %612 = vrot.lane.b32.xlu0 %v294, 122
        %v613 = vpop.permute.xlu0 %612
        %614 = vrot.lane.b32.xlu0 %v295, 122
        %v615 = vpop.permute.xlu0 %614
        %s616 = vtos %v609
        %v617 = vstv %s616
        %s619 = vtos %v611
        %v620 = vstv %s619
        %s622 = vtos %v613
        %v623 = vstv %s622
        %s625 = vtos %v615
        %v626 = vstv %s625
        %v628 = vmul.f32 %v617, %v242
        %v629 = vmul.f32 %v617, %v249
        %v630 = vmul.f32 %v620, %v256
        %v631 = vmul.f32 %v620, %v263
        %v632 = vmul.f32 %v623, %v270
        %v633 = vmul.f32 %v623, %v277
        %v634 = vmul.f32 %v626, %v284
        %v635 = vmul.f32 %v626, %v291
        %vm636 = vcmask 121904
        %v637 = vsel %vm636, %v628, 0.0
        %v638 = vsel %vm636, %v630, 0.0
        %v639 = vadd.f32 %v637, %v638
        %v640 = vsel %vm636, %v632, 0.0
        %v641 = vadd.f32 %v639, %v640
        %v642 = vsel %vm636, %v634, 0.0
        %v643 = vadd.f32 %v641, %v642
        %vm644 = vcmask 114736
        %v645 = vsel %vm644, %v629, 0.0
        %v646 = vsel %vm644, %v631, 0.0
        %v647 = vadd.f32 %v645, %v646
        %v648 = vsel %vm644, %v633, 0.0
        %v649 = vadd.f32 %v647, %v648
        %v650 = vsel %vm644, %v635, 0.0
        %v651 = vadd.f32 %v649, %v650
        %654 = vrot.lane.b32.xlu0 %v643, 122
        %v655 = vpop.permute.xlu0 %654
        %656 = vrot.lane.b32.xlu0 %v651, 122
        %v657 = vpop.permute.xlu0 %656
        %v660 = vadd.f32 %v606, %v655
        %v661 = vadd.f32 %v607, %v657
        %662 = vrot.lane.b32.xlu0 %v292, 121
        %v663 = vpop.permute.xlu0 %662
        %664 = vrot.lane.b32.xlu0 %v293, 121
        %v665 = vpop.permute.xlu0 %664
        %666 = vrot.lane.b32.xlu0 %v294, 121
        %v667 = vpop.permute.xlu0 %666
        %668 = vrot.lane.b32.xlu0 %v295, 121
        %v669 = vpop.permute.xlu0 %668
        %s670 = vtos %v663
        %v671 = vstv %s670
        %s673 = vtos %v665
        %v674 = vstv %s673
        %s676 = vtos %v667
        %v677 = vstv %s676
        %s679 = vtos %v669
        %v680 = vstv %s679
        %v682 = vmul.f32 %v671, %v242
        %v683 = vmul.f32 %v671, %v249
        %v684 = vmul.f32 %v674, %v256
        %v685 = vmul.f32 %v674, %v263
        %v686 = vmul.f32 %v677, %v270
        %v687 = vmul.f32 %v677, %v277
        %v688 = vmul.f32 %v680, %v284
        %v689 = vmul.f32 %v680, %v291
        %vm690 = vcmask 130104
        %v691 = vsel %vm690, %v682, 0.0
        %v692 = vsel %vm690, %v684, 0.0
        %v693 = vadd.f32 %v691, %v692
        %v694 = vsel %vm690, %v686, 0.0
        %v695 = vadd.f32 %v693, %v694
        %v696 = vsel %vm690, %v688, 0.0
        %v697 = vadd.f32 %v695, %v696
        %vm698 = vcmask 122936
        %v699 = vsel %vm698, %v683, 0.0
        %v700 = vsel %vm698, %v685, 0.0
        %v701 = vadd.f32 %v699, %v700
        %v702 = vsel %vm698, %v687, 0.0
        %v703 = vadd.f32 %v701, %v702
        %v704 = vsel %vm698, %v689, 0.0
        %v705 = vadd.f32 %v703, %v704
        %708 = vrot.lane.b32.xlu0 %v697, 121
        %v709 = vpop.permute.xlu0 %708
        %710 = vrot.lane.b32.xlu0 %v705, 121
        %v711 = vpop.permute.xlu0 %710
        %v714 = vadd.f32 %v660, %v709
        %v715 = vadd.f32 %v661, %v711
        %v716 = vrot.slane %v292, 1
        %v717 = vrot.slane %v293, 1
        %v718 = vrot.slane %v294, 1
        %v719 = vrot.slane %v295, 1
        %s720 = vtos %v716
        %v721 = vstv %s720
        %s723 = vtos %v717
        %v724 = vstv %s723
        %s726 = vtos %v718
        %v727 = vstv %s726
        %s729 = vtos %v719
        %v730 = vstv %s729
        %v732 = vmul.f32 %v721, %v242
        %v733 = vmul.f32 %v721, %v249
        %v734 = vmul.f32 %v724, %v256
        %v735 = vmul.f32 %v724, %v263
        %v736 = vmul.f32 %v727, %v270
        %v737 = vmul.f32 %v727, %v277
        %v738 = vmul.f32 %v730, %v284
        %v739 = vmul.f32 %v730, %v291
        %vm740 = vcmask 72705
        %v741 = vsel %vm740, %v732, 0.0
        %v742 = vsel %vm740, %v734, 0.0
        %v743 = vadd.f32 %v741, %v742
        %v744 = vsel %vm740, %v736, 0.0
        %v745 = vadd.f32 %v743, %v744
        %v746 = vsel %vm740, %v738, 0.0
        %v747 = vadd.f32 %v745, %v746
        %vm748 = vcmask 66560
        %v749 = vsel %vm748, %v733, 0.0
        %v750 = vsel %vm748, %v735, 0.0
        %v751 = vadd.f32 %v749, %v750
        %v752 = vsel %vm748, %v737, 0.0
        %v753 = vadd.f32 %v751, %v752
        %v754 = vsel %vm748, %v739, 0.0
        %v755 = vadd.f32 %v753, %v754
        %vm758 = vcmask 1046528
        %v759 = vrot.slane %v747, 1
        %v760 = vrot.slane %v755, 1
        %v761 = vsel %vm758, %v759, %v760
        %v764 = vadd.f32 %v714, %v761
        %v765 = vadd.f32 %v715, %v760
        %766 = vrot.lane.b32.xlu0 %v716, 127
        %v767 = vpop.permute.xlu0 %766
        %768 = vrot.lane.b32.xlu0 %v717, 127
        %v769 = vpop.permute.xlu0 %768
        %770 = vrot.lane.b32.xlu0 %v718, 127
        %v771 = vpop.permute.xlu0 %770
        %772 = vrot.lane.b32.xlu0 %v719, 127
        %v773 = vpop.permute.xlu0 %772
        %s774 = vtos %v767
        %v775 = vstv %s774
        %s777 = vtos %v769
        %v778 = vstv %s777
        %s780 = vtos %v771
        %v781 = vstv %s780
        %s783 = vtos %v773
        %v784 = vstv %s783
        %v786 = vmul.f32 %v775, %v242
        %v787 = vmul.f32 %v775, %v249
        %v788 = vmul.f32 %v778, %v256
        %v789 = vmul.f32 %v778, %v263
        %v790 = vmul.f32 %v781, %v270
        %v791 = vmul.f32 %v781, %v277
        %v792 = vmul.f32 %v784, %v284
        %v793 = vmul.f32 %v784, %v291
        %vm794 = vcmask 80905
        %v795 = vsel %vm794, %v786, 0.0
        %v796 = vsel %vm794, %v788, 0.0
        %v797 = vadd.f32 %v795, %v796
        %v798 = vsel %vm794, %v790, 0.0
        %v799 = vadd.f32 %v797, %v798
        %v800 = vsel %vm794, %v792, 0.0
        %v801 = vadd.f32 %v799, %v800
        %vm802 = vcmask 74760
        %v803 = vsel %vm802, %v787, 0.0
        %v804 = vsel %vm802, %v789, 0.0
        %v805 = vadd.f32 %v803, %v804
        %v806 = vsel %vm802, %v791, 0.0
        %v807 = vadd.f32 %v805, %v806
        %v808 = vsel %vm802, %v793, 0.0
        %v809 = vadd.f32 %v807, %v808
        %v812 = vrot.slane %v801, 1
        %v813 = vrot.slane %v809, 1
        %v814 = vsel %vm758, %v812, %v813
        %815 = vrot.lane.b32.xlu0 %v814, 127
        %v816 = vpop.permute.xlu0 %815
        %817 = vrot.lane.b32.xlu0 %v813, 127
        %v818 = vpop.permute.xlu0 %817
        %v821 = vadd.f32 %v764, %v816
        %v822 = vadd.f32 %v765, %v818
        %823 = vrot.lane.b32.xlu0 %v716, 126
        %v824 = vpop.permute.xlu0 %823
        %825 = vrot.lane.b32.xlu0 %v717, 126
        %v826 = vpop.permute.xlu0 %825
        %827 = vrot.lane.b32.xlu0 %v718, 126
        %v828 = vpop.permute.xlu0 %827
        %829 = vrot.lane.b32.xlu0 %v719, 126
        %v830 = vpop.permute.xlu0 %829
        %s831 = vtos %v824
        %v832 = vstv %s831
        %s834 = vtos %v826
        %v835 = vstv %s834
        %s837 = vtos %v828
        %v838 = vstv %s837
        %s840 = vtos %v830
        %v841 = vstv %s840
        %v843 = vmul.f32 %v832, %v242
        %v844 = vmul.f32 %v832, %v249
        %v845 = vmul.f32 %v835, %v256
        %v846 = vmul.f32 %v835, %v263
        %v847 = vmul.f32 %v838, %v270
        %v848 = vmul.f32 %v838, %v277
        %v849 = vmul.f32 %v841, %v284
        %v850 = vmul.f32 %v841, %v291
        %vm851 = vcmask 89105
        %v852 = vsel %vm851, %v843, 0.0
        %v853 = vsel %vm851, %v845, 0.0
        %v854 = vadd.f32 %v852, %v853
        %v855 = vsel %vm851, %v847, 0.0
        %v856 = vadd.f32 %v854, %v855
        %v857 = vsel %vm851, %v849, 0.0
        %v858 = vadd.f32 %v856, %v857
        %vm859 = vcmask 82960
        %v860 = vsel %vm859, %v844, 0.0
        %v861 = vsel %vm859, %v846, 0.0
        %v862 = vadd.f32 %v860, %v861
        %v863 = vsel %vm859, %v848, 0.0
        %v864 = vadd.f32 %v862, %v863
        %v865 = vsel %vm859, %v850, 0.0
        %v866 = vadd.f32 %v864, %v865
        %v869 = vrot.slane %v858, 1
        %v870 = vrot.slane %v866, 1
        %v871 = vsel %vm758, %v869, %v870
        %872 = vrot.lane.b32.xlu0 %v871, 126
        %v873 = vpop.permute.xlu0 %872
        %874 = vrot.lane.b32.xlu0 %v870, 126
        %v875 = vpop.permute.xlu0 %874
        %v878 = vadd.f32 %v821, %v873
        %v879 = vadd.f32 %v822, %v875
        %880 = vrot.lane.b32.xlu0 %v716, 125
        %v881 = vpop.permute.xlu0 %880
        %882 = vrot.lane.b32.xlu0 %v717, 125
        %v883 = vpop.permute.xlu0 %882
        %884 = vrot.lane.b32.xlu0 %v718, 125
        %v885 = vpop.permute.xlu0 %884
        %886 = vrot.lane.b32.xlu0 %v719, 125
        %v887 = vpop.permute.xlu0 %886
        %s888 = vtos %v881
        %v889 = vstv %s888
        %s891 = vtos %v883
        %v892 = vstv %s891
        %s894 = vtos %v885
        %v895 = vstv %s894
        %s897 = vtos %v887
        %v898 = vstv %s897
        %v900 = vmul.f32 %v889, %v242
        %v901 = vmul.f32 %v889, %v249
        %v902 = vmul.f32 %v892, %v256
        %v903 = vmul.f32 %v892, %v263
        %v904 = vmul.f32 %v895, %v270
        %v905 = vmul.f32 %v895, %v277
        %v906 = vmul.f32 %v898, %v284
        %v907 = vmul.f32 %v898, %v291
        %vm908 = vcmask 97305
        %v909 = vsel %vm908, %v900, 0.0
        %v910 = vsel %vm908, %v902, 0.0
        %v911 = vadd.f32 %v909, %v910
        %v912 = vsel %vm908, %v904, 0.0
        %v913 = vadd.f32 %v911, %v912
        %v914 = vsel %vm908, %v906, 0.0
        %v915 = vadd.f32 %v913, %v914
        %vm916 = vcmask 91160
        %v917 = vsel %vm916, %v901, 0.0
        %v918 = vsel %vm916, %v903, 0.0
        %v919 = vadd.f32 %v917, %v918
        %v920 = vsel %vm916, %v905, 0.0
        %v921 = vadd.f32 %v919, %v920
        %v922 = vsel %vm916, %v907, 0.0
        %v923 = vadd.f32 %v921, %v922
        %v926 = vrot.slane %v915, 1
        %v927 = vrot.slane %v923, 1
        %v928 = vsel %vm758, %v926, %v927
        %929 = vrot.lane.b32.xlu0 %v928, 125
        %v930 = vpop.permute.xlu0 %929
        %931 = vrot.lane.b32.xlu0 %v927, 125
        %v932 = vpop.permute.xlu0 %931
        %v935 = vadd.f32 %v878, %v930
        %v936 = vadd.f32 %v879, %v932
        %937 = vrot.lane.b32.xlu0 %v716, 124
        %v938 = vpop.permute.xlu0 %937
        %939 = vrot.lane.b32.xlu0 %v717, 124
        %v940 = vpop.permute.xlu0 %939
        %941 = vrot.lane.b32.xlu0 %v718, 124
        %v942 = vpop.permute.xlu0 %941
        %943 = vrot.lane.b32.xlu0 %v719, 124
        %v944 = vpop.permute.xlu0 %943
        %s945 = vtos %v938
        %v946 = vstv %s945
        %s948 = vtos %v940
        %v949 = vstv %s948
        %s951 = vtos %v942
        %v952 = vstv %s951
        %s954 = vtos %v944
        %v955 = vstv %s954
        %v957 = vmul.f32 %v946, %v242
        %v958 = vmul.f32 %v946, %v249
        %v959 = vmul.f32 %v949, %v256
        %v960 = vmul.f32 %v949, %v263
        %v961 = vmul.f32 %v952, %v270
        %v962 = vmul.f32 %v952, %v277
        %v963 = vmul.f32 %v955, %v284
        %v964 = vmul.f32 %v955, %v291
        %vm965 = vcmask 105505
        %v966 = vsel %vm965, %v957, 0.0
        %v967 = vsel %vm965, %v959, 0.0
        %v968 = vadd.f32 %v966, %v967
        %v969 = vsel %vm965, %v961, 0.0
        %v970 = vadd.f32 %v968, %v969
        %v971 = vsel %vm965, %v963, 0.0
        %v972 = vadd.f32 %v970, %v971
        %vm973 = vcmask 99360
        %v974 = vsel %vm973, %v958, 0.0
        %v975 = vsel %vm973, %v960, 0.0
        %v976 = vadd.f32 %v974, %v975
        %v977 = vsel %vm973, %v962, 0.0
        %v978 = vadd.f32 %v976, %v977
        %v979 = vsel %vm973, %v964, 0.0
        %v980 = vadd.f32 %v978, %v979
        %v983 = vrot.slane %v972, 1
        %v984 = vrot.slane %v980, 1
        %v985 = vsel %vm758, %v983, %v984
        %986 = vrot.lane.b32.xlu0 %v985, 124
        %v987 = vpop.permute.xlu0 %986
        %988 = vrot.lane.b32.xlu0 %v984, 124
        %v989 = vpop.permute.xlu0 %988
        %v992 = vadd.f32 %v935, %v987
        %v993 = vadd.f32 %v936, %v989
        %994 = vrot.lane.b32.xlu0 %v716, 123
        %v995 = vpop.permute.xlu0 %994
        %996 = vrot.lane.b32.xlu0 %v717, 123
        %v997 = vpop.permute.xlu0 %996
        %998 = vrot.lane.b32.xlu0 %v718, 123
        %v999 = vpop.permute.xlu0 %998
        %1000 = vrot.lane.b32.xlu0 %v719, 123
        %v1001 = vpop.permute.xlu0 %1000
        %s1002 = vtos %v995
        %v1003 = vstv %s1002
        %s1005 = vtos %v997
        %v1006 = vstv %s1005
        %s1008 = vtos %v999
        %v1009 = vstv %s1008
        %s1011 = vtos %v1001
        %v1012 = vstv %s1011
        %v1014 = vmul.f32 %v1003, %v242
        %v1015 = vmul.f32 %v1003, %v249
        %v1016 = vmul.f32 %v1006, %v256
        %v1017 = vmul.f32 %v1006, %v263
        %v1018 = vmul.f32 %v1009, %v270
        %v1019 = vmul.f32 %v1009, %v277
        %v1020 = vmul.f32 %v1012, %v284
        %v1021 = vmul.f32 %v1012, %v291
        %vm1022 = vcmask 113705
        %v1023 = vsel %vm1022, %v1014, 0.0
        %v1024 = vsel %vm1022, %v1016, 0.0
        %v1025 = vadd.f32 %v1023, %v1024
        %v1026 = vsel %vm1022, %v1018, 0.0
        %v1027 = vadd.f32 %v1025, %v1026
        %v1028 = vsel %vm1022, %v1020, 0.0
        %v1029 = vadd.f32 %v1027, %v1028
        %vm1030 = vcmask 107560
        %v1031 = vsel %vm1030, %v1015, 0.0
        %v1032 = vsel %vm1030, %v1017, 0.0
        %v1033 = vadd.f32 %v1031, %v1032
        %v1034 = vsel %vm1030, %v1019, 0.0
        %v1035 = vadd.f32 %v1033, %v1034
        %v1036 = vsel %vm1030, %v1021, 0.0
        %v1037 = vadd.f32 %v1035, %v1036
        %v1040 = vrot.slane %v1029, 1
        %v1041 = vrot.slane %v1037, 1
        %v1042 = vsel %vm758, %v1040, %v1041
        %1043 = vrot.lane.b32.xlu0 %v1042, 123
        %v1044 = vpop.permute.xlu0 %1043
        %1045 = vrot.lane.b32.xlu0 %v1041, 123
        %v1046 = vpop.permute.xlu0 %1045
        %v1049 = vadd.f32 %v992, %v1044
        %v1050 = vadd.f32 %v993, %v1046
        %1051 = vrot.lane.b32.xlu0 %v716, 122
        %v1052 = vpop.permute.xlu0 %1051
        %1053 = vrot.lane.b32.xlu0 %v717, 122
        %v1054 = vpop.permute.xlu0 %1053
        %1055 = vrot.lane.b32.xlu0 %v718, 122
        %v1056 = vpop.permute.xlu0 %1055
        %1057 = vrot.lane.b32.xlu0 %v719, 122
        %v1058 = vpop.permute.xlu0 %1057
        %s1059 = vtos %v1052
        %v1060 = vstv %s1059
        %s1062 = vtos %v1054
        %v1063 = vstv %s1062
        %s1065 = vtos %v1056
        %v1066 = vstv %s1065
        %s1068 = vtos %v1058
        %v1069 = vstv %s1068
        %v1071 = vmul.f32 %v1060, %v242
        %v1072 = vmul.f32 %v1060, %v249
        %v1073 = vmul.f32 %v1063, %v256
        %v1074 = vmul.f32 %v1063, %v263
        %v1075 = vmul.f32 %v1066, %v270
        %v1076 = vmul.f32 %v1066, %v277
        %v1077 = vmul.f32 %v1069, %v284
        %v1078 = vmul.f32 %v1069, %v291
        %vm1079 = vcmask 121905
        %v1080 = vsel %vm1079, %v1071, 0.0
        %v1081 = vsel %vm1079, %v1073, 0.0
        %v1082 = vadd.f32 %v1080, %v1081
        %v1083 = vsel %vm1079, %v1075, 0.0
        %v1084 = vadd.f32 %v1082, %v1083
        %v1085 = vsel %vm1079, %v1077, 0.0
        %v1086 = vadd.f32 %v1084, %v1085
        %vm1087 = vcmask 115760
        %v1088 = vsel %vm1087, %v1072, 0.0
        %v1089 = vsel %vm1087, %v1074, 0.0
        %v1090 = vadd.f32 %v1088, %v1089
        %v1091 = vsel %vm1087, %v1076, 0.0
        %v1092 = vadd.f32 %v1090, %v1091
        %v1093 = vsel %vm1087, %v1078, 0.0
        %v1094 = vadd.f32 %v1092, %v1093
        %v1097 = vrot.slane %v1086, 1
        %v1098 = vrot.slane %v1094, 1
        %v1099 = vsel %vm758, %v1097, %v1098
        %1100 = vrot.lane.b32.xlu0 %v1099, 122
        %v1101 = vpop.permute.xlu0 %1100
        %1102 = vrot.lane.b32.xlu0 %v1098, 122
        %v1103 = vpop.permute.xlu0 %1102
        %v1106 = vadd.f32 %v1049, %v1101
        %v1107 = vadd.f32 %v1050, %v1103
        %1108 = vrot.lane.b32.xlu0 %v716, 121
        %v1109 = vpop.permute.xlu0 %1108
        %1110 = vrot.lane.b32.xlu0 %v717, 121
        %v1111 = vpop.permute.xlu0 %1110
        %1112 = vrot.lane.b32.xlu0 %v718, 121
        %v1113 = vpop.permute.xlu0 %1112
        %1114 = vrot.lane.b32.xlu0 %v719, 121
        %v1115 = vpop.permute.xlu0 %1114
        %s1116 = vtos %v1109
        %v1117 = vstv %s1116
        %s1119 = vtos %v1111
        %v1120 = vstv %s1119
        %s1122 = vtos %v1113
        %v1123 = vstv %s1122
        %s1125 = vtos %v1115
        %v1126 = vstv %s1125
        %v1128 = vmul.f32 %v1117, %v242
        %v1129 = vmul.f32 %v1117, %v249
        %v1130 = vmul.f32 %v1120, %v256
        %v1131 = vmul.f32 %v1120, %v263
        %v1132 = vmul.f32 %v1123, %v270
        %v1133 = vmul.f32 %v1123, %v277
        %v1134 = vmul.f32 %v1126, %v284
        %v1135 = vmul.f32 %v1126, %v291
        %vm1136 = vcmask 130105
        %v1137 = vsel %vm1136, %v1128, 0.0
        %v1138 = vsel %vm1136, %v1130, 0.0
        %v1139 = vadd.f32 %v1137, %v1138
        %v1140 = vsel %vm1136, %v1132, 0.0
        %v1141 = vadd.f32 %v1139, %v1140
        %v1142 = vsel %vm1136, %v1134, 0.0
        %v1143 = vadd.f32 %v1141, %v1142
        %vm1144 = vcmask 123960
        %v1145 = vsel %vm1144, %v1129, 0.0
        %v1146 = vsel %vm1144, %v1131, 0.0
        %v1147 = vadd.f32 %v1145, %v1146
        %v1148 = vsel %vm1144, %v1133, 0.0
        %v1149 = vadd.f32 %v1147, %v1148
        %v1150 = vsel %vm1144, %v1135, 0.0
        %v1151 = vadd.f32 %v1149, %v1150
        %v1154 = vrot.slane %v1143, 1
        %v1155 = vrot.slane %v1151, 1
        %v1156 = vsel %vm758, %v1154, %v1155
        %1157 = vrot.lane.b32.xlu0 %v1156, 121
        %v1158 = vpop.permute.xlu0 %1157
        %1159 = vrot.lane.b32.xlu0 %v1155, 121
        %v1160 = vpop.permute.xlu0 %1159
        %v1163 = vadd.f32 %v1106, %v1158
        %v1164 = vadd.f32 %v1107, %v1160
        %v1165 = vrot.slane %v292, 2
        %v1166 = vrot.slane %v293, 2
        %v1167 = vrot.slane %v294, 2
        %v1168 = vrot.slane %v295, 2
        %s1169 = vtos %v1165
        %v1170 = vstv %s1169
        %s1172 = vtos %v1166
        %v1173 = vstv %s1172
        %s1175 = vtos %v1167
        %v1176 = vstv %s1175
        %s1178 = vtos %v1168
        %v1179 = vstv %s1178
        %v1181 = vmul.f32 %v1170, %v242
        %v1182 = vmul.f32 %v1170, %v249
        %v1183 = vmul.f32 %v1173, %v256
        %v1184 = vmul.f32 %v1173, %v263
        %v1185 = vmul.f32 %v1176, %v270
        %v1186 = vmul.f32 %v1176, %v277
        %v1187 = vmul.f32 %v1179, %v284
        %v1188 = vmul.f32 %v1179, %v291
        %vm1189 = vcmask 72706
        %v1190 = vsel %vm1189, %v1181, 0.0
        %v1191 = vsel %vm1189, %v1183, 0.0
        %v1192 = vadd.f32 %v1190, %v1191
        %v1193 = vsel %vm1189, %v1185, 0.0
        %v1194 = vadd.f32 %v1192, %v1193
        %v1195 = vsel %vm1189, %v1187, 0.0
        %v1196 = vadd.f32 %v1194, %v1195
        %vm1197 = vcmask 67584
        %v1198 = vsel %vm1197, %v1182, 0.0
        %v1199 = vsel %vm1197, %v1184, 0.0
        %v1200 = vadd.f32 %v1198, %v1199
        %v1201 = vsel %vm1197, %v1186, 0.0
        %v1202 = vadd.f32 %v1200, %v1201
        %v1203 = vsel %vm1197, %v1188, 0.0
        %v1204 = vadd.f32 %v1202, %v1203
        %vm1207 = vcmask 1045504
        %v1208 = vrot.slane %v1196, 2
        %v1209 = vrot.slane %v1204, 2
        %v1210 = vsel %vm1207, %v1208, %v1209
        %v1213 = vadd.f32 %v1163, %v1210
        %v1214 = vadd.f32 %v1164, %v1209
        %1215 = vrot.lane.b32.xlu0 %v1165, 127
        %v1216 = vpop.permute.xlu0 %1215
        %1217 = vrot.lane.b32.xlu0 %v1166, 127
        %v1218 = vpop.permute.xlu0 %1217
        %1219 = vrot.lane.b32.xlu0 %v1167, 127
        %v1220 = vpop.permute.xlu0 %1219
        %1221 = vrot.lane.b32.xlu0 %v1168, 127
        %v1222 = vpop.permute.xlu0 %1221
        %s1223 = vtos %v1216
        %v1224 = vstv %s1223
        %s1226 = vtos %v1218
        %v1227 = vstv %s1226
        %s1229 = vtos %v1220
        %v1230 = vstv %s1229
        %s1232 = vtos %v1222
        %v1233 = vstv %s1232
        %v1235 = vmul.f32 %v1224, %v242
        %v1236 = vmul.f32 %v1224, %v249
        %v1237 = vmul.f32 %v1227, %v256
        %v1238 = vmul.f32 %v1227, %v263
        %v1239 = vmul.f32 %v1230, %v270
        %v1240 = vmul.f32 %v1230, %v277
        %v1241 = vmul.f32 %v1233, %v284
        %v1242 = vmul.f32 %v1233, %v291
        %vm1243 = vcmask 80906
        %v1244 = vsel %vm1243, %v1235, 0.0
        %v1245 = vsel %vm1243, %v1237, 0.0
        %v1246 = vadd.f32 %v1244, %v1245
        %v1247 = vsel %vm1243, %v1239, 0.0
        %v1248 = vadd.f32 %v1246, %v1247
        %v1249 = vsel %vm1243, %v1241, 0.0
        %v1250 = vadd.f32 %v1248, %v1249
        %vm1251 = vcmask 75784
        %v1252 = vsel %vm1251, %v1236, 0.0
        %v1253 = vsel %vm1251, %v1238, 0.0
        %v1254 = vadd.f32 %v1252, %v1253
        %v1255 = vsel %vm1251, %v1240, 0.0
        %v1256 = vadd.f32 %v1254, %v1255
        %v1257 = vsel %vm1251, %v1242, 0.0
        %v1258 = vadd.f32 %v1256, %v1257
        %v1261 = vrot.slane %v1250, 2
        %v1262 = vrot.slane %v1258, 2
        %v1263 = vsel %vm1207, %v1261, %v1262
        %1264 = vrot.lane.b32.xlu0 %v1263, 127
        %v1265 = vpop.permute.xlu0 %1264
        %1266 = vrot.lane.b32.xlu0 %v1262, 127
        %v1267 = vpop.permute.xlu0 %1266
        %v1270 = vadd.f32 %v1213, %v1265
        %v1271 = vadd.f32 %v1214, %v1267
        %1272 = vrot.lane.b32.xlu0 %v1165, 126
        %v1273 = vpop.permute.xlu0 %1272
        %1274 = vrot.lane.b32.xlu0 %v1166, 126
        %v1275 = vpop.permute.xlu0 %1274
        %1276 = vrot.lane.b32.xlu0 %v1167, 126
        %v1277 = vpop.permute.xlu0 %1276
        %1278 = vrot.lane.b32.xlu0 %v1168, 126
        %v1279 = vpop.permute.xlu0 %1278
        %s1280 = vtos %v1273
        %v1281 = vstv %s1280
        %s1283 = vtos %v1275
        %v1284 = vstv %s1283
        %s1286 = vtos %v1277
        %v1287 = vstv %s1286
        %s1289 = vtos %v1279
        %v1290 = vstv %s1289
        %v1292 = vmul.f32 %v1281, %v242
        %v1293 = vmul.f32 %v1281, %v249
        %v1294 = vmul.f32 %v1284, %v256
        %v1295 = vmul.f32 %v1284, %v263
        %v1296 = vmul.f32 %v1287, %v270
        %v1297 = vmul.f32 %v1287, %v277
        %v1298 = vmul.f32 %v1290, %v284
        %v1299 = vmul.f32 %v1290, %v291
        %vm1300 = vcmask 89106
        %v1301 = vsel %vm1300, %v1292, 0.0
        %v1302 = vsel %vm1300, %v1294, 0.0
        %v1303 = vadd.f32 %v1301, %v1302
        %v1304 = vsel %vm1300, %v1296, 0.0
        %v1305 = vadd.f32 %v1303, %v1304
        %v1306 = vsel %vm1300, %v1298, 0.0
        %v1307 = vadd.f32 %v1305, %v1306
        %vm1308 = vcmask 83984
        %v1309 = vsel %vm1308, %v1293, 0.0
        %v1310 = vsel %vm1308, %v1295, 0.0
        %v1311 = vadd.f32 %v1309, %v1310
        %v1312 = vsel %vm1308, %v1297, 0.0
        %v1313 = vadd.f32 %v1311, %v1312
        %v1314 = vsel %vm1308, %v1299, 0.0
        %v1315 = vadd.f32 %v1313, %v1314
        %v1318 = vrot.slane %v1307, 2
        %v1319 = vrot.slane %v1315, 2
        %v1320 = vsel %vm1207, %v1318, %v1319
        %1321 = vrot.lane.b32.xlu0 %v1320, 126
        %v1322 = vpop.permute.xlu0 %1321
        %1323 = vrot.lane.b32.xlu0 %v1319, 126
        %v1324 = vpop.permute.xlu0 %1323
        %v1327 = vadd.f32 %v1270, %v1322
        %v1328 = vadd.f32 %v1271, %v1324
        %1329 = vrot.lane.b32.xlu0 %v1165, 125
        %v1330 = vpop.permute.xlu0 %1329
        %1331 = vrot.lane.b32.xlu0 %v1166, 125
        %v1332 = vpop.permute.xlu0 %1331
        %1333 = vrot.lane.b32.xlu0 %v1167, 125
        %v1334 = vpop.permute.xlu0 %1333
        %1335 = vrot.lane.b32.xlu0 %v1168, 125
        %v1336 = vpop.permute.xlu0 %1335
        %s1337 = vtos %v1330
        %v1338 = vstv %s1337
        %s1340 = vtos %v1332
        %v1341 = vstv %s1340
        %s1343 = vtos %v1334
        %v1344 = vstv %s1343
        %s1346 = vtos %v1336
        %v1347 = vstv %s1346
        %v1349 = vmul.f32 %v1338, %v242
        %v1350 = vmul.f32 %v1338, %v249
        %v1351 = vmul.f32 %v1341, %v256
        %v1352 = vmul.f32 %v1341, %v263
        %v1353 = vmul.f32 %v1344, %v270
        %v1354 = vmul.f32 %v1344, %v277
        %v1355 = vmul.f32 %v1347, %v284
        %v1356 = vmul.f32 %v1347, %v291
        %vm1357 = vcmask 97306
        %v1358 = vsel %vm1357, %v1349, 0.0
        %v1359 = vsel %vm1357, %v1351, 0.0
        %v1360 = vadd.f32 %v1358, %v1359
        %v1361 = vsel %vm1357, %v1353, 0.0
        %v1362 = vadd.f32 %v1360, %v1361
        %v1363 = vsel %vm1357, %v1355, 0.0
        %v1364 = vadd.f32 %v1362, %v1363
        %vm1365 = vcmask 92184
        %v1366 = vsel %vm1365, %v1350, 0.0
        %v1367 = vsel %vm1365, %v1352, 0.0
        %v1368 = vadd.f32 %v1366, %v1367
        %v1369 = vsel %vm1365, %v1354, 0.0
        %v1370 = vadd.f32 %v1368, %v1369
        %v1371 = vsel %vm1365, %v1356, 0.0
        %v1372 = vadd.f32 %v1370, %v1371
        %v1375 = vrot.slane %v1364, 2
        %v1376 = vrot.slane %v1372, 2
        %v1377 = vsel %vm1207, %v1375, %v1376
        %1378 = vrot.lane.b32.xlu0 %v1377, 125
        %v1379 = vpop.permute.xlu0 %1378
        %1380 = vrot.lane.b32.xlu0 %v1376, 125
        %v1381 = vpop.permute.xlu0 %1380
        %v1384 = vadd.f32 %v1327, %v1379
        %v1385 = vadd.f32 %v1328, %v1381
        %1386 = vrot.lane.b32.xlu0 %v1165, 124
        %v1387 = vpop.permute.xlu0 %1386
        %1388 = vrot.lane.b32.xlu0 %v1166, 124
        %v1389 = vpop.permute.xlu0 %1388
        %1390 = vrot.lane.b32.xlu0 %v1167, 124
        %v1391 = vpop.permute.xlu0 %1390
        %1392 = vrot.lane.b32.xlu0 %v1168, 124
        %v1393 = vpop.permute.xlu0 %1392
        %s1394 = vtos %v1387
        %v1395 = vstv %s1394
        %s1397 = vtos %v1389
        %v1398 = vstv %s1397
        %s1400 = vtos %v1391
        %v1401 = vstv %s1400
        %s1403 = vtos %v1393
        %v1404 = vstv %s1403
        %v1406 = vmul.f32 %v1395, %v242
        %v1407 = vmul.f32 %v1395, %v249
        %v1408 = vmul.f32 %v1398, %v256
        %v1409 = vmul.f32 %v1398, %v263
        %v1410 = vmul.f32 %v1401, %v270
        %v1411 = vmul.f32 %v1401, %v277
        %v1412 = vmul.f32 %v1404, %v284
        %v1413 = vmul.f32 %v1404, %v291
        %vm1414 = vcmask 105506
        %v1415 = vsel %vm1414, %v1406, 0.0
        %v1416 = vsel %vm1414, %v1408, 0.0
        %v1417 = vadd.f32 %v1415, %v1416
        %v1418 = vsel %vm1414, %v1410, 0.0
        %v1419 = vadd.f32 %v1417, %v1418
        %v1420 = vsel %vm1414, %v1412, 0.0
        %v1421 = vadd.f32 %v1419, %v1420
        %vm1422 = vcmask 100384
        %v1423 = vsel %vm1422, %v1407, 0.0
        %v1424 = vsel %vm1422, %v1409, 0.0
        %v1425 = vadd.f32 %v1423, %v1424
        %v1426 = vsel %vm1422, %v1411, 0.0
        %v1427 = vadd.f32 %v1425, %v1426
        %v1428 = vsel %vm1422, %v1413, 0.0
        %v1429 = vadd.f32 %v1427, %v1428
        %v1432 = vrot.slane %v1421, 2
        %v1433 = vrot.slane %v1429, 2
        %v1434 = vsel %vm1207, %v1432, %v1433
        %1435 = vrot.lane.b32.xlu0 %v1434, 124
        %v1436 = vpop.permute.xlu0 %1435
        %1437 = vrot.lane.b32.xlu0 %v1433, 124
        %v1438 = vpop.permute.xlu0 %1437
        %v1441 = vadd.f32 %v1384, %v1436
        %v1442 = vadd.f32 %v1385, %v1438
        %1443 = vrot.lane.b32.xlu0 %v1165, 123
        %v1444 = vpop.permute.xlu0 %1443
        %1445 = vrot.lane.b32.xlu0 %v1166, 123
        %v1446 = vpop.permute.xlu0 %1445
        %1447 = vrot.lane.b32.xlu0 %v1167, 123
        %v1448 = vpop.permute.xlu0 %1447
        %1449 = vrot.lane.b32.xlu0 %v1168, 123
        %v1450 = vpop.permute.xlu0 %1449
        %s1451 = vtos %v1444
        %v1452 = vstv %s1451
        %s1454 = vtos %v1446
        %v1455 = vstv %s1454
        %s1457 = vtos %v1448
        %v1458 = vstv %s1457
        %s1460 = vtos %v1450
        %v1461 = vstv %s1460
        %v1463 = vmul.f32 %v1452, %v242
        %v1464 = vmul.f32 %v1452, %v249
        %v1465 = vmul.f32 %v1455, %v256
        %v1466 = vmul.f32 %v1455, %v263
        %v1467 = vmul.f32 %v1458, %v270
        %v1468 = vmul.f32 %v1458, %v277
        %v1469 = vmul.f32 %v1461, %v284
        %v1470 = vmul.f32 %v1461, %v291
        %vm1471 = vcmask 113706
        %v1472 = vsel %vm1471, %v1463, 0.0
        %v1473 = vsel %vm1471, %v1465, 0.0
        %v1474 = vadd.f32 %v1472, %v1473
        %v1475 = vsel %vm1471, %v1467, 0.0
        %v1476 = vadd.f32 %v1474, %v1475
        %v1477 = vsel %vm1471, %v1469, 0.0
        %v1478 = vadd.f32 %v1476, %v1477
        %vm1479 = vcmask 108584
        %v1480 = vsel %vm1479, %v1464, 0.0
        %v1481 = vsel %vm1479, %v1466, 0.0
        %v1482 = vadd.f32 %v1480, %v1481
        %v1483 = vsel %vm1479, %v1468, 0.0
        %v1484 = vadd.f32 %v1482, %v1483
        %v1485 = vsel %vm1479, %v1470, 0.0
        %v1486 = vadd.f32 %v1484, %v1485
        %v1489 = vrot.slane %v1478, 2
        %v1490 = vrot.slane %v1486, 2
        %v1491 = vsel %vm1207, %v1489, %v1490
        %1492 = vrot.lane.b32.xlu0 %v1491, 123
        %v1493 = vpop.permute.xlu0 %1492
        %1494 = vrot.lane.b32.xlu0 %v1490, 123
        %v1495 = vpop.permute.xlu0 %1494
        %v1498 = vadd.f32 %v1441, %v1493
        %v1499 = vadd.f32 %v1442, %v1495
        %1500 = vrot.lane.b32.xlu0 %v1165, 122
        %v1501 = vpop.permute.xlu0 %1500
        %1502 = vrot.lane.b32.xlu0 %v1166, 122
        %v1503 = vpop.permute.xlu0 %1502
        %1504 = vrot.lane.b32.xlu0 %v1167, 122
        %v1505 = vpop.permute.xlu0 %1504
        %1506 = vrot.lane.b32.xlu0 %v1168, 122
        %v1507 = vpop.permute.xlu0 %1506
        %s1508 = vtos %v1501
        %v1509 = vstv %s1508
        %s1511 = vtos %v1503
        %v1512 = vstv %s1511
        %s1514 = vtos %v1505
        %v1515 = vstv %s1514
        %s1517 = vtos %v1507
        %v1518 = vstv %s1517
        %v1520 = vmul.f32 %v1509, %v242
        %v1521 = vmul.f32 %v1509, %v249
        %v1522 = vmul.f32 %v1512, %v256
        %v1523 = vmul.f32 %v1512, %v263
        %v1524 = vmul.f32 %v1515, %v270
        %v1525 = vmul.f32 %v1515, %v277
        %v1526 = vmul.f32 %v1518, %v284
        %v1527 = vmul.f32 %v1518, %v291
        %vm1528 = vcmask 121906
        %v1529 = vsel %vm1528, %v1520, 0.0
        %v1530 = vsel %vm1528, %v1522, 0.0
        %v1531 = vadd.f32 %v1529, %v1530
        %v1532 = vsel %vm1528, %v1524, 0.0
        %v1533 = vadd.f32 %v1531, %v1532
        %v1534 = vsel %vm1528, %v1526, 0.0
        %v1535 = vadd.f32 %v1533, %v1534
        %vm1536 = vcmask 116784
        %v1537 = vsel %vm1536, %v1521, 0.0
        %v1538 = vsel %vm1536, %v1523, 0.0
        %v1539 = vadd.f32 %v1537, %v1538
        %v1540 = vsel %vm1536, %v1525, 0.0
        %v1541 = vadd.f32 %v1539, %v1540
        %v1542 = vsel %vm1536, %v1527, 0.0
        %v1543 = vadd.f32 %v1541, %v1542
        %v1546 = vrot.slane %v1535, 2
        %v1547 = vrot.slane %v1543, 2
        %v1548 = vsel %vm1207, %v1546, %v1547
        %1549 = vrot.lane.b32.xlu0 %v1548, 122
        %v1550 = vpop.permute.xlu0 %1549
        %1551 = vrot.lane.b32.xlu0 %v1547, 122
        %v1552 = vpop.permute.xlu0 %1551
        %v1555 = vadd.f32 %v1498, %v1550
        %v1556 = vadd.f32 %v1499, %v1552
        %1557 = vrot.lane.b32.xlu0 %v1165, 121
        %v1558 = vpop.permute.xlu0 %1557
        %1559 = vrot.lane.b32.xlu0 %v1166, 121
        %v1560 = vpop.permute.xlu0 %1559
        %1561 = vrot.lane.b32.xlu0 %v1167, 121
        %v1562 = vpop.permute.xlu0 %1561
        %1563 = vrot.lane.b32.xlu0 %v1168, 121
        %v1564 = vpop.permute.xlu0 %1563
        %s1565 = vtos %v1558
        %v1566 = vstv %s1565
        %s1568 = vtos %v1560
        %v1569 = vstv %s1568
        %s1571 = vtos %v1562
        %v1572 = vstv %s1571
        %s1574 = vtos %v1564
        %v1575 = vstv %s1574
        %v1577 = vmul.f32 %v1566, %v242
        %v1578 = vmul.f32 %v1566, %v249
        %v1579 = vmul.f32 %v1569, %v256
        %v1580 = vmul.f32 %v1569, %v263
        %v1581 = vmul.f32 %v1572, %v270
        %v1582 = vmul.f32 %v1572, %v277
        %v1583 = vmul.f32 %v1575, %v284
        %v1584 = vmul.f32 %v1575, %v291
        %vm1585 = vcmask 130106
        %v1586 = vsel %vm1585, %v1577, 0.0
        %v1587 = vsel %vm1585, %v1579, 0.0
        %v1588 = vadd.f32 %v1586, %v1587
        %v1589 = vsel %vm1585, %v1581, 0.0
        %v1590 = vadd.f32 %v1588, %v1589
        %v1591 = vsel %vm1585, %v1583, 0.0
        %v1592 = vadd.f32 %v1590, %v1591
        %vm1593 = vcmask 124984
        %v1594 = vsel %vm1593, %v1578, 0.0
        %v1595 = vsel %vm1593, %v1580, 0.0
        %v1596 = vadd.f32 %v1594, %v1595
        %v1597 = vsel %vm1593, %v1582, 0.0
        %v1598 = vadd.f32 %v1596, %v1597
        %v1599 = vsel %vm1593, %v1584, 0.0
        %v1600 = vadd.f32 %v1598, %v1599
        %v1603 = vrot.slane %v1592, 2
        %v1604 = vrot.slane %v1600, 2
        %v1605 = vsel %vm1207, %v1603, %v1604
        %1606 = vrot.lane.b32.xlu0 %v1605, 121
        %v1607 = vpop.permute.xlu0 %1606
        %1608 = vrot.lane.b32.xlu0 %v1604, 121
        %v1609 = vpop.permute.xlu0 %1608
        %v1612 = vadd.f32 %v1555, %v1607
        %v1613 = vadd.f32 %v1556, %v1609
        %v1614 = vrot.slane %v292, 3
        %v1615 = vrot.slane %v293, 3
        %v1616 = vrot.slane %v294, 3
        %v1617 = vrot.slane %v295, 3
        %s1618 = vtos %v1614
        %v1619 = vstv %s1618
        %s1621 = vtos %v1615
        %v1622 = vstv %s1621
        %s1624 = vtos %v1616
        %v1625 = vstv %s1624
        %s1627 = vtos %v1617
        %v1628 = vstv %s1627
        %v1630 = vmul.f32 %v1619, %v242
        %v1631 = vmul.f32 %v1619, %v249
        %v1632 = vmul.f32 %v1622, %v256
        %v1633 = vmul.f32 %v1622, %v263
        %v1634 = vmul.f32 %v1625, %v270
        %v1635 = vmul.f32 %v1625, %v277
        %v1636 = vmul.f32 %v1628, %v284
        %v1637 = vmul.f32 %v1628, %v291
        %vm1638 = vcmask 72707
        %v1639 = vsel %vm1638, %v1630, 0.0
        %v1640 = vsel %vm1638, %v1632, 0.0
        %v1641 = vadd.f32 %v1639, %v1640
        %v1642 = vsel %vm1638, %v1634, 0.0
        %v1643 = vadd.f32 %v1641, %v1642
        %v1644 = vsel %vm1638, %v1636, 0.0
        %v1645 = vadd.f32 %v1643, %v1644
        %vm1646 = vcmask 68608
        %v1647 = vsel %vm1646, %v1631, 0.0
        %v1648 = vsel %vm1646, %v1633, 0.0
        %v1649 = vadd.f32 %v1647, %v1648
        %v1650 = vsel %vm1646, %v1635, 0.0
        %v1651 = vadd.f32 %v1649, %v1650
        %v1652 = vsel %vm1646, %v1637, 0.0
        %v1653 = vadd.f32 %v1651, %v1652
        %vm1656 = vcmask 1044480
        %v1657 = vrot.slane %v1645, 3
        %v1658 = vrot.slane %v1653, 3
        %v1659 = vsel %vm1656, %v1657, %v1658
        %v1662 = vadd.f32 %v1612, %v1659
        %v1663 = vadd.f32 %v1613, %v1658
        %1664 = vrot.lane.b32.xlu0 %v1614, 127
        %v1665 = vpop.permute.xlu0 %1664
        %1666 = vrot.lane.b32.xlu0 %v1615, 127
        %v1667 = vpop.permute.xlu0 %1666
        %1668 = vrot.lane.b32.xlu0 %v1616, 127
        %v1669 = vpop.permute.xlu0 %1668
        %1670 = vrot.lane.b32.xlu0 %v1617, 127
        %v1671 = vpop.permute.xlu0 %1670
        %s1672 = vtos %v1665
        %v1673 = vstv %s1672
        %s1675 = vtos %v1667
        %v1676 = vstv %s1675
        %s1678 = vtos %v1669
        %v1679 = vstv %s1678
        %s1681 = vtos %v1671
        %v1682 = vstv %s1681
        %v1684 = vmul.f32 %v1673, %v242
        %v1685 = vmul.f32 %v1673, %v249
        %v1686 = vmul.f32 %v1676, %v256
        %v1687 = vmul.f32 %v1676, %v263
        %v1688 = vmul.f32 %v1679, %v270
        %v1689 = vmul.f32 %v1679, %v277
        %v1690 = vmul.f32 %v1682, %v284
        %v1691 = vmul.f32 %v1682, %v291
        %vm1692 = vcmask 80907
        %v1693 = vsel %vm1692, %v1684, 0.0
        %v1694 = vsel %vm1692, %v1686, 0.0
        %v1695 = vadd.f32 %v1693, %v1694
        %v1696 = vsel %vm1692, %v1688, 0.0
        %v1697 = vadd.f32 %v1695, %v1696
        %v1698 = vsel %vm1692, %v1690, 0.0
        %v1699 = vadd.f32 %v1697, %v1698
        %vm1700 = vcmask 76808
        %v1701 = vsel %vm1700, %v1685, 0.0
        %v1702 = vsel %vm1700, %v1687, 0.0
        %v1703 = vadd.f32 %v1701, %v1702
        %v1704 = vsel %vm1700, %v1689, 0.0
        %v1705 = vadd.f32 %v1703, %v1704
        %v1706 = vsel %vm1700, %v1691, 0.0
        %v1707 = vadd.f32 %v1705, %v1706
        %v1710 = vrot.slane %v1699, 3
        %v1711 = vrot.slane %v1707, 3
        %v1712 = vsel %vm1656, %v1710, %v1711
        %1713 = vrot.lane.b32.xlu0 %v1712, 127
        %v1714 = vpop.permute.xlu0 %1713
        %1715 = vrot.lane.b32.xlu0 %v1711, 127
        %v1716 = vpop.permute.xlu0 %1715
        %v1719 = vadd.f32 %v1662, %v1714
        %v1720 = vadd.f32 %v1663, %v1716
        %1721 = vrot.lane.b32.xlu0 %v1614, 126
        %v1722 = vpop.permute.xlu0 %1721
        %1723 = vrot.lane.b32.xlu0 %v1615, 126
        %v1724 = vpop.permute.xlu0 %1723
        %1725 = vrot.lane.b32.xlu0 %v1616, 126
        %v1726 = vpop.permute.xlu0 %1725
        %1727 = vrot.lane.b32.xlu0 %v1617, 126
        %v1728 = vpop.permute.xlu0 %1727
        %s1729 = vtos %v1722
        %v1730 = vstv %s1729
        %s1732 = vtos %v1724
        %v1733 = vstv %s1732
        %s1735 = vtos %v1726
        %v1736 = vstv %s1735
        %s1738 = vtos %v1728
        %v1739 = vstv %s1738
        %v1741 = vmul.f32 %v1730, %v242
        %v1742 = vmul.f32 %v1730, %v249
        %v1743 = vmul.f32 %v1733, %v256
        %v1744 = vmul.f32 %v1733, %v263
        %v1745 = vmul.f32 %v1736, %v270
        %v1746 = vmul.f32 %v1736, %v277
        %v1747 = vmul.f32 %v1739, %v284
        %v1748 = vmul.f32 %v1739, %v291
        %vm1749 = vcmask 89107
        %v1750 = vsel %vm1749, %v1741, 0.0
        %v1751 = vsel %vm1749, %v1743, 0.0
        %v1752 = vadd.f32 %v1750, %v1751
        %v1753 = vsel %vm1749, %v1745, 0.0
        %v1754 = vadd.f32 %v1752, %v1753
        %v1755 = vsel %vm1749, %v1747, 0.0
        %v1756 = vadd.f32 %v1754, %v1755
        %vm1757 = vcmask 85008
        %v1758 = vsel %vm1757, %v1742, 0.0
        %v1759 = vsel %vm1757, %v1744, 0.0
        %v1760 = vadd.f32 %v1758, %v1759
        %v1761 = vsel %vm1757, %v1746, 0.0
        %v1762 = vadd.f32 %v1760, %v1761
        %v1763 = vsel %vm1757, %v1748, 0.0
        %v1764 = vadd.f32 %v1762, %v1763
        %v1767 = vrot.slane %v1756, 3
        %v1768 = vrot.slane %v1764, 3
        %v1769 = vsel %vm1656, %v1767, %v1768
        %1770 = vrot.lane.b32.xlu0 %v1769, 126
        %v1771 = vpop.permute.xlu0 %1770
        %1772 = vrot.lane.b32.xlu0 %v1768, 126
        %v1773 = vpop.permute.xlu0 %1772
        %v1776 = vadd.f32 %v1719, %v1771
        %v1777 = vadd.f32 %v1720, %v1773
        %1778 = vrot.lane.b32.xlu0 %v1614, 125
        %v1779 = vpop.permute.xlu0 %1778
        %1780 = vrot.lane.b32.xlu0 %v1615, 125
        %v1781 = vpop.permute.xlu0 %1780
        %1782 = vrot.lane.b32.xlu0 %v1616, 125
        %v1783 = vpop.permute.xlu0 %1782
        %1784 = vrot.lane.b32.xlu0 %v1617, 125
        %v1785 = vpop.permute.xlu0 %1784
        %s1786 = vtos %v1779
        %v1787 = vstv %s1786
        %s1789 = vtos %v1781
        %v1790 = vstv %s1789
        %s1792 = vtos %v1783
        %v1793 = vstv %s1792
        %s1795 = vtos %v1785
        %v1796 = vstv %s1795
        %v1798 = vmul.f32 %v1787, %v242
        %v1799 = vmul.f32 %v1787, %v249
        %v1800 = vmul.f32 %v1790, %v256
        %v1801 = vmul.f32 %v1790, %v263
        %v1802 = vmul.f32 %v1793, %v270
        %v1803 = vmul.f32 %v1793, %v277
        %v1804 = vmul.f32 %v1796, %v284
        %v1805 = vmul.f32 %v1796, %v291
        %vm1806 = vcmask 97307
        %v1807 = vsel %vm1806, %v1798, 0.0
        %v1808 = vsel %vm1806, %v1800, 0.0
        %v1809 = vadd.f32 %v1807, %v1808
        %v1810 = vsel %vm1806, %v1802, 0.0
        %v1811 = vadd.f32 %v1809, %v1810
        %v1812 = vsel %vm1806, %v1804, 0.0
        %v1813 = vadd.f32 %v1811, %v1812
        %vm1814 = vcmask 93208
        %v1815 = vsel %vm1814, %v1799, 0.0
        %v1816 = vsel %vm1814, %v1801, 0.0
        %v1817 = vadd.f32 %v1815, %v1816
        %v1818 = vsel %vm1814, %v1803, 0.0
        %v1819 = vadd.f32 %v1817, %v1818
        %v1820 = vsel %vm1814, %v1805, 0.0
        %v1821 = vadd.f32 %v1819, %v1820
        %v1824 = vrot.slane %v1813, 3
        %v1825 = vrot.slane %v1821, 3
        %v1826 = vsel %vm1656, %v1824, %v1825
        %1827 = vrot.lane.b32.xlu0 %v1826, 125
        %v1828 = vpop.permute.xlu0 %1827
        %1829 = vrot.lane.b32.xlu0 %v1825, 125
        %v1830 = vpop.permute.xlu0 %1829
        %v1833 = vadd.f32 %v1776, %v1828
        %v1834 = vadd.f32 %v1777, %v1830
        %1835 = vrot.lane.b32.xlu0 %v1614, 124
        %v1836 = vpop.permute.xlu0 %1835
        %1837 = vrot.lane.b32.xlu0 %v1615, 124
        %v1838 = vpop.permute.xlu0 %1837
        %1839 = vrot.lane.b32.xlu0 %v1616, 124
        %v1840 = vpop.permute.xlu0 %1839
        %1841 = vrot.lane.b32.xlu0 %v1617, 124
        %v1842 = vpop.permute.xlu0 %1841
        %s1843 = vtos %v1836
        %v1844 = vstv %s1843
        %s1846 = vtos %v1838
        %v1847 = vstv %s1846
        %s1849 = vtos %v1840
        %v1850 = vstv %s1849
        %s1852 = vtos %v1842
        %v1853 = vstv %s1852
        %v1855 = vmul.f32 %v1844, %v242
        %v1856 = vmul.f32 %v1844, %v249
        %v1857 = vmul.f32 %v1847, %v256
        %v1858 = vmul.f32 %v1847, %v263
        %v1859 = vmul.f32 %v1850, %v270
        %v1860 = vmul.f32 %v1850, %v277
        %v1861 = vmul.f32 %v1853, %v284
        %v1862 = vmul.f32 %v1853, %v291
        %vm1863 = vcmask 105507
        %v1864 = vsel %vm1863, %v1855, 0.0
        %v1865 = vsel %vm1863, %v1857, 0.0
        %v1866 = vadd.f32 %v1864, %v1865
        %v1867 = vsel %vm1863, %v1859, 0.0
        %v1868 = vadd.f32 %v1866, %v1867
        %v1869 = vsel %vm1863, %v1861, 0.0
        %v1870 = vadd.f32 %v1868, %v1869
        %vm1871 = vcmask 101408
        %v1872 = vsel %vm1871, %v1856, 0.0
        %v1873 = vsel %vm1871, %v1858, 0.0
        %v1874 = vadd.f32 %v1872, %v1873
        %v1875 = vsel %vm1871, %v1860, 0.0
        %v1876 = vadd.f32 %v1874, %v1875
        %v1877 = vsel %vm1871, %v1862, 0.0
        %v1878 = vadd.f32 %v1876, %v1877
        %v1881 = vrot.slane %v1870, 3
        %v1882 = vrot.slane %v1878, 3
        %v1883 = vsel %vm1656, %v1881, %v1882
        %1884 = vrot.lane.b32.xlu0 %v1883, 124
        %v1885 = vpop.permute.xlu0 %1884
        %1886 = vrot.lane.b32.xlu0 %v1882, 124
        %v1887 = vpop.permute.xlu0 %1886
        %v1890 = vadd.f32 %v1833, %v1885
        %v1891 = vadd.f32 %v1834, %v1887
        %1892 = vrot.lane.b32.xlu0 %v1614, 123
        %v1893 = vpop.permute.xlu0 %1892
        %1894 = vrot.lane.b32.xlu0 %v1615, 123
        %v1895 = vpop.permute.xlu0 %1894
        %1896 = vrot.lane.b32.xlu0 %v1616, 123
        %v1897 = vpop.permute.xlu0 %1896
        %1898 = vrot.lane.b32.xlu0 %v1617, 123
        %v1899 = vpop.permute.xlu0 %1898
        %s1900 = vtos %v1893
        %v1901 = vstv %s1900
        %s1903 = vtos %v1895
        %v1904 = vstv %s1903
        %s1906 = vtos %v1897
        %v1907 = vstv %s1906
        %s1909 = vtos %v1899
        %v1910 = vstv %s1909
        %v1912 = vmul.f32 %v1901, %v242
        %v1913 = vmul.f32 %v1901, %v249
        %v1914 = vmul.f32 %v1904, %v256
        %v1915 = vmul.f32 %v1904, %v263
        %v1916 = vmul.f32 %v1907, %v270
        %v1917 = vmul.f32 %v1907, %v277
        %v1918 = vmul.f32 %v1910, %v284
        %v1919 = vmul.f32 %v1910, %v291
        %vm1920 = vcmask 113707
        %v1921 = vsel %vm1920, %v1912, 0.0
        %v1922 = vsel %vm1920, %v1914, 0.0
        %v1923 = vadd.f32 %v1921, %v1922
        %v1924 = vsel %vm1920, %v1916, 0.0
        %v1925 = vadd.f32 %v1923, %v1924
        %v1926 = vsel %vm1920, %v1918, 0.0
        %v1927 = vadd.f32 %v1925, %v1926
        %vm1928 = vcmask 109608
        %v1929 = vsel %vm1928, %v1913, 0.0
        %v1930 = vsel %vm1928, %v1915, 0.0
        %v1931 = vadd.f32 %v1929, %v1930
        %v1932 = vsel %vm1928, %v1917, 0.0
        %v1933 = vadd.f32 %v1931, %v1932
        %v1934 = vsel %vm1928, %v1919, 0.0
        %v1935 = vadd.f32 %v1933, %v1934
        %v1938 = vrot.slane %v1927, 3
        %v1939 = vrot.slane %v1935, 3
        %v1940 = vsel %vm1656, %v1938, %v1939
        %1941 = vrot.lane.b32.xlu0 %v1940, 123
        %v1942 = vpop.permute.xlu0 %1941
        %1943 = vrot.lane.b32.xlu0 %v1939, 123
        %v1944 = vpop.permute.xlu0 %1943
        %v1947 = vadd.f32 %v1890, %v1942
        %v1948 = vadd.f32 %v1891, %v1944
        %1949 = vrot.lane.b32.xlu0 %v1614, 122
        %v1950 = vpop.permute.xlu0 %1949
        %1951 = vrot.lane.b32.xlu0 %v1615, 122
        %v1952 = vpop.permute.xlu0 %1951
        %1953 = vrot.lane.b32.xlu0 %v1616, 122
        %v1954 = vpop.permute.xlu0 %1953
        %1955 = vrot.lane.b32.xlu0 %v1617, 122
        %v1956 = vpop.permute.xlu0 %1955
        %s1957 = vtos %v1950
        %v1958 = vstv %s1957
        %s1960 = vtos %v1952
        %v1961 = vstv %s1960
        %s1963 = vtos %v1954
        %v1964 = vstv %s1963
        %s1966 = vtos %v1956
        %v1967 = vstv %s1966
        %v1969 = vmul.f32 %v1958, %v242
        %v1970 = vmul.f32 %v1958, %v249
        %v1971 = vmul.f32 %v1961, %v256
        %v1972 = vmul.f32 %v1961, %v263
        %v1973 = vmul.f32 %v1964, %v270
        %v1974 = vmul.f32 %v1964, %v277
        %v1975 = vmul.f32 %v1967, %v284
        %v1976 = vmul.f32 %v1967, %v291
        %vm1977 = vcmask 121907
        %v1978 = vsel %vm1977, %v1969, 0.0
        %v1979 = vsel %vm1977, %v1971, 0.0
        %v1980 = vadd.f32 %v1978, %v1979
        %v1981 = vsel %vm1977, %v1973, 0.0
        %v1982 = vadd.f32 %v1980, %v1981
        %v1983 = vsel %vm1977, %v1975, 0.0
        %v1984 = vadd.f32 %v1982, %v1983
        %vm1985 = vcmask 117808
        %v1986 = vsel %vm1985, %v1970, 0.0
        %v1987 = vsel %vm1985, %v1972, 0.0
        %v1988 = vadd.f32 %v1986, %v1987
        %v1989 = vsel %vm1985, %v1974, 0.0
        %v1990 = vadd.f32 %v1988, %v1989
        %v1991 = vsel %vm1985, %v1976, 0.0
        %v1992 = vadd.f32 %v1990, %v1991
        %v1995 = vrot.slane %v1984, 3
        %v1996 = vrot.slane %v1992, 3
        %v1997 = vsel %vm1656, %v1995, %v1996
        %1998 = vrot.lane.b32.xlu0 %v1997, 122
        %v1999 = vpop.permute.xlu0 %1998
        %2000 = vrot.lane.b32.xlu0 %v1996, 122
        %v2001 = vpop.permute.xlu0 %2000
        %v2004 = vadd.f32 %v1947, %v1999
        %v2005 = vadd.f32 %v1948, %v2001
        %2006 = vrot.lane.b32.xlu0 %v1614, 121
        %v2007 = vpop.permute.xlu0 %2006
        %2008 = vrot.lane.b32.xlu0 %v1615, 121
        %v2009 = vpop.permute.xlu0 %2008
        %2010 = vrot.lane.b32.xlu0 %v1616, 121
        %v2011 = vpop.permute.xlu0 %2010
        %2012 = vrot.lane.b32.xlu0 %v1617, 121
        %v2013 = vpop.permute.xlu0 %2012
        %s2014 = vtos %v2007
        %v2015 = vstv %s2014
        %s2017 = vtos %v2009
        %v2018 = vstv %s2017
        %s2020 = vtos %v2011
        %v2021 = vstv %s2020
        %s2023 = vtos %v2013
        %v2024 = vstv %s2023
        %v2026 = vmul.f32 %v2015, %v242
        %v2027 = vmul.f32 %v2015, %v249
        %v2028 = vmul.f32 %v2018, %v256
        %v2029 = vmul.f32 %v2018, %v263
        %v2030 = vmul.f32 %v2021, %v270
        %v2031 = vmul.f32 %v2021, %v277
        %v2032 = vmul.f32 %v2024, %v284
        %v2033 = vmul.f32 %v2024, %v291
        %vm2034 = vcmask 130107
        %v2035 = vsel %vm2034, %v2026, 0.0
        %v2036 = vsel %vm2034, %v2028, 0.0
        %v2037 = vadd.f32 %v2035, %v2036
        %v2038 = vsel %vm2034, %v2030, 0.0
        %v2039 = vadd.f32 %v2037, %v2038
        %v2040 = vsel %vm2034, %v2032, 0.0
        %v2041 = vadd.f32 %v2039, %v2040
        %vm2042 = vcmask 126008
        %v2043 = vsel %vm2042, %v2027, 0.0
        %v2044 = vsel %vm2042, %v2029, 0.0
        %v2045 = vadd.f32 %v2043, %v2044
        %v2046 = vsel %vm2042, %v2031, 0.0
        %v2047 = vadd.f32 %v2045, %v2046
        %v2048 = vsel %vm2042, %v2033, 0.0
        %v2049 = vadd.f32 %v2047, %v2048
        %v2052 = vrot.slane %v2041, 3
        %v2053 = vrot.slane %v2049, 3
        %v2054 = vsel %vm1656, %v2052, %v2053
        %2055 = vrot.lane.b32.xlu0 %v2054, 121
        %v2056 = vpop.permute.xlu0 %2055
        %2057 = vrot.lane.b32.xlu0 %v2053, 121
        %v2058 = vpop.permute.xlu0 %2057
        %v2061 = vadd.f32 %v2004, %v2056
        %v2062 = vadd.f32 %v2005, %v2058
        %v2063 = vrot.slane %v292, 4
        %v2064 = vrot.slane %v293, 4
        %v2065 = vrot.slane %v294, 4
        %v2066 = vrot.slane %v295, 4
        %s2067 = vtos %v2063
        %v2068 = vstv %s2067
        %s2070 = vtos %v2064
        %v2071 = vstv %s2070
        %s2073 = vtos %v2065
        %v2074 = vstv %s2073
        %s2076 = vtos %v2066
        %v2077 = vstv %s2076
        %v2079 = vmul.f32 %v2068, %v242
        %v2080 = vmul.f32 %v2068, %v249
        %v2081 = vmul.f32 %v2071, %v256
        %v2082 = vmul.f32 %v2071, %v263
        %v2083 = vmul.f32 %v2074, %v270
        %v2084 = vmul.f32 %v2074, %v277
        %v2085 = vmul.f32 %v2077, %v284
        %v2086 = vmul.f32 %v2077, %v291
        %vm2087 = vcmask 72708
        %v2088 = vsel %vm2087, %v2079, 0.0
        %v2089 = vsel %vm2087, %v2081, 0.0
        %v2090 = vadd.f32 %v2088, %v2089
        %v2091 = vsel %vm2087, %v2083, 0.0
        %v2092 = vadd.f32 %v2090, %v2091
        %v2093 = vsel %vm2087, %v2085, 0.0
        %v2094 = vadd.f32 %v2092, %v2093
        %vm2095 = vcmask 69632
        %v2096 = vsel %vm2095, %v2080, 0.0
        %v2097 = vsel %vm2095, %v2082, 0.0
        %v2098 = vadd.f32 %v2096, %v2097
        %v2099 = vsel %vm2095, %v2084, 0.0
        %v2100 = vadd.f32 %v2098, %v2099
        %v2101 = vsel %vm2095, %v2086, 0.0
        %v2102 = vadd.f32 %v2100, %v2101
        %vm2105 = vcmask 1043456
        %v2106 = vrot.slane %v2094, 4
        %v2107 = vrot.slane %v2102, 4
        %v2108 = vsel %vm2105, %v2106, %v2107
        %v2111 = vadd.f32 %v2061, %v2108
        %v2112 = vadd.f32 %v2062, %v2107
        %2113 = vrot.lane.b32.xlu0 %v2063, 127
        %v2114 = vpop.permute.xlu0 %2113
        %2115 = vrot.lane.b32.xlu0 %v2064, 127
        %v2116 = vpop.permute.xlu0 %2115
        %2117 = vrot.lane.b32.xlu0 %v2065, 127
        %v2118 = vpop.permute.xlu0 %2117
        %2119 = vrot.lane.b32.xlu0 %v2066, 127
        %v2120 = vpop.permute.xlu0 %2119
        %s2121 = vtos %v2114
        %v2122 = vstv %s2121
        %s2124 = vtos %v2116
        %v2125 = vstv %s2124
        %s2127 = vtos %v2118
        %v2128 = vstv %s2127
        %s2130 = vtos %v2120
        %v2131 = vstv %s2130
        %v2133 = vmul.f32 %v2122, %v242
        %v2134 = vmul.f32 %v2122, %v249
        %v2135 = vmul.f32 %v2125, %v256
        %v2136 = vmul.f32 %v2125, %v263
        %v2137 = vmul.f32 %v2128, %v270
        %v2138 = vmul.f32 %v2128, %v277
        %v2139 = vmul.f32 %v2131, %v284
        %v2140 = vmul.f32 %v2131, %v291
        %vm2141 = vcmask 80908
        %v2142 = vsel %vm2141, %v2133, 0.0
        %v2143 = vsel %vm2141, %v2135, 0.0
        %v2144 = vadd.f32 %v2142, %v2143
        %v2145 = vsel %vm2141, %v2137, 0.0
        %v2146 = vadd.f32 %v2144, %v2145
        %v2147 = vsel %vm2141, %v2139, 0.0
        %v2148 = vadd.f32 %v2146, %v2147
        %vm2149 = vcmask 77832
        %v2150 = vsel %vm2149, %v2134, 0.0
        %v2151 = vsel %vm2149, %v2136, 0.0
        %v2152 = vadd.f32 %v2150, %v2151
        %v2153 = vsel %vm2149, %v2138, 0.0
        %v2154 = vadd.f32 %v2152, %v2153
        %v2155 = vsel %vm2149, %v2140, 0.0
        %v2156 = vadd.f32 %v2154, %v2155
        %v2159 = vrot.slane %v2148, 4
        %v2160 = vrot.slane %v2156, 4
        %v2161 = vsel %vm2105, %v2159, %v2160
        %2162 = vrot.lane.b32.xlu0 %v2161, 127
        %v2163 = vpop.permute.xlu0 %2162
        %2164 = vrot.lane.b32.xlu0 %v2160, 127
        %v2165 = vpop.permute.xlu0 %2164
        %v2168 = vadd.f32 %v2111, %v2163
        %v2169 = vadd.f32 %v2112, %v2165
        %2170 = vrot.lane.b32.xlu0 %v2063, 126
        %v2171 = vpop.permute.xlu0 %2170
        %2172 = vrot.lane.b32.xlu0 %v2064, 126
        %v2173 = vpop.permute.xlu0 %2172
        %2174 = vrot.lane.b32.xlu0 %v2065, 126
        %v2175 = vpop.permute.xlu0 %2174
        %2176 = vrot.lane.b32.xlu0 %v2066, 126
        %v2177 = vpop.permute.xlu0 %2176
        %s2178 = vtos %v2171
        %v2179 = vstv %s2178
        %s2181 = vtos %v2173
        %v2182 = vstv %s2181
        %s2184 = vtos %v2175
        %v2185 = vstv %s2184
        %s2187 = vtos %v2177
        %v2188 = vstv %s2187
        %v2190 = vmul.f32 %v2179, %v242
        %v2191 = vmul.f32 %v2179, %v249
        %v2192 = vmul.f32 %v2182, %v256
        %v2193 = vmul.f32 %v2182, %v263
        %v2194 = vmul.f32 %v2185, %v270
        %v2195 = vmul.f32 %v2185, %v277
        %v2196 = vmul.f32 %v2188, %v284
        %v2197 = vmul.f32 %v2188, %v291
        %vm2198 = vcmask 89108
        %v2199 = vsel %vm2198, %v2190, 0.0
        %v2200 = vsel %vm2198, %v2192, 0.0
        %v2201 = vadd.f32 %v2199, %v2200
        %v2202 = vsel %vm2198, %v2194, 0.0
        %v2203 = vadd.f32 %v2201, %v2202
        %v2204 = vsel %vm2198, %v2196, 0.0
        %v2205 = vadd.f32 %v2203, %v2204
        %vm2206 = vcmask 86032
        %v2207 = vsel %vm2206, %v2191, 0.0
        %v2208 = vsel %vm2206, %v2193, 0.0
        %v2209 = vadd.f32 %v2207, %v2208
        %v2210 = vsel %vm2206, %v2195, 0.0
        %v2211 = vadd.f32 %v2209, %v2210
        %v2212 = vsel %vm2206, %v2197, 0.0
        %v2213 = vadd.f32 %v2211, %v2212
        %v2216 = vrot.slane %v2205, 4
        %v2217 = vrot.slane %v2213, 4
        %v2218 = vsel %vm2105, %v2216, %v2217
        %2219 = vrot.lane.b32.xlu0 %v2218, 126
        %v2220 = vpop.permute.xlu0 %2219
        %2221 = vrot.lane.b32.xlu0 %v2217, 126
        %v2222 = vpop.permute.xlu0 %2221
        %v2225 = vadd.f32 %v2168, %v2220
        %v2226 = vadd.f32 %v2169, %v2222
        %2227 = vrot.lane.b32.xlu0 %v2063, 125
        %v2228 = vpop.permute.xlu0 %2227
        %2229 = vrot.lane.b32.xlu0 %v2064, 125
        %v2230 = vpop.permute.xlu0 %2229
        %2231 = vrot.lane.b32.xlu0 %v2065, 125
        %v2232 = vpop.permute.xlu0 %2231
        %2233 = vrot.lane.b32.xlu0 %v2066, 125
        %v2234 = vpop.permute.xlu0 %2233
        %s2235 = vtos %v2228
        %v2236 = vstv %s2235
        %s2238 = vtos %v2230
        %v2239 = vstv %s2238
        %s2241 = vtos %v2232
        %v2242 = vstv %s2241
        %s2244 = vtos %v2234
        %v2245 = vstv %s2244
        %v2247 = vmul.f32 %v2236, %v242
        %v2248 = vmul.f32 %v2236, %v249
        %v2249 = vmul.f32 %v2239, %v256
        %v2250 = vmul.f32 %v2239, %v263
        %v2251 = vmul.f32 %v2242, %v270
        %v2252 = vmul.f32 %v2242, %v277
        %v2253 = vmul.f32 %v2245, %v284
        %v2254 = vmul.f32 %v2245, %v291
        %vm2255 = vcmask 97308
        %v2256 = vsel %vm2255, %v2247, 0.0
        %v2257 = vsel %vm2255, %v2249, 0.0
        %v2258 = vadd.f32 %v2256, %v2257
        %v2259 = vsel %vm2255, %v2251, 0.0
        %v2260 = vadd.f32 %v2258, %v2259
        %v2261 = vsel %vm2255, %v2253, 0.0
        %v2262 = vadd.f32 %v2260, %v2261
        %vm2263 = vcmask 94232
        %v2264 = vsel %vm2263, %v2248, 0.0
        %v2265 = vsel %vm2263, %v2250, 0.0
        %v2266 = vadd.f32 %v2264, %v2265
        %v2267 = vsel %vm2263, %v2252, 0.0
        %v2268 = vadd.f32 %v2266, %v2267
        %v2269 = vsel %vm2263, %v2254, 0.0
        %v2270 = vadd.f32 %v2268, %v2269
        %v2273 = vrot.slane %v2262, 4
        %v2274 = vrot.slane %v2270, 4
        %v2275 = vsel %vm2105, %v2273, %v2274
        %2276 = vrot.lane.b32.xlu0 %v2275, 125
        %v2277 = vpop.permute.xlu0 %2276
        %2278 = vrot.lane.b32.xlu0 %v2274, 125
        %v2279 = vpop.permute.xlu0 %2278
        %v2282 = vadd.f32 %v2225, %v2277
        %v2283 = vadd.f32 %v2226, %v2279
        %2284 = vrot.lane.b32.xlu0 %v2063, 124
        %v2285 = vpop.permute.xlu0 %2284
        %2286 = vrot.lane.b32.xlu0 %v2064, 124
        %v2287 = vpop.permute.xlu0 %2286
        %2288 = vrot.lane.b32.xlu0 %v2065, 124
        %v2289 = vpop.permute.xlu0 %2288
        %2290 = vrot.lane.b32.xlu0 %v2066, 124
        %v2291 = vpop.permute.xlu0 %2290
        %s2292 = vtos %v2285
        %v2293 = vstv %s2292
        %s2295 = vtos %v2287
        %v2296 = vstv %s2295
        %s2298 = vtos %v2289
        %v2299 = vstv %s2298
        %s2301 = vtos %v2291
        %v2302 = vstv %s2301
        %v2304 = vmul.f32 %v2293, %v242
        %v2305 = vmul.f32 %v2293, %v249
        %v2306 = vmul.f32 %v2296, %v256
        %v2307 = vmul.f32 %v2296, %v263
        %v2308 = vmul.f32 %v2299, %v270
        %v2309 = vmul.f32 %v2299, %v277
        %v2310 = vmul.f32 %v2302, %v284
        %v2311 = vmul.f32 %v2302, %v291
        %vm2312 = vcmask 105508
        %v2313 = vsel %vm2312, %v2304, 0.0
        %v2314 = vsel %vm2312, %v2306, 0.0
        %v2315 = vadd.f32 %v2313, %v2314
        %v2316 = vsel %vm2312, %v2308, 0.0
        %v2317 = vadd.f32 %v2315, %v2316
        %v2318 = vsel %vm2312, %v2310, 0.0
        %v2319 = vadd.f32 %v2317, %v2318
        %vm2320 = vcmask 102432
        %v2321 = vsel %vm2320, %v2305, 0.0
        %v2322 = vsel %vm2320, %v2307, 0.0
        %v2323 = vadd.f32 %v2321, %v2322
        %v2324 = vsel %vm2320, %v2309, 0.0
        %v2325 = vadd.f32 %v2323, %v2324
        %v2326 = vsel %vm2320, %v2311, 0.0
        %v2327 = vadd.f32 %v2325, %v2326
        %v2330 = vrot.slane %v2319, 4
        %v2331 = vrot.slane %v2327, 4
        %v2332 = vsel %vm2105, %v2330, %v2331
        %2333 = vrot.lane.b32.xlu0 %v2332, 124
        %v2334 = vpop.permute.xlu0 %2333
        %2335 = vrot.lane.b32.xlu0 %v2331, 124
        %v2336 = vpop.permute.xlu0 %2335
        %v2339 = vadd.f32 %v2282, %v2334
        %v2340 = vadd.f32 %v2283, %v2336
        %2341 = vrot.lane.b32.xlu0 %v2063, 123
        %v2342 = vpop.permute.xlu0 %2341
        %2343 = vrot.lane.b32.xlu0 %v2064, 123
        %v2344 = vpop.permute.xlu0 %2343
        %2345 = vrot.lane.b32.xlu0 %v2065, 123
        %v2346 = vpop.permute.xlu0 %2345
        %2347 = vrot.lane.b32.xlu0 %v2066, 123
        %v2348 = vpop.permute.xlu0 %2347
        %s2349 = vtos %v2342
        %v2350 = vstv %s2349
        %s2352 = vtos %v2344
        %v2353 = vstv %s2352
        %s2355 = vtos %v2346
        %v2356 = vstv %s2355
        %s2358 = vtos %v2348
        %v2359 = vstv %s2358
        %v2361 = vmul.f32 %v2350, %v242
        %v2362 = vmul.f32 %v2350, %v249
        %v2363 = vmul.f32 %v2353, %v256
        %v2364 = vmul.f32 %v2353, %v263
        %v2365 = vmul.f32 %v2356, %v270
        %v2366 = vmul.f32 %v2356, %v277
        %v2367 = vmul.f32 %v2359, %v284
        %v2368 = vmul.f32 %v2359, %v291
        %vm2369 = vcmask 113708
        %v2370 = vsel %vm2369, %v2361, 0.0
        %v2371 = vsel %vm2369, %v2363, 0.0
        %v2372 = vadd.f32 %v2370, %v2371
        %v2373 = vsel %vm2369, %v2365, 0.0
        %v2374 = vadd.f32 %v2372, %v2373
        %v2375 = vsel %vm2369, %v2367, 0.0
        %v2376 = vadd.f32 %v2374, %v2375
        %vm2377 = vcmask 110632
        %v2378 = vsel %vm2377, %v2362, 0.0
        %v2379 = vsel %vm2377, %v2364, 0.0
        %v2380 = vadd.f32 %v2378, %v2379
        %v2381 = vsel %vm2377, %v2366, 0.0
        %v2382 = vadd.f32 %v2380, %v2381
        %v2383 = vsel %vm2377, %v2368, 0.0
        %v2384 = vadd.f32 %v2382, %v2383
        %v2387 = vrot.slane %v2376, 4
        %v2388 = vrot.slane %v2384, 4
        %v2389 = vsel %vm2105, %v2387, %v2388
        %2390 = vrot.lane.b32.xlu0 %v2389, 123
        %v2391 = vpop.permute.xlu0 %2390
        %2392 = vrot.lane.b32.xlu0 %v2388, 123
        %v2393 = vpop.permute.xlu0 %2392
        %v2396 = vadd.f32 %v2339, %v2391
        %v2397 = vadd.f32 %v2340, %v2393
        %2398 = vrot.lane.b32.xlu0 %v2063, 122
        %v2399 = vpop.permute.xlu0 %2398
        %2400 = vrot.lane.b32.xlu0 %v2064, 122
        %v2401 = vpop.permute.xlu0 %2400
        %2402 = vrot.lane.b32.xlu0 %v2065, 122
        %v2403 = vpop.permute.xlu0 %2402
        %2404 = vrot.lane.b32.xlu0 %v2066, 122
        %v2405 = vpop.permute.xlu0 %2404
        %s2406 = vtos %v2399
        %v2407 = vstv %s2406
        %s2409 = vtos %v2401
        %v2410 = vstv %s2409
        %s2412 = vtos %v2403
        %v2413 = vstv %s2412
        %s2415 = vtos %v2405
        %v2416 = vstv %s2415
        %v2418 = vmul.f32 %v2407, %v242
        %v2419 = vmul.f32 %v2407, %v249
        %v2420 = vmul.f32 %v2410, %v256
        %v2421 = vmul.f32 %v2410, %v263
        %v2422 = vmul.f32 %v2413, %v270
        %v2423 = vmul.f32 %v2413, %v277
        %v2424 = vmul.f32 %v2416, %v284
        %v2425 = vmul.f32 %v2416, %v291
        %vm2426 = vcmask 121908
        %v2427 = vsel %vm2426, %v2418, 0.0
        %v2428 = vsel %vm2426, %v2420, 0.0
        %v2429 = vadd.f32 %v2427, %v2428
        %v2430 = vsel %vm2426, %v2422, 0.0
        %v2431 = vadd.f32 %v2429, %v2430
        %v2432 = vsel %vm2426, %v2424, 0.0
        %v2433 = vadd.f32 %v2431, %v2432
        %vm2434 = vcmask 118832
        %v2435 = vsel %vm2434, %v2419, 0.0
        %v2436 = vsel %vm2434, %v2421, 0.0
        %v2437 = vadd.f32 %v2435, %v2436
        %v2438 = vsel %vm2434, %v2423, 0.0
        %v2439 = vadd.f32 %v2437, %v2438
        %v2440 = vsel %vm2434, %v2425, 0.0
        %v2441 = vadd.f32 %v2439, %v2440
        %v2444 = vrot.slane %v2433, 4
        %v2445 = vrot.slane %v2441, 4
        %v2446 = vsel %vm2105, %v2444, %v2445
        %2447 = vrot.lane.b32.xlu0 %v2446, 122
        %v2448 = vpop.permute.xlu0 %2447
        %2449 = vrot.lane.b32.xlu0 %v2445, 122
        %v2450 = vpop.permute.xlu0 %2449
        %v2453 = vadd.f32 %v2396, %v2448
        %v2454 = vadd.f32 %v2397, %v2450
        %2455 = vrot.lane.b32.xlu0 %v2063, 121
        %v2456 = vpop.permute.xlu0 %2455
        %2457 = vrot.lane.b32.xlu0 %v2064, 121
        %v2458 = vpop.permute.xlu0 %2457
        %2459 = vrot.lane.b32.xlu0 %v2065, 121
        %v2460 = vpop.permute.xlu0 %2459
        %2461 = vrot.lane.b32.xlu0 %v2066, 121
        %v2462 = vpop.permute.xlu0 %2461
        %s2463 = vtos %v2456
        %v2464 = vstv %s2463
        %s2466 = vtos %v2458
        %v2467 = vstv %s2466
        %s2469 = vtos %v2460
        %v2470 = vstv %s2469
        %s2472 = vtos %v2462
        %v2473 = vstv %s2472
        %v2475 = vmul.f32 %v2464, %v242
        %v2476 = vmul.f32 %v2464, %v249
        %v2477 = vmul.f32 %v2467, %v256
        %v2478 = vmul.f32 %v2467, %v263
        %v2479 = vmul.f32 %v2470, %v270
        %v2480 = vmul.f32 %v2470, %v277
        %v2481 = vmul.f32 %v2473, %v284
        %v2482 = vmul.f32 %v2473, %v291
        %vm2483 = vcmask 130108
        %v2484 = vsel %vm2483, %v2475, 0.0
        %v2485 = vsel %vm2483, %v2477, 0.0
        %v2486 = vadd.f32 %v2484, %v2485
        %v2487 = vsel %vm2483, %v2479, 0.0
        %v2488 = vadd.f32 %v2486, %v2487
        %v2489 = vsel %vm2483, %v2481, 0.0
        %v2490 = vadd.f32 %v2488, %v2489
        %vm2491 = vcmask 127032
        %v2492 = vsel %vm2491, %v2476, 0.0
        %v2493 = vsel %vm2491, %v2478, 0.0
        %v2494 = vadd.f32 %v2492, %v2493
        %v2495 = vsel %vm2491, %v2480, 0.0
        %v2496 = vadd.f32 %v2494, %v2495
        %v2497 = vsel %vm2491, %v2482, 0.0
        %v2498 = vadd.f32 %v2496, %v2497
        %v2501 = vrot.slane %v2490, 4
        %v2502 = vrot.slane %v2498, 4
        %v2503 = vsel %vm2105, %v2501, %v2502
        %2504 = vrot.lane.b32.xlu0 %v2503, 121
        %v2505 = vpop.permute.xlu0 %2504
        %2506 = vrot.lane.b32.xlu0 %v2502, 121
        %v2507 = vpop.permute.xlu0 %2506
        %v2510 = vadd.f32 %v2453, %v2505
        %v2511 = vadd.f32 %v2454, %v2507
        %v2512 = vrot.slane %v292, 5
        %v2513 = vrot.slane %v293, 5
        %v2514 = vrot.slane %v294, 5
        %v2515 = vrot.slane %v295, 5
        %s2516 = vtos %v2512
        %v2517 = vstv %s2516
        %s2519 = vtos %v2513
        %v2520 = vstv %s2519
        %s2522 = vtos %v2514
        %v2523 = vstv %s2522
        %s2525 = vtos %v2515
        %v2526 = vstv %s2525
        %v2528 = vmul.f32 %v2517, %v242
        %v2529 = vmul.f32 %v2517, %v249
        %v2530 = vmul.f32 %v2520, %v256
        %v2531 = vmul.f32 %v2520, %v263
        %v2532 = vmul.f32 %v2523, %v270
        %v2533 = vmul.f32 %v2523, %v277
        %v2534 = vmul.f32 %v2526, %v284
        %v2535 = vmul.f32 %v2526, %v291
        %vm2536 = vcmask 72709
        %v2537 = vsel %vm2536, %v2528, 0.0
        %v2538 = vsel %vm2536, %v2530, 0.0
        %v2539 = vadd.f32 %v2537, %v2538
        %v2540 = vsel %vm2536, %v2532, 0.0
        %v2541 = vadd.f32 %v2539, %v2540
        %v2542 = vsel %vm2536, %v2534, 0.0
        %v2543 = vadd.f32 %v2541, %v2542
        %vm2544 = vcmask 70656
        %v2545 = vsel %vm2544, %v2529, 0.0
        %v2546 = vsel %vm2544, %v2531, 0.0
        %v2547 = vadd.f32 %v2545, %v2546
        %v2548 = vsel %vm2544, %v2533, 0.0
        %v2549 = vadd.f32 %v2547, %v2548
        %v2550 = vsel %vm2544, %v2535, 0.0
        %v2551 = vadd.f32 %v2549, %v2550
        %vm2554 = vcmask 1042432
        %v2555 = vrot.slane %v2543, 5
        %v2556 = vrot.slane %v2551, 5
        %v2557 = vsel %vm2554, %v2555, %v2556
        %v2560 = vadd.f32 %v2510, %v2557
        %v2561 = vadd.f32 %v2511, %v2556
        %2562 = vrot.lane.b32.xlu0 %v2512, 127
        %v2563 = vpop.permute.xlu0 %2562
        %2564 = vrot.lane.b32.xlu0 %v2513, 127
        %v2565 = vpop.permute.xlu0 %2564
        %2566 = vrot.lane.b32.xlu0 %v2514, 127
        %v2567 = vpop.permute.xlu0 %2566
        %2568 = vrot.lane.b32.xlu0 %v2515, 127
        %v2569 = vpop.permute.xlu0 %2568
        %s2570 = vtos %v2563
        %v2571 = vstv %s2570
        %s2573 = vtos %v2565
        %v2574 = vstv %s2573
        %s2576 = vtos %v2567
        %v2577 = vstv %s2576
        %s2579 = vtos %v2569
        %v2580 = vstv %s2579
        %v2582 = vmul.f32 %v2571, %v242
        %v2583 = vmul.f32 %v2571, %v249
        %v2584 = vmul.f32 %v2574, %v256
        %v2585 = vmul.f32 %v2574, %v263
        %v2586 = vmul.f32 %v2577, %v270
        %v2587 = vmul.f32 %v2577, %v277
        %v2588 = vmul.f32 %v2580, %v284
        %v2589 = vmul.f32 %v2580, %v291
        %vm2590 = vcmask 80909
        %v2591 = vsel %vm2590, %v2582, 0.0
        %v2592 = vsel %vm2590, %v2584, 0.0
        %v2593 = vadd.f32 %v2591, %v2592
        %v2594 = vsel %vm2590, %v2586, 0.0
        %v2595 = vadd.f32 %v2593, %v2594
        %v2596 = vsel %vm2590, %v2588, 0.0
        %v2597 = vadd.f32 %v2595, %v2596
        %vm2598 = vcmask 78856
        %v2599 = vsel %vm2598, %v2583, 0.0
        %v2600 = vsel %vm2598, %v2585, 0.0
        %v2601 = vadd.f32 %v2599, %v2600
        %v2602 = vsel %vm2598, %v2587, 0.0
        %v2603 = vadd.f32 %v2601, %v2602
        %v2604 = vsel %vm2598, %v2589, 0.0
        %v2605 = vadd.f32 %v2603, %v2604
        %v2608 = vrot.slane %v2597, 5
        %v2609 = vrot.slane %v2605, 5
        %v2610 = vsel %vm2554, %v2608, %v2609
        %2611 = vrot.lane.b32.xlu0 %v2610, 127
        %v2612 = vpop.permute.xlu0 %2611
        %2613 = vrot.lane.b32.xlu0 %v2609, 127
        %v2614 = vpop.permute.xlu0 %2613
        %v2617 = vadd.f32 %v2560, %v2612
        %v2618 = vadd.f32 %v2561, %v2614
        %2619 = vrot.lane.b32.xlu0 %v2512, 126
        %v2620 = vpop.permute.xlu0 %2619
        %2621 = vrot.lane.b32.xlu0 %v2513, 126
        %v2622 = vpop.permute.xlu0 %2621
        %2623 = vrot.lane.b32.xlu0 %v2514, 126
        %v2624 = vpop.permute.xlu0 %2623
        %2625 = vrot.lane.b32.xlu0 %v2515, 126
        %v2626 = vpop.permute.xlu0 %2625
        %s2627 = vtos %v2620
        %v2628 = vstv %s2627
        %s2630 = vtos %v2622
        %v2631 = vstv %s2630
        %s2633 = vtos %v2624
        %v2634 = vstv %s2633
        %s2636 = vtos %v2626
        %v2637 = vstv %s2636
        %v2639 = vmul.f32 %v2628, %v242
        %v2640 = vmul.f32 %v2628, %v249
        %v2641 = vmul.f32 %v2631, %v256
        %v2642 = vmul.f32 %v2631, %v263
        %v2643 = vmul.f32 %v2634, %v270
        %v2644 = vmul.f32 %v2634, %v277
        %v2645 = vmul.f32 %v2637, %v284
        %v2646 = vmul.f32 %v2637, %v291
        %vm2647 = vcmask 89109
        %v2648 = vsel %vm2647, %v2639, 0.0
        %v2649 = vsel %vm2647, %v2641, 0.0
        %v2650 = vadd.f32 %v2648, %v2649
        %v2651 = vsel %vm2647, %v2643, 0.0
        %v2652 = vadd.f32 %v2650, %v2651
        %v2653 = vsel %vm2647, %v2645, 0.0
        %v2654 = vadd.f32 %v2652, %v2653
        %vm2655 = vcmask 87056
        %v2656 = vsel %vm2655, %v2640, 0.0
        %v2657 = vsel %vm2655, %v2642, 0.0
        %v2658 = vadd.f32 %v2656, %v2657
        %v2659 = vsel %vm2655, %v2644, 0.0
        %v2660 = vadd.f32 %v2658, %v2659
        %v2661 = vsel %vm2655, %v2646, 0.0
        %v2662 = vadd.f32 %v2660, %v2661
        %v2665 = vrot.slane %v2654, 5
        %v2666 = vrot.slane %v2662, 5
        %v2667 = vsel %vm2554, %v2665, %v2666
        %2668 = vrot.lane.b32.xlu0 %v2667, 126
        %v2669 = vpop.permute.xlu0 %2668
        %2670 = vrot.lane.b32.xlu0 %v2666, 126
        %v2671 = vpop.permute.xlu0 %2670
        %v2674 = vadd.f32 %v2617, %v2669
        %v2675 = vadd.f32 %v2618, %v2671
        %2676 = vrot.lane.b32.xlu0 %v2512, 125
        %v2677 = vpop.permute.xlu0 %2676
        %2678 = vrot.lane.b32.xlu0 %v2513, 125
        %v2679 = vpop.permute.xlu0 %2678
        %2680 = vrot.lane.b32.xlu0 %v2514, 125
        %v2681 = vpop.permute.xlu0 %2680
        %2682 = vrot.lane.b32.xlu0 %v2515, 125
        %v2683 = vpop.permute.xlu0 %2682
        %s2684 = vtos %v2677
        %v2685 = vstv %s2684
        %s2687 = vtos %v2679
        %v2688 = vstv %s2687
        %s2690 = vtos %v2681
        %v2691 = vstv %s2690
        %s2693 = vtos %v2683
        %v2694 = vstv %s2693
        %v2696 = vmul.f32 %v2685, %v242
        %v2697 = vmul.f32 %v2685, %v249
        %v2698 = vmul.f32 %v2688, %v256
        %v2699 = vmul.f32 %v2688, %v263
        %v2700 = vmul.f32 %v2691, %v270
        %v2701 = vmul.f32 %v2691, %v277
        %v2702 = vmul.f32 %v2694, %v284
        %v2703 = vmul.f32 %v2694, %v291
        %vm2704 = vcmask 97309
        %v2705 = vsel %vm2704, %v2696, 0.0
        %v2706 = vsel %vm2704, %v2698, 0.0
        %v2707 = vadd.f32 %v2705, %v2706
        %v2708 = vsel %vm2704, %v2700, 0.0
        %v2709 = vadd.f32 %v2707, %v2708
        %v2710 = vsel %vm2704, %v2702, 0.0
        %v2711 = vadd.f32 %v2709, %v2710
        %vm2712 = vcmask 95256
        %v2713 = vsel %vm2712, %v2697, 0.0
        %v2714 = vsel %vm2712, %v2699, 0.0
        %v2715 = vadd.f32 %v2713, %v2714
        %v2716 = vsel %vm2712, %v2701, 0.0
        %v2717 = vadd.f32 %v2715, %v2716
        %v2718 = vsel %vm2712, %v2703, 0.0
        %v2719 = vadd.f32 %v2717, %v2718
        %v2722 = vrot.slane %v2711, 5
        %v2723 = vrot.slane %v2719, 5
        %v2724 = vsel %vm2554, %v2722, %v2723
        %2725 = vrot.lane.b32.xlu0 %v2724, 125
        %v2726 = vpop.permute.xlu0 %2725
        %2727 = vrot.lane.b32.xlu0 %v2723, 125
        %v2728 = vpop.permute.xlu0 %2727
        %v2731 = vadd.f32 %v2674, %v2726
        %v2732 = vadd.f32 %v2675, %v2728
        %2733 = vrot.lane.b32.xlu0 %v2512, 124
        %v2734 = vpop.permute.xlu0 %2733
        %2735 = vrot.lane.b32.xlu0 %v2513, 124
        %v2736 = vpop.permute.xlu0 %2735
        %2737 = vrot.lane.b32.xlu0 %v2514, 124
        %v2738 = vpop.permute.xlu0 %2737
        %2739 = vrot.lane.b32.xlu0 %v2515, 124
        %v2740 = vpop.permute.xlu0 %2739
        %s2741 = vtos %v2734
        %v2742 = vstv %s2741
        %s2744 = vtos %v2736
        %v2745 = vstv %s2744
        %s2747 = vtos %v2738
        %v2748 = vstv %s2747
        %s2750 = vtos %v2740
        %v2751 = vstv %s2750
        %v2753 = vmul.f32 %v2742, %v242
        %v2754 = vmul.f32 %v2742, %v249
        %v2755 = vmul.f32 %v2745, %v256
        %v2756 = vmul.f32 %v2745, %v263
        %v2757 = vmul.f32 %v2748, %v270
        %v2758 = vmul.f32 %v2748, %v277
        %v2759 = vmul.f32 %v2751, %v284
        %v2760 = vmul.f32 %v2751, %v291
        %vm2761 = vcmask 105509
        %v2762 = vsel %vm2761, %v2753, 0.0
        %v2763 = vsel %vm2761, %v2755, 0.0
        %v2764 = vadd.f32 %v2762, %v2763
        %v2765 = vsel %vm2761, %v2757, 0.0
        %v2766 = vadd.f32 %v2764, %v2765
        %v2767 = vsel %vm2761, %v2759, 0.0
        %v2768 = vadd.f32 %v2766, %v2767
        %vm2769 = vcmask 103456
        %v2770 = vsel %vm2769, %v2754, 0.0
        %v2771 = vsel %vm2769, %v2756, 0.0
        %v2772 = vadd.f32 %v2770, %v2771
        %v2773 = vsel %vm2769, %v2758, 0.0
        %v2774 = vadd.f32 %v2772, %v2773
        %v2775 = vsel %vm2769, %v2760, 0.0
        %v2776 = vadd.f32 %v2774, %v2775
        %v2779 = vrot.slane %v2768, 5
        %v2780 = vrot.slane %v2776, 5
        %v2781 = vsel %vm2554, %v2779, %v2780
        %2782 = vrot.lane.b32.xlu0 %v2781, 124
        %v2783 = vpop.permute.xlu0 %2782
        %2784 = vrot.lane.b32.xlu0 %v2780, 124
        %v2785 = vpop.permute.xlu0 %2784
        %v2788 = vadd.f32 %v2731, %v2783
        %v2789 = vadd.f32 %v2732, %v2785
        %2790 = vrot.lane.b32.xlu0 %v2512, 123
        %v2791 = vpop.permute.xlu0 %2790
        %2792 = vrot.lane.b32.xlu0 %v2513, 123
        %v2793 = vpop.permute.xlu0 %2792
        %2794 = vrot.lane.b32.xlu0 %v2514, 123
        %v2795 = vpop.permute.xlu0 %2794
        %2796 = vrot.lane.b32.xlu0 %v2515, 123
        %v2797 = vpop.permute.xlu0 %2796
        %s2798 = vtos %v2791
        %v2799 = vstv %s2798
        %s2801 = vtos %v2793
        %v2802 = vstv %s2801
        %s2804 = vtos %v2795
        %v2805 = vstv %s2804
        %s2807 = vtos %v2797
        %v2808 = vstv %s2807
        %v2810 = vmul.f32 %v2799, %v242
        %v2811 = vmul.f32 %v2799, %v249
        %v2812 = vmul.f32 %v2802, %v256
        %v2813 = vmul.f32 %v2802, %v263
        %v2814 = vmul.f32 %v2805, %v270
        %v2815 = vmul.f32 %v2805, %v277
        %v2816 = vmul.f32 %v2808, %v284
        %v2817 = vmul.f32 %v2808, %v291
        %vm2818 = vcmask 113709
        %v2819 = vsel %vm2818, %v2810, 0.0
        %v2820 = vsel %vm2818, %v2812, 0.0
        %v2821 = vadd.f32 %v2819, %v2820
        %v2822 = vsel %vm2818, %v2814, 0.0
        %v2823 = vadd.f32 %v2821, %v2822
        %v2824 = vsel %vm2818, %v2816, 0.0
        %v2825 = vadd.f32 %v2823, %v2824
        %vm2826 = vcmask 111656
        %v2827 = vsel %vm2826, %v2811, 0.0
        %v2828 = vsel %vm2826, %v2813, 0.0
        %v2829 = vadd.f32 %v2827, %v2828
        %v2830 = vsel %vm2826, %v2815, 0.0
        %v2831 = vadd.f32 %v2829, %v2830
        %v2832 = vsel %vm2826, %v2817, 0.0
        %v2833 = vadd.f32 %v2831, %v2832
        %v2836 = vrot.slane %v2825, 5
        %v2837 = vrot.slane %v2833, 5
        %v2838 = vsel %vm2554, %v2836, %v2837
        %2839 = vrot.lane.b32.xlu0 %v2838, 123
        %v2840 = vpop.permute.xlu0 %2839
        %2841 = vrot.lane.b32.xlu0 %v2837, 123
        %v2842 = vpop.permute.xlu0 %2841
        %v2845 = vadd.f32 %v2788, %v2840
        %v2846 = vadd.f32 %v2789, %v2842
        %2847 = vrot.lane.b32.xlu0 %v2512, 122
        %v2848 = vpop.permute.xlu0 %2847
        %2849 = vrot.lane.b32.xlu0 %v2513, 122
        %v2850 = vpop.permute.xlu0 %2849
        %2851 = vrot.lane.b32.xlu0 %v2514, 122
        %v2852 = vpop.permute.xlu0 %2851
        %2853 = vrot.lane.b32.xlu0 %v2515, 122
        %v2854 = vpop.permute.xlu0 %2853
        %s2855 = vtos %v2848
        %v2856 = vstv %s2855
        %s2858 = vtos %v2850
        %v2859 = vstv %s2858
        %s2861 = vtos %v2852
        %v2862 = vstv %s2861
        %s2864 = vtos %v2854
        %v2865 = vstv %s2864
        %v2867 = vmul.f32 %v2856, %v242
        %v2868 = vmul.f32 %v2856, %v249
        %v2869 = vmul.f32 %v2859, %v256
        %v2870 = vmul.f32 %v2859, %v263
        %v2871 = vmul.f32 %v2862, %v270
        %v2872 = vmul.f32 %v2862, %v277
        %v2873 = vmul.f32 %v2865, %v284
        %v2874 = vmul.f32 %v2865, %v291
        %vm2875 = vcmask 121909
        %v2876 = vsel %vm2875, %v2867, 0.0
        %v2877 = vsel %vm2875, %v2869, 0.0
        %v2878 = vadd.f32 %v2876, %v2877
        %v2879 = vsel %vm2875, %v2871, 0.0
        %v2880 = vadd.f32 %v2878, %v2879
        %v2881 = vsel %vm2875, %v2873, 0.0
        %v2882 = vadd.f32 %v2880, %v2881
        %vm2883 = vcmask 119856
        %v2884 = vsel %vm2883, %v2868, 0.0
        %v2885 = vsel %vm2883, %v2870, 0.0
        %v2886 = vadd.f32 %v2884, %v2885
        %v2887 = vsel %vm2883, %v2872, 0.0
        %v2888 = vadd.f32 %v2886, %v2887
        %v2889 = vsel %vm2883, %v2874, 0.0
        %v2890 = vadd.f32 %v2888, %v2889
        %v2893 = vrot.slane %v2882, 5
        %v2894 = vrot.slane %v2890, 5
        %v2895 = vsel %vm2554, %v2893, %v2894
        %2896 = vrot.lane.b32.xlu0 %v2895, 122
        %v2897 = vpop.permute.xlu0 %2896
        %2898 = vrot.lane.b32.xlu0 %v2894, 122
        %v2899 = vpop.permute.xlu0 %2898
        %v2902 = vadd.f32 %v2845, %v2897
        %v2903 = vadd.f32 %v2846, %v2899
        %2904 = vrot.lane.b32.xlu0 %v2512, 121
        %v2905 = vpop.permute.xlu0 %2904
        %2906 = vrot.lane.b32.xlu0 %v2513, 121
        %v2907 = vpop.permute.xlu0 %2906
        %2908 = vrot.lane.b32.xlu0 %v2514, 121
        %v2909 = vpop.permute.xlu0 %2908
        %2910 = vrot.lane.b32.xlu0 %v2515, 121
        %v2911 = vpop.permute.xlu0 %2910
        %s2912 = vtos %v2905
        %v2913 = vstv %s2912
        %s2915 = vtos %v2907
        %v2916 = vstv %s2915
        %s2918 = vtos %v2909
        %v2919 = vstv %s2918
        %s2921 = vtos %v2911
        %v2922 = vstv %s2921
        %v2924 = vmul.f32 %v2913, %v242
        %v2925 = vmul.f32 %v2913, %v249
        %v2926 = vmul.f32 %v2916, %v256
        %v2927 = vmul.f32 %v2916, %v263
        %v2928 = vmul.f32 %v2919, %v270
        %v2929 = vmul.f32 %v2919, %v277
        %v2930 = vmul.f32 %v2922, %v284
        %v2931 = vmul.f32 %v2922, %v291
        %vm2932 = vcmask 130109
        %v2933 = vsel %vm2932, %v2924, 0.0
        %v2934 = vsel %vm2932, %v2926, 0.0
        %v2935 = vadd.f32 %v2933, %v2934
        %v2936 = vsel %vm2932, %v2928, 0.0
        %v2937 = vadd.f32 %v2935, %v2936
        %v2938 = vsel %vm2932, %v2930, 0.0
        %v2939 = vadd.f32 %v2937, %v2938
        %vm2940 = vcmask 128056
        %v2941 = vsel %vm2940, %v2925, 0.0
        %v2942 = vsel %vm2940, %v2927, 0.0
        %v2943 = vadd.f32 %v2941, %v2942
        %v2944 = vsel %vm2940, %v2929, 0.0
        %v2945 = vadd.f32 %v2943, %v2944
        %v2946 = vsel %vm2940, %v2931, 0.0
        %v2947 = vadd.f32 %v2945, %v2946
        %v2950 = vrot.slane %v2939, 5
        %v2951 = vrot.slane %v2947, 5
        %v2952 = vsel %vm2554, %v2950, %v2951
        %2953 = vrot.lane.b32.xlu0 %v2952, 121
        %v2954 = vpop.permute.xlu0 %2953
        %2955 = vrot.lane.b32.xlu0 %v2951, 121
        %v2956 = vpop.permute.xlu0 %2955
        %v2959 = vadd.f32 %v2902, %v2954
        %v2960 = vadd.f32 %v2903, %v2956
        %v2961 = vrot.slane %v292, 6
        %v2962 = vrot.slane %v293, 6
        %v2963 = vrot.slane %v294, 6
        %v2964 = vrot.slane %v295, 6
        %s2965 = vtos %v2961
        %v2966 = vstv %s2965
        %s2968 = vtos %v2962
        %v2969 = vstv %s2968
        %s2971 = vtos %v2963
        %v2972 = vstv %s2971
        %s2974 = vtos %v2964
        %v2975 = vstv %s2974
        %v2977 = vmul.f32 %v2966, %v242
        %v2978 = vmul.f32 %v2966, %v249
        %v2979 = vmul.f32 %v2969, %v256
        %v2980 = vmul.f32 %v2969, %v263
        %v2981 = vmul.f32 %v2972, %v270
        %v2982 = vmul.f32 %v2972, %v277
        %v2983 = vmul.f32 %v2975, %v284
        %v2984 = vmul.f32 %v2975, %v291
        %vm2985 = vcmask 72710
        %v2986 = vsel %vm2985, %v2977, 0.0
        %v2987 = vsel %vm2985, %v2979, 0.0
        %v2988 = vadd.f32 %v2986, %v2987
        %v2989 = vsel %vm2985, %v2981, 0.0
        %v2990 = vadd.f32 %v2988, %v2989
        %v2991 = vsel %vm2985, %v2983, 0.0
        %v2992 = vadd.f32 %v2990, %v2991
        %vm2993 = vcmask 71680
        %v2994 = vsel %vm2993, %v2978, 0.0
        %v2995 = vsel %vm2993, %v2980, 0.0
        %v2996 = vadd.f32 %v2994, %v2995
        %v2997 = vsel %vm2993, %v2982, 0.0
        %v2998 = vadd.f32 %v2996, %v2997
        %v2999 = vsel %vm2993, %v2984, 0.0
        %v3000 = vadd.f32 %v2998, %v2999
        %vm3003 = vcmask 1041408
        %v3004 = vrot.slane %v2992, 6
        %v3005 = vrot.slane %v3000, 6
        %v3006 = vsel %vm3003, %v3004, %v3005
        %v3009 = vadd.f32 %v2959, %v3006
        %v3010 = vadd.f32 %v2960, %v3005
        %3011 = vrot.lane.b32.xlu0 %v2961, 127
        %v3012 = vpop.permute.xlu0 %3011
        %3013 = vrot.lane.b32.xlu0 %v2962, 127
        %v3014 = vpop.permute.xlu0 %3013
        %3015 = vrot.lane.b32.xlu0 %v2963, 127
        %v3016 = vpop.permute.xlu0 %3015
        %3017 = vrot.lane.b32.xlu0 %v2964, 127
        %v3018 = vpop.permute.xlu0 %3017
        %s3019 = vtos %v3012
        %v3020 = vstv %s3019
        %s3022 = vtos %v3014
        %v3023 = vstv %s3022
        %s3025 = vtos %v3016
        %v3026 = vstv %s3025
        %s3028 = vtos %v3018
        %v3029 = vstv %s3028
        %v3031 = vmul.f32 %v3020, %v242
        %v3032 = vmul.f32 %v3020, %v249
        %v3033 = vmul.f32 %v3023, %v256
        %v3034 = vmul.f32 %v3023, %v263
        %v3035 = vmul.f32 %v3026, %v270
        %v3036 = vmul.f32 %v3026, %v277
        %v3037 = vmul.f32 %v3029, %v284
        %v3038 = vmul.f32 %v3029, %v291
        %vm3039 = vcmask 80910
        %v3040 = vsel %vm3039, %v3031, 0.0
        %v3041 = vsel %vm3039, %v3033, 0.0
        %v3042 = vadd.f32 %v3040, %v3041
        %v3043 = vsel %vm3039, %v3035, 0.0
        %v3044 = vadd.f32 %v3042, %v3043
        %v3045 = vsel %vm3039, %v3037, 0.0
        %v3046 = vadd.f32 %v3044, %v3045
        %vm3047 = vcmask 79880
        %v3048 = vsel %vm3047, %v3032, 0.0
        %v3049 = vsel %vm3047, %v3034, 0.0
        %v3050 = vadd.f32 %v3048, %v3049
        %v3051 = vsel %vm3047, %v3036, 0.0
        %v3052 = vadd.f32 %v3050, %v3051
        %v3053 = vsel %vm3047, %v3038, 0.0
        %v3054 = vadd.f32 %v3052, %v3053
        %v3057 = vrot.slane %v3046, 6
        %v3058 = vrot.slane %v3054, 6
        %v3059 = vsel %vm3003, %v3057, %v3058
        %3060 = vrot.lane.b32.xlu0 %v3059, 127
        %v3061 = vpop.permute.xlu0 %3060
        %3062 = vrot.lane.b32.xlu0 %v3058, 127
        %v3063 = vpop.permute.xlu0 %3062
        %v3066 = vadd.f32 %v3009, %v3061
        %v3067 = vadd.f32 %v3010, %v3063
        %3068 = vrot.lane.b32.xlu0 %v2961, 126
        %v3069 = vpop.permute.xlu0 %3068
        %3070 = vrot.lane.b32.xlu0 %v2962, 126
        %v3071 = vpop.permute.xlu0 %3070
        %3072 = vrot.lane.b32.xlu0 %v2963, 126
        %v3073 = vpop.permute.xlu0 %3072
        %3074 = vrot.lane.b32.xlu0 %v2964, 126
        %v3075 = vpop.permute.xlu0 %3074
        %s3076 = vtos %v3069
        %v3077 = vstv %s3076
        %s3079 = vtos %v3071
        %v3080 = vstv %s3079
        %s3082 = vtos %v3073
        %v3083 = vstv %s3082
        %s3085 = vtos %v3075
        %v3086 = vstv %s3085
        %v3088 = vmul.f32 %v3077, %v242
        %v3089 = vmul.f32 %v3077, %v249
        %v3090 = vmul.f32 %v3080, %v256
        %v3091 = vmul.f32 %v3080, %v263
        %v3092 = vmul.f32 %v3083, %v270
        %v3093 = vmul.f32 %v3083, %v277
        %v3094 = vmul.f32 %v3086, %v284
        %v3095 = vmul.f32 %v3086, %v291
        %vm3096 = vcmask 89110
        %v3097 = vsel %vm3096, %v3088, 0.0
        %v3098 = vsel %vm3096, %v3090, 0.0
        %v3099 = vadd.f32 %v3097, %v3098
        %v3100 = vsel %vm3096, %v3092, 0.0
        %v3101 = vadd.f32 %v3099, %v3100
        %v3102 = vsel %vm3096, %v3094, 0.0
        %v3103 = vadd.f32 %v3101, %v3102
        %vm3104 = vcmask 88080
        %v3105 = vsel %vm3104, %v3089, 0.0
        %v3106 = vsel %vm3104, %v3091, 0.0
        %v3107 = vadd.f32 %v3105, %v3106
        %v3108 = vsel %vm3104, %v3093, 0.0
        %v3109 = vadd.f32 %v3107, %v3108
        %v3110 = vsel %vm3104, %v3095, 0.0
        %v3111 = vadd.f32 %v3109, %v3110
        %v3114 = vrot.slane %v3103, 6
        %v3115 = vrot.slane %v3111, 6
        %v3116 = vsel %vm3003, %v3114, %v3115
        %3117 = vrot.lane.b32.xlu0 %v3116, 126
        %v3118 = vpop.permute.xlu0 %3117
        %3119 = vrot.lane.b32.xlu0 %v3115, 126
        %v3120 = vpop.permute.xlu0 %3119
        %v3123 = vadd.f32 %v3066, %v3118
        %v3124 = vadd.f32 %v3067, %v3120
        %3125 = vrot.lane.b32.xlu0 %v2961, 125
        %v3126 = vpop.permute.xlu0 %3125
        %3127 = vrot.lane.b32.xlu0 %v2962, 125
        %v3128 = vpop.permute.xlu0 %3127
        %3129 = vrot.lane.b32.xlu0 %v2963, 125
        %v3130 = vpop.permute.xlu0 %3129
        %3131 = vrot.lane.b32.xlu0 %v2964, 125
        %v3132 = vpop.permute.xlu0 %3131
        %s3133 = vtos %v3126
        %v3134 = vstv %s3133
        %s3136 = vtos %v3128
        %v3137 = vstv %s3136
        %s3139 = vtos %v3130
        %v3140 = vstv %s3139
        %s3142 = vtos %v3132
        %v3143 = vstv %s3142
        %v3145 = vmul.f32 %v3134, %v242
        %v3146 = vmul.f32 %v3134, %v249
        %v3147 = vmul.f32 %v3137, %v256
        %v3148 = vmul.f32 %v3137, %v263
        %v3149 = vmul.f32 %v3140, %v270
        %v3150 = vmul.f32 %v3140, %v277
        %v3151 = vmul.f32 %v3143, %v284
        %v3152 = vmul.f32 %v3143, %v291
        %vm3153 = vcmask 97310
        %v3154 = vsel %vm3153, %v3145, 0.0
        %v3155 = vsel %vm3153, %v3147, 0.0
        %v3156 = vadd.f32 %v3154, %v3155
        %v3157 = vsel %vm3153, %v3149, 0.0
        %v3158 = vadd.f32 %v3156, %v3157
        %v3159 = vsel %vm3153, %v3151, 0.0
        %v3160 = vadd.f32 %v3158, %v3159
        %vm3161 = vcmask 96280
        %v3162 = vsel %vm3161, %v3146, 0.0
        %v3163 = vsel %vm3161, %v3148, 0.0
        %v3164 = vadd.f32 %v3162, %v3163
        %v3165 = vsel %vm3161, %v3150, 0.0
        %v3166 = vadd.f32 %v3164, %v3165
        %v3167 = vsel %vm3161, %v3152, 0.0
        %v3168 = vadd.f32 %v3166, %v3167
        %v3171 = vrot.slane %v3160, 6
        %v3172 = vrot.slane %v3168, 6
        %v3173 = vsel %vm3003, %v3171, %v3172
        %3174 = vrot.lane.b32.xlu0 %v3173, 125
        %v3175 = vpop.permute.xlu0 %3174
        %3176 = vrot.lane.b32.xlu0 %v3172, 125
        %v3177 = vpop.permute.xlu0 %3176
        %v3180 = vadd.f32 %v3123, %v3175
        %v3181 = vadd.f32 %v3124, %v3177
        %3182 = vrot.lane.b32.xlu0 %v2961, 124
        %v3183 = vpop.permute.xlu0 %3182
        %3184 = vrot.lane.b32.xlu0 %v2962, 124
        %v3185 = vpop.permute.xlu0 %3184
        %3186 = vrot.lane.b32.xlu0 %v2963, 124
        %v3187 = vpop.permute.xlu0 %3186
        %3188 = vrot.lane.b32.xlu0 %v2964, 124
        %v3189 = vpop.permute.xlu0 %3188
        %s3190 = vtos %v3183
        %v3191 = vstv %s3190
        %s3193 = vtos %v3185
        %v3194 = vstv %s3193
        %s3196 = vtos %v3187
        %v3197 = vstv %s3196
        %s3199 = vtos %v3189
        %v3200 = vstv %s3199
        %v3202 = vmul.f32 %v3191, %v242
        %v3203 = vmul.f32 %v3191, %v249
        %v3204 = vmul.f32 %v3194, %v256
        %v3205 = vmul.f32 %v3194, %v263
        %v3206 = vmul.f32 %v3197, %v270
        %v3207 = vmul.f32 %v3197, %v277
        %v3208 = vmul.f32 %v3200, %v284
        %v3209 = vmul.f32 %v3200, %v291
        %vm3210 = vcmask 105510
        %v3211 = vsel %vm3210, %v3202, 0.0
        %v3212 = vsel %vm3210, %v3204, 0.0
        %v3213 = vadd.f32 %v3211, %v3212
        %v3214 = vsel %vm3210, %v3206, 0.0
        %v3215 = vadd.f32 %v3213, %v3214
        %v3216 = vsel %vm3210, %v3208, 0.0
        %v3217 = vadd.f32 %v3215, %v3216
        %vm3218 = vcmask 104480
        %v3219 = vsel %vm3218, %v3203, 0.0
        %v3220 = vsel %vm3218, %v3205, 0.0
        %v3221 = vadd.f32 %v3219, %v3220
        %v3222 = vsel %vm3218, %v3207, 0.0
        %v3223 = vadd.f32 %v3221, %v3222
        %v3224 = vsel %vm3218, %v3209, 0.0
        %v3225 = vadd.f32 %v3223, %v3224
        %v3228 = vrot.slane %v3217, 6
        %v3229 = vrot.slane %v3225, 6
        %v3230 = vsel %vm3003, %v3228, %v3229
        %3231 = vrot.lane.b32.xlu0 %v3230, 124
        %v3232 = vpop.permute.xlu0 %3231
        %3233 = vrot.lane.b32.xlu0 %v3229, 124
        %v3234 = vpop.permute.xlu0 %3233
        %v3237 = vadd.f32 %v3180, %v3232
        %v3238 = vadd.f32 %v3181, %v3234
        %3239 = vrot.lane.b32.xlu0 %v2961, 123
        %v3240 = vpop.permute.xlu0 %3239
        %3241 = vrot.lane.b32.xlu0 %v2962, 123
        %v3242 = vpop.permute.xlu0 %3241
        %3243 = vrot.lane.b32.xlu0 %v2963, 123
        %v3244 = vpop.permute.xlu0 %3243
        %3245 = vrot.lane.b32.xlu0 %v2964, 123
        %v3246 = vpop.permute.xlu0 %3245
        %s3247 = vtos %v3240
        %v3248 = vstv %s3247
        %s3250 = vtos %v3242
        %v3251 = vstv %s3250
        %s3253 = vtos %v3244
        %v3254 = vstv %s3253
        %s3256 = vtos %v3246
        %v3257 = vstv %s3256
        %v3259 = vmul.f32 %v3248, %v242
        %v3260 = vmul.f32 %v3248, %v249
        %v3261 = vmul.f32 %v3251, %v256
        %v3262 = vmul.f32 %v3251, %v263
        %v3263 = vmul.f32 %v3254, %v270
        %v3264 = vmul.f32 %v3254, %v277
        %v3265 = vmul.f32 %v3257, %v284
        %v3266 = vmul.f32 %v3257, %v291
        %vm3267 = vcmask 113710
        %v3268 = vsel %vm3267, %v3259, 0.0
        %v3269 = vsel %vm3267, %v3261, 0.0
        %v3270 = vadd.f32 %v3268, %v3269
        %v3271 = vsel %vm3267, %v3263, 0.0
        %v3272 = vadd.f32 %v3270, %v3271
        %v3273 = vsel %vm3267, %v3265, 0.0
        %v3274 = vadd.f32 %v3272, %v3273
        %vm3275 = vcmask 112680
        %v3276 = vsel %vm3275, %v3260, 0.0
        %v3277 = vsel %vm3275, %v3262, 0.0
        %v3278 = vadd.f32 %v3276, %v3277
        %v3279 = vsel %vm3275, %v3264, 0.0
        %v3280 = vadd.f32 %v3278, %v3279
        %v3281 = vsel %vm3275, %v3266, 0.0
        %v3282 = vadd.f32 %v3280, %v3281
        %v3285 = vrot.slane %v3274, 6
        %v3286 = vrot.slane %v3282, 6
        %v3287 = vsel %vm3003, %v3285, %v3286
        %3288 = vrot.lane.b32.xlu0 %v3287, 123
        %v3289 = vpop.permute.xlu0 %3288
        %3290 = vrot.lane.b32.xlu0 %v3286, 123
        %v3291 = vpop.permute.xlu0 %3290
        %v3294 = vadd.f32 %v3237, %v3289
        %v3295 = vadd.f32 %v3238, %v3291
        %3296 = vrot.lane.b32.xlu0 %v2961, 122
        %v3297 = vpop.permute.xlu0 %3296
        %3298 = vrot.lane.b32.xlu0 %v2962, 122
        %v3299 = vpop.permute.xlu0 %3298
        %3300 = vrot.lane.b32.xlu0 %v2963, 122
        %v3301 = vpop.permute.xlu0 %3300
        %3302 = vrot.lane.b32.xlu0 %v2964, 122
        %v3303 = vpop.permute.xlu0 %3302
        %s3304 = vtos %v3297
        %v3305 = vstv %s3304
        %s3307 = vtos %v3299
        %v3308 = vstv %s3307
        %s3310 = vtos %v3301
        %v3311 = vstv %s3310
        %s3313 = vtos %v3303
        %v3314 = vstv %s3313
        %v3316 = vmul.f32 %v3305, %v242
        %v3317 = vmul.f32 %v3305, %v249
        %v3318 = vmul.f32 %v3308, %v256
        %v3319 = vmul.f32 %v3308, %v263
        %v3320 = vmul.f32 %v3311, %v270
        %v3321 = vmul.f32 %v3311, %v277
        %v3322 = vmul.f32 %v3314, %v284
        %v3323 = vmul.f32 %v3314, %v291
        %vm3324 = vcmask 121910
        %v3325 = vsel %vm3324, %v3316, 0.0
        %v3326 = vsel %vm3324, %v3318, 0.0
        %v3327 = vadd.f32 %v3325, %v3326
        %v3328 = vsel %vm3324, %v3320, 0.0
        %v3329 = vadd.f32 %v3327, %v3328
        %v3330 = vsel %vm3324, %v3322, 0.0
        %v3331 = vadd.f32 %v3329, %v3330
        %vm3332 = vcmask 120880
        %v3333 = vsel %vm3332, %v3317, 0.0
        %v3334 = vsel %vm3332, %v3319, 0.0
        %v3335 = vadd.f32 %v3333, %v3334
        %v3336 = vsel %vm3332, %v3321, 0.0
        %v3337 = vadd.f32 %v3335, %v3336
        %v3338 = vsel %vm3332, %v3323, 0.0
        %v3339 = vadd.f32 %v3337, %v3338
        %v3342 = vrot.slane %v3331, 6
        %v3343 = vrot.slane %v3339, 6
        %v3344 = vsel %vm3003, %v3342, %v3343
        %3345 = vrot.lane.b32.xlu0 %v3344, 122
        %v3346 = vpop.permute.xlu0 %3345
        %3347 = vrot.lane.b32.xlu0 %v3343, 122
        %v3348 = vpop.permute.xlu0 %3347
        %v3351 = vadd.f32 %v3294, %v3346
        %v3352 = vadd.f32 %v3295, %v3348
        %3353 = vrot.lane.b32.xlu0 %v2961, 121
        %v3354 = vpop.permute.xlu0 %3353
        %3355 = vrot.lane.b32.xlu0 %v2962, 121
        %v3356 = vpop.permute.xlu0 %3355
        %3357 = vrot.lane.b32.xlu0 %v2963, 121
        %v3358 = vpop.permute.xlu0 %3357
        %3359 = vrot.lane.b32.xlu0 %v2964, 121
        %v3360 = vpop.permute.xlu0 %3359
        %s3361 = vtos %v3354
        %v3362 = vstv %s3361
        %s3364 = vtos %v3356
        %v3365 = vstv %s3364
        %s3367 = vtos %v3358
        %v3368 = vstv %s3367
        %s3370 = vtos %v3360
        %v3371 = vstv %s3370
        %v3373 = vmul.f32 %v3362, %v242
        %v3374 = vmul.f32 %v3362, %v249
        %v3375 = vmul.f32 %v3365, %v256
        %v3376 = vmul.f32 %v3365, %v263
        %v3377 = vmul.f32 %v3368, %v270
        %v3378 = vmul.f32 %v3368, %v277
        %v3379 = vmul.f32 %v3371, %v284
        %v3380 = vmul.f32 %v3371, %v291
        %vm3381 = vcmask 130110
        %v3382 = vsel %vm3381, %v3373, 0.0
        %v3383 = vsel %vm3381, %v3375, 0.0
        %v3384 = vadd.f32 %v3382, %v3383
        %v3385 = vsel %vm3381, %v3377, 0.0
        %v3386 = vadd.f32 %v3384, %v3385
        %v3387 = vsel %vm3381, %v3379, 0.0
        %v3388 = vadd.f32 %v3386, %v3387
        %vm3389 = vcmask 129080
        %v3390 = vsel %vm3389, %v3374, 0.0
        %v3391 = vsel %vm3389, %v3376, 0.0
        %v3392 = vadd.f32 %v3390, %v3391
        %v3393 = vsel %vm3389, %v3378, 0.0
        %v3394 = vadd.f32 %v3392, %v3393
        %v3395 = vsel %vm3389, %v3380, 0.0
        %v3396 = vadd.f32 %v3394, %v3395
        %v3399 = vrot.slane %v3388, 6
        %v3400 = vrot.slane %v3396, 6
        %v3401 = vsel %vm3003, %v3399, %v3400
        %3402 = vrot.lane.b32.xlu0 %v3401, 121
        %v3403 = vpop.permute.xlu0 %3402
        %3404 = vrot.lane.b32.xlu0 %v3400, 121
        %v3405 = vpop.permute.xlu0 %3404
        %v3408 = vadd.f32 %v3351, %v3403
        %v3409 = vadd.f32 %v3352, %v3405
        %v3410 = vrot.slane %v292, 7
        %v3411 = vrot.slane %v293, 7
        %v3412 = vrot.slane %v294, 7
        %v3413 = vrot.slane %v295, 7
        %s3414 = vtos %v3410
        %v3415 = vstv %s3414
        %s3417 = vtos %v3411
        %v3418 = vstv %s3417
        %s3420 = vtos %v3412
        %v3421 = vstv %s3420
        %s3423 = vtos %v3413
        %v3424 = vstv %s3423
        %v3426 = vmul.f32 %v3415, %v242
        %v3427 = vmul.f32 %v3415, %v249
        %v3428 = vmul.f32 %v3418, %v256
        %v3429 = vmul.f32 %v3418, %v263
        %v3430 = vmul.f32 %v3421, %v270
        %v3431 = vmul.f32 %v3421, %v277
        %v3432 = vmul.f32 %v3424, %v284
        %v3433 = vmul.f32 %v3424, %v291
        %vm3434 = vcmask 72711
        %v3435 = vsel %vm3434, %v3426, 0.0
        %v3436 = vsel %vm3434, %v3428, 0.0
        %v3437 = vadd.f32 %v3435, %v3436
        %v3438 = vsel %vm3434, %v3430, 0.0
        %v3439 = vadd.f32 %v3437, %v3438
        %v3440 = vsel %vm3434, %v3432, 0.0
        %v3441 = vadd.f32 %v3439, %v3440
        %v3442 = vsel %vm320, %v3427, 0.0
        %v3443 = vsel %vm320, %v3429, 0.0
        %v3444 = vadd.f32 %v3442, %v3443
        %v3445 = vsel %vm320, %v3431, 0.0
        %v3446 = vadd.f32 %v3444, %v3445
        %v3447 = vsel %vm320, %v3433, 0.0
        %v3448 = vadd.f32 %v3446, %v3447
        %vm3451 = vcmask 1040384
        %v3452 = vrot.slane %v3441, 7
        %v3453 = vrot.slane %v3448, 7
        %v3454 = vsel %vm3451, %v3452, %v3453
        %v3457 = vadd.f32 %v3408, %v3454
        %v3458 = vadd.f32 %v3409, %v3453
        %3459 = vrot.lane.b32.xlu0 %v3410, 127
        %v3460 = vpop.permute.xlu0 %3459
        %3461 = vrot.lane.b32.xlu0 %v3411, 127
        %v3462 = vpop.permute.xlu0 %3461
        %3463 = vrot.lane.b32.xlu0 %v3412, 127
        %v3464 = vpop.permute.xlu0 %3463
        %3465 = vrot.lane.b32.xlu0 %v3413, 127
        %v3466 = vpop.permute.xlu0 %3465
        %s3467 = vtos %v3460
        %v3468 = vstv %s3467
        %s3470 = vtos %v3462
        %v3471 = vstv %s3470
        %s3473 = vtos %v3464
        %v3474 = vstv %s3473
        %s3476 = vtos %v3466
        %v3477 = vstv %s3476
        %v3479 = vmul.f32 %v3468, %v242
        %v3480 = vmul.f32 %v3468, %v249
        %v3481 = vmul.f32 %v3471, %v256
        %v3482 = vmul.f32 %v3471, %v263
        %v3483 = vmul.f32 %v3474, %v270
        %v3484 = vmul.f32 %v3474, %v277
        %v3485 = vmul.f32 %v3477, %v284
        %v3486 = vmul.f32 %v3477, %v291
        %vm3487 = vcmask 80911
        %v3488 = vsel %vm3487, %v3479, 0.0
        %v3489 = vsel %vm3487, %v3481, 0.0
        %v3490 = vadd.f32 %v3488, %v3489
        %v3491 = vsel %vm3487, %v3483, 0.0
        %v3492 = vadd.f32 %v3490, %v3491
        %v3493 = vsel %vm3487, %v3485, 0.0
        %v3494 = vadd.f32 %v3492, %v3493
        %v3495 = vsel %vm366, %v3480, 0.0
        %v3496 = vsel %vm366, %v3482, 0.0
        %v3497 = vadd.f32 %v3495, %v3496
        %v3498 = vsel %vm366, %v3484, 0.0
        %v3499 = vadd.f32 %v3497, %v3498
        %v3500 = vsel %vm366, %v3486, 0.0
        %v3501 = vadd.f32 %v3499, %v3500
        %v3504 = vrot.slane %v3494, 7
        %v3505 = vrot.slane %v3501, 7
        %v3506 = vsel %vm3451, %v3504, %v3505
        %3507 = vrot.lane.b32.xlu0 %v3506, 127
        %v3508 = vpop.permute.xlu0 %3507
        %3509 = vrot.lane.b32.xlu0 %v3505, 127
        %v3510 = vpop.permute.xlu0 %3509
        %v3513 = vadd.f32 %v3457, %v3508
        %v3514 = vadd.f32 %v3458, %v3510
        %3515 = vrot.lane.b32.xlu0 %v3410, 126
        %v3516 = vpop.permute.xlu0 %3515
        %3517 = vrot.lane.b32.xlu0 %v3411, 126
        %v3518 = vpop.permute.xlu0 %3517
        %3519 = vrot.lane.b32.xlu0 %v3412, 126
        %v3520 = vpop.permute.xlu0 %3519
        %3521 = vrot.lane.b32.xlu0 %v3413, 126
        %v3522 = vpop.permute.xlu0 %3521
        %s3523 = vtos %v3516
        %v3524 = vstv %s3523
        %s3526 = vtos %v3518
        %v3527 = vstv %s3526
        %s3529 = vtos %v3520
        %v3530 = vstv %s3529
        %s3532 = vtos %v3522
        %v3533 = vstv %s3532
        %v3535 = vmul.f32 %v3524, %v242
        %v3536 = vmul.f32 %v3524, %v249
        %v3537 = vmul.f32 %v3527, %v256
        %v3538 = vmul.f32 %v3527, %v263
        %v3539 = vmul.f32 %v3530, %v270
        %v3540 = vmul.f32 %v3530, %v277
        %v3541 = vmul.f32 %v3533, %v284
        %v3542 = vmul.f32 %v3533, %v291
        %vm3543 = vcmask 89111
        %v3544 = vsel %vm3543, %v3535, 0.0
        %v3545 = vsel %vm3543, %v3537, 0.0
        %v3546 = vadd.f32 %v3544, %v3545
        %v3547 = vsel %vm3543, %v3539, 0.0
        %v3548 = vadd.f32 %v3546, %v3547
        %v3549 = vsel %vm3543, %v3541, 0.0
        %v3550 = vadd.f32 %v3548, %v3549
        %v3551 = vsel %vm420, %v3536, 0.0
        %v3552 = vsel %vm420, %v3538, 0.0
        %v3553 = vadd.f32 %v3551, %v3552
        %v3554 = vsel %vm420, %v3540, 0.0
        %v3555 = vadd.f32 %v3553, %v3554
        %v3556 = vsel %vm420, %v3542, 0.0
        %v3557 = vadd.f32 %v3555, %v3556
        %v3560 = vrot.slane %v3550, 7
        %v3561 = vrot.slane %v3557, 7
        %v3562 = vsel %vm3451, %v3560, %v3561
        %3563 = vrot.lane.b32.xlu0 %v3562, 126
        %v3564 = vpop.permute.xlu0 %3563
        %3565 = vrot.lane.b32.xlu0 %v3561, 126
        %v3566 = vpop.permute.xlu0 %3565
        %v3569 = vadd.f32 %v3513, %v3564
        %v3570 = vadd.f32 %v3514, %v3566
        %3571 = vrot.lane.b32.xlu0 %v3410, 125
        %v3572 = vpop.permute.xlu0 %3571
        %3573 = vrot.lane.b32.xlu0 %v3411, 125
        %v3574 = vpop.permute.xlu0 %3573
        %3575 = vrot.lane.b32.xlu0 %v3412, 125
        %v3576 = vpop.permute.xlu0 %3575
        %3577 = vrot.lane.b32.xlu0 %v3413, 125
        %v3578 = vpop.permute.xlu0 %3577
        %s3579 = vtos %v3572
        %v3580 = vstv %s3579
        %s3582 = vtos %v3574
        %v3583 = vstv %s3582
        %s3585 = vtos %v3576
        %v3586 = vstv %s3585
        %s3588 = vtos %v3578
        %v3589 = vstv %s3588
        %v3591 = vmul.f32 %v3580, %v242
        %v3592 = vmul.f32 %v3580, %v249
        %v3593 = vmul.f32 %v3583, %v256
        %v3594 = vmul.f32 %v3583, %v263
        %v3595 = vmul.f32 %v3586, %v270
        %v3596 = vmul.f32 %v3586, %v277
        %v3597 = vmul.f32 %v3589, %v284
        %v3598 = vmul.f32 %v3589, %v291
        %vm3599 = vcmask 97311
        %v3600 = vsel %vm3599, %v3591, 0.0
        %v3601 = vsel %vm3599, %v3593, 0.0
        %v3602 = vadd.f32 %v3600, %v3601
        %v3603 = vsel %vm3599, %v3595, 0.0
        %v3604 = vadd.f32 %v3602, %v3603
        %v3605 = vsel %vm3599, %v3597, 0.0
        %v3606 = vadd.f32 %v3604, %v3605
        %v3607 = vsel %vm474, %v3592, 0.0
        %v3608 = vsel %vm474, %v3594, 0.0
        %v3609 = vadd.f32 %v3607, %v3608
        %v3610 = vsel %vm474, %v3596, 0.0
        %v3611 = vadd.f32 %v3609, %v3610
        %v3612 = vsel %vm474, %v3598, 0.0
        %v3613 = vadd.f32 %v3611, %v3612
        %v3616 = vrot.slane %v3606, 7
        %v3617 = vrot.slane %v3613, 7
        %v3618 = vsel %vm3451, %v3616, %v3617
        %3619 = vrot.lane.b32.xlu0 %v3618, 125
        %v3620 = vpop.permute.xlu0 %3619
        %3621 = vrot.lane.b32.xlu0 %v3617, 125
        %v3622 = vpop.permute.xlu0 %3621
        %v3625 = vadd.f32 %v3569, %v3620
        %v3626 = vadd.f32 %v3570, %v3622
        %3627 = vrot.lane.b32.xlu0 %v3410, 124
        %v3628 = vpop.permute.xlu0 %3627
        %3629 = vrot.lane.b32.xlu0 %v3411, 124
        %v3630 = vpop.permute.xlu0 %3629
        %3631 = vrot.lane.b32.xlu0 %v3412, 124
        %v3632 = vpop.permute.xlu0 %3631
        %3633 = vrot.lane.b32.xlu0 %v3413, 124
        %v3634 = vpop.permute.xlu0 %3633
        %s3635 = vtos %v3628
        %v3636 = vstv %s3635
        %s3638 = vtos %v3630
        %v3639 = vstv %s3638
        %s3641 = vtos %v3632
        %v3642 = vstv %s3641
        %s3644 = vtos %v3634
        %v3645 = vstv %s3644
        %v3647 = vmul.f32 %v3636, %v242
        %v3648 = vmul.f32 %v3636, %v249
        %v3649 = vmul.f32 %v3639, %v256
        %v3650 = vmul.f32 %v3639, %v263
        %v3651 = vmul.f32 %v3642, %v270
        %v3652 = vmul.f32 %v3642, %v277
        %v3653 = vmul.f32 %v3645, %v284
        %v3654 = vmul.f32 %v3645, %v291
        %vm3655 = vcmask 105511
        %v3656 = vsel %vm3655, %v3647, 0.0
        %v3657 = vsel %vm3655, %v3649, 0.0
        %v3658 = vadd.f32 %v3656, %v3657
        %v3659 = vsel %vm3655, %v3651, 0.0
        %v3660 = vadd.f32 %v3658, %v3659
        %v3661 = vsel %vm3655, %v3653, 0.0
        %v3662 = vadd.f32 %v3660, %v3661
        %v3663 = vsel %vm528, %v3648, 0.0
        %v3664 = vsel %vm528, %v3650, 0.0
        %v3665 = vadd.f32 %v3663, %v3664
        %v3666 = vsel %vm528, %v3652, 0.0
        %v3667 = vadd.f32 %v3665, %v3666
        %v3668 = vsel %vm528, %v3654, 0.0
        %v3669 = vadd.f32 %v3667, %v3668
        %v3672 = vrot.slane %v3662, 7
        %v3673 = vrot.slane %v3669, 7
        %v3674 = vsel %vm3451, %v3672, %v3673
        %3675 = vrot.lane.b32.xlu0 %v3674, 124
        %v3676 = vpop.permute.xlu0 %3675
        %3677 = vrot.lane.b32.xlu0 %v3673, 124
        %v3678 = vpop.permute.xlu0 %3677
        %v3681 = vadd.f32 %v3625, %v3676
        %v3682 = vadd.f32 %v3626, %v3678
        %3683 = vrot.lane.b32.xlu0 %v3410, 123
        %v3684 = vpop.permute.xlu0 %3683
        %3685 = vrot.lane.b32.xlu0 %v3411, 123
        %v3686 = vpop.permute.xlu0 %3685
        %3687 = vrot.lane.b32.xlu0 %v3412, 123
        %v3688 = vpop.permute.xlu0 %3687
        %3689 = vrot.lane.b32.xlu0 %v3413, 123
        %v3690 = vpop.permute.xlu0 %3689
        %s3691 = vtos %v3684
        %v3692 = vstv %s3691
        %s3694 = vtos %v3686
        %v3695 = vstv %s3694
        %s3697 = vtos %v3688
        %v3698 = vstv %s3697
        %s3700 = vtos %v3690
        %v3701 = vstv %s3700
        %v3703 = vmul.f32 %v3692, %v242
        %v3704 = vmul.f32 %v3692, %v249
        %v3705 = vmul.f32 %v3695, %v256
        %v3706 = vmul.f32 %v3695, %v263
        %v3707 = vmul.f32 %v3698, %v270
        %v3708 = vmul.f32 %v3698, %v277
        %v3709 = vmul.f32 %v3701, %v284
        %v3710 = vmul.f32 %v3701, %v291
        %vm3711 = vcmask 113711
        %v3712 = vsel %vm3711, %v3703, 0.0
        %v3713 = vsel %vm3711, %v3705, 0.0
        %v3714 = vadd.f32 %v3712, %v3713
        %v3715 = vsel %vm3711, %v3707, 0.0
        %v3716 = vadd.f32 %v3714, %v3715
        %v3717 = vsel %vm3711, %v3709, 0.0
        %v3718 = vadd.f32 %v3716, %v3717
        %v3719 = vsel %vm582, %v3704, 0.0
        %v3720 = vsel %vm582, %v3706, 0.0
        %v3721 = vadd.f32 %v3719, %v3720
        %v3722 = vsel %vm582, %v3708, 0.0
        %v3723 = vadd.f32 %v3721, %v3722
        %v3724 = vsel %vm582, %v3710, 0.0
        %v3725 = vadd.f32 %v3723, %v3724
        %v3728 = vrot.slane %v3718, 7
        %v3729 = vrot.slane %v3725, 7
        %v3730 = vsel %vm3451, %v3728, %v3729
        %3731 = vrot.lane.b32.xlu0 %v3730, 123
        %v3732 = vpop.permute.xlu0 %3731
        %3733 = vrot.lane.b32.xlu0 %v3729, 123
        %v3734 = vpop.permute.xlu0 %3733
        %v3737 = vadd.f32 %v3681, %v3732
        %v3738 = vadd.f32 %v3682, %v3734
        %3739 = vrot.lane.b32.xlu0 %v3410, 122
        %v3740 = vpop.permute.xlu0 %3739
        %3741 = vrot.lane.b32.xlu0 %v3411, 122
        %v3742 = vpop.permute.xlu0 %3741
        %3743 = vrot.lane.b32.xlu0 %v3412, 122
        %v3744 = vpop.permute.xlu0 %3743
        %3745 = vrot.lane.b32.xlu0 %v3413, 122
        %v3746 = vpop.permute.xlu0 %3745
        %s3747 = vtos %v3740
        %v3748 = vstv %s3747
        %s3750 = vtos %v3742
        %v3751 = vstv %s3750
        %s3753 = vtos %v3744
        %v3754 = vstv %s3753
        %s3756 = vtos %v3746
        %v3757 = vstv %s3756
        %v3759 = vmul.f32 %v3748, %v242
        %v3760 = vmul.f32 %v3748, %v249
        %v3761 = vmul.f32 %v3751, %v256
        %v3762 = vmul.f32 %v3751, %v263
        %v3763 = vmul.f32 %v3754, %v270
        %v3764 = vmul.f32 %v3754, %v277
        %v3765 = vmul.f32 %v3757, %v284
        %v3766 = vmul.f32 %v3757, %v291
        %vm3767 = vcmask 121911
        %v3768 = vsel %vm3767, %v3759, 0.0
        %v3769 = vsel %vm3767, %v3761, 0.0
        %v3770 = vadd.f32 %v3768, %v3769
        %v3771 = vsel %vm3767, %v3763, 0.0
        %v3772 = vadd.f32 %v3770, %v3771
        %v3773 = vsel %vm3767, %v3765, 0.0
        %v3774 = vadd.f32 %v3772, %v3773
        %v3775 = vsel %vm636, %v3760, 0.0
        %v3776 = vsel %vm636, %v3762, 0.0
        %v3777 = vadd.f32 %v3775, %v3776
        %v3778 = vsel %vm636, %v3764, 0.0
        %v3779 = vadd.f32 %v3777, %v3778
        %v3780 = vsel %vm636, %v3766, 0.0
        %v3781 = vadd.f32 %v3779, %v3780
        %v3784 = vrot.slane %v3774, 7
        %v3785 = vrot.slane %v3781, 7
        %v3786 = vsel %vm3451, %v3784, %v3785
        %3787 = vrot.lane.b32.xlu0 %v3786, 122
        %v3788 = vpop.permute.xlu0 %3787
        %3789 = vrot.lane.b32.xlu0 %v3785, 122
        %v3790 = vpop.permute.xlu0 %3789
        %v3793 = vadd.f32 %v3737, %v3788
        %v3794 = vadd.f32 %v3738, %v3790
        %3795 = vrot.lane.b32.xlu0 %v3410, 121
        %v3796 = vpop.permute.xlu0 %3795
        %3797 = vrot.lane.b32.xlu0 %v3411, 121
        %v3798 = vpop.permute.xlu0 %3797
        %3799 = vrot.lane.b32.xlu0 %v3412, 121
        %v3800 = vpop.permute.xlu0 %3799
        %3801 = vrot.lane.b32.xlu0 %v3413, 121
        %v3802 = vpop.permute.xlu0 %3801
        %s3803 = vtos %v3796
        %v3804 = vstv %s3803
        %s3806 = vtos %v3798
        %v3807 = vstv %s3806
        %s3809 = vtos %v3800
        %v3810 = vstv %s3809
        %s3812 = vtos %v3802
        %v3813 = vstv %s3812
        %v3815 = vmul.f32 %v3804, %v242
        %v3816 = vmul.f32 %v3804, %v249
        %v3817 = vmul.f32 %v3807, %v256
        %v3818 = vmul.f32 %v3807, %v263
        %v3819 = vmul.f32 %v3810, %v270
        %v3820 = vmul.f32 %v3810, %v277
        %v3821 = vmul.f32 %v3813, %v284
        %v3822 = vmul.f32 %v3813, %v291
        %vm3823 = vcmask 130111
        %v3824 = vsel %vm3823, %v3815, 0.0
        %v3825 = vsel %vm3823, %v3817, 0.0
        %v3826 = vadd.f32 %v3824, %v3825
        %v3827 = vsel %vm3823, %v3819, 0.0
        %v3828 = vadd.f32 %v3826, %v3827
        %v3829 = vsel %vm3823, %v3821, 0.0
        %v3830 = vadd.f32 %v3828, %v3829
        %v3831 = vsel %vm690, %v3816, 0.0
        %v3832 = vsel %vm690, %v3818, 0.0
        %v3833 = vadd.f32 %v3831, %v3832
        %v3834 = vsel %vm690, %v3820, 0.0
        %v3835 = vadd.f32 %v3833, %v3834
        %v3836 = vsel %vm690, %v3822, 0.0
        %v3837 = vadd.f32 %v3835, %v3836
        %v3840 = vrot.slane %v3830, 7
        %v3841 = vrot.slane %v3837, 7
        %v3842 = vsel %vm3451, %v3840, %v3841
        %3843 = vrot.lane.b32.xlu0 %v3842, 121
        %v3844 = vpop.permute.xlu0 %3843
        %3845 = vrot.lane.b32.xlu0 %v3841, 121
        %v3846 = vpop.permute.xlu0 %3845
        %v3849 = vadd.f32 %v3793, %v3844
        %v3850 = vadd.f32 %v3794, %v3846
        %v3851 = vmul.f32 %v3849, 0.015625
        %v3852 = vmul.f32 %v3850, 0.015625
        %s3853 = smul.u32 %s21, 16
        %s3854 = scalar_lea.vmem [#allocation2], %s3853
        %3855 = vst.msk [vmem:[%s3854] sm:$0xff] %vm320, %v3851
        %3856 = vst.msk [vmem:[%s3854 + $0x8] sm:$0x1] %vm328, %v3852
        %p3857 = scmp.eq.s32.totalorder %s21, 1
        // Predicated region
        $region45: #{tpu_custom_call.1} parent=31 // pred_check
          %p3858 = pneg %p3857
        $region46: #{tpu_custom_call.1} parent=31 // pred_check_branch
          %3860 = sbr.rel (%p3858) target = $region48
        $region47: #{tpu_custom_call.1} parent=31 // pred_region
          %v3861 = vld [vmem:[#allocation2] sm:$0xff]
          %v3862 = vld [vmem:[#allocation2 + $0x8] sm:$0x1]
          %v3863 = vld [vmem:[#allocation2 + $0x10] sm:$0xff]
          %v3864 = vld [vmem:[#allocation2 + $0x18] sm:$0x1]
          %v3865 = vsel %vm320, %v3861, 0.0
          %v3866 = vsel %vm328, %v3862, 0.0
          %v3867 = vadd.f32 %v3865, %v3866
          %v3868 = vsel %vm320, %v3863, 0.0
          %v3869 = vadd.f32 %v3867, %v3868
          %v3870 = vsel %vm328, %v3864, 0.0
          %v3871 = vadd.f32 %v3869, %v3870
          %3872 = vadd.xlane.f32.xlu0 %v3871
          %v3873 = vpop.xlane.xlu0 %3872
          %v3874 = vrot.slane %v3873, 4
          %v3875 = vadd.f32 %v3873, %v3874
          %v3876 = vrot.slane %v3875, 2
          %v3877 = vadd.f32 %v3875, %v3876
          %v3878 = vrot.slane %v3877, 1
          %v3879 = vadd.f32 %v3877, %v3878
          %s3880 = vtos %v3879
          %s3881 = smul.f32 %s3880, 0.0061728396
          %v3882 = vstv %s3881
          %v3883 = vsub.f32 %v3861, %v3882
          %v3884 = vsub.f32 %v3862, %v3882
          %v3885 = vsub.f32 %v3863, %v3882
          %v3886 = vsub.f32 %v3864, %v3882
          %v3887 = vmul.f32 %v3883, %v3883
          %v3888 = vmul.f32 %v3884, %v3884
          %v3889 = vmul.f32 %v3885, %v3885
          %v3890 = vmul.f32 %v3886, %v3886
          %v3891 = vsel %vm320, %v3887, 0.0
          %v3892 = vsel %vm328, %v3888, 0.0
          %v3893 = vadd.f32 %v3891, %v3892
          %v3894 = vsel %vm320, %v3889, 0.0
          %v3895 = vadd.f32 %v3893, %v3894
          %v3896 = vsel %vm328, %v3890, 0.0
          %v3897 = vadd.f32 %v3895, %v3896
          %3898 = vadd.xlane.f32.xlu0 %v3897
          %v3899 = vpop.xlane.xlu0 %3898
          %v3900 = vrot.slane %v3899, 4
          %v3901 = vadd.f32 %v3899, %v3900
          %v3902 = vrot.slane %v3901, 2
          %v3903 = vadd.f32 %v3901, %v3902
          %v3904 = vrot.slane %v3903, 1
          %v3905 = vadd.f32 %v3903, %v3904
          %s3906 = vtos %v3905
          %s3907 = smul.f32 %s3906, 0.0061728396
          %s3908 = sadd.f32 %s3907, 1e-05
          %v3909 = vstv %s3908
          %v3910 = vrsqrt.pop %v3909
          %s3911 = vtos %v3910
          %s3912 = sld [smem:[#allocation3]]
          %s3913 = smul.f32 %s3912, %s3911
          %s3914 = sld [smem:[#allocation3 + $0x1]]
          %s3915 = smul.f32 %s3881, %s3913
          %s3916 = ssub.f32 %s3914, %s3915
          %v3917 = vstv %s3913
          %v3918 = vmul.f32 %v3861, %v3917
          %v3919 = vmul.f32 %v3862, %v3917
          %v3920 = vmul.f32 %v3863, %v3917
          %v3921 = vmul.f32 %v3864, %v3917
          %v3922 = vstv %s3916
          %v3923 = vadd.f32 %v3918, %v3922
          %v3924 = vadd.f32 %v3919, %v3922
          %v3925 = vadd.f32 %v3920, %v3922
          %v3926 = vadd.f32 %v3921, %v3922
          %3927 = vst.msk [vmem:[%s3] sm:$0xff] %vm320, %v3923
          %3928 = vst.msk [vmem:[%s3 + $0x8] sm:$0x1] %vm328, %v3924
          %3929 = vst.msk [vmem:[%s3 + $0x10] sm:$0xff] %vm320, %v3925
          %3930 = vst.msk [vmem:[%s3 + $0x18] sm:$0x1] %vm328, %v3926
        $region48: #{tpu_custom_call.1} parent=31 // pred_fallthru
          _
        // Predicated region
        $region49: #{tpu_custom_call.1} parent=31 // pred_check
          %p3931 = pneg %p107
        $region50: #{tpu_custom_call.1} parent=31 // pred_check_branch
          %3933 = sbr.rel (%p3931) target = $region52
        $region51: #{tpu_custom_call.1} parent=31 // pred_region
          _
        $region52: #{tpu_custom_call.1} parent=31 // pred_fallthru
          _
        // Predicated region
        $region53: #{tpu_custom_call.1} parent=31 // pred_check
          %p3934 = pneg %p107
        $region54: #{tpu_custom_call.1} parent=31 // pred_check_branch
          %3936 = sbr.rel (%p3934) target = $region56
        $region55: #{tpu_custom_call.1} parent=31 // pred_region
          _
        $region56: #{tpu_custom_call.1} parent=31 // pred_fallthru
          _
      $region32: #{tpu_custom_call.1} parent=5 // pred_fallthru
        _
      %p3937 = scmp.le.s32.totalorder 2, %s16
      // Predicated region
      $region57: #{tpu_custom_call.1} parent=5 // pred_check
        %p3938 = pneg %p3937
      $region58: #{tpu_custom_call.1} parent=5 // pred_check_branch
        %3940 = sbr.rel (%p3938) target = $region60
      $region59: #{tpu_custom_call.1} parent=5 // pred_region
        %s3941 = ssub.s32 %s16, 2
      $region60: #{tpu_custom_call.1} parent=5 // pred_fallthru
        _
    $region6: #{tpu_custom_call.1} parent=1 // loop_footer
      %s20 = sadd.s32 1, %s16
    $region7: #{tpu_custom_call.1} parent=1 // loop_footer_branch
      %15 = sbr.rel target = $region3
    $region8: #{tpu_custom_call.1} parent=1 // loop_exit
      _
    %3942 = vsyncpa [#allocation4], 1
    %s3943 = scalar_lea.sflag [#allocation4], 1
    %3944 = vsyncpa %s3943, 1
    %3945 = vsyncpa [#allocation8], 1
    %s3946 = scalar_lea.sflag [#allocation8], 1
    %3947 = vsyncpa %s3946, 1
    %3948 = vsyncpa [#allocation5], 1
    %s3949 = scalar_lea.sflag [#allocation5], 1
    %3950 = vsyncpa %s3949, 1

</llo_original>
